<compile_context>
chip_gen: v5e
topology: v5e:2x2
jax: 0.10.0
libtpu: 0.0.40
codegen_flags: <defaults>
</compile_context>

<pallas_src>
import functools
import math

import jax
import jax.numpy as jnp
import numpy as np
from jax import lax
from jax.experimental import pallas as pl
from jax.experimental.pallas import tpu as pltpu


# --------------------------------------------------------------------------
# Fused per-layer Pallas kernel
# --------------------------------------------------------------------------
def _layer_kernel(x_ref,
                  wqkv_ref, bqkv_ref, wp_ref, bp_ref, g1_ref, be1_ref,
                  w1_ref, b1_ref, w2_ref, b2_ref, g2_ref, be2_ref,
                  o_ref, *scratch, num_heads, eps, tq):
    S = x_ref.shape[1]                      # full sequence length
    D = wp_ref.shape[0]                     # dmodel
    H = num_heads
    dh = D // H
    cdt = wqkv_ref.dtype                    # matmul compute dtype (bf16)
    f32 = jnp.float32
    scale = 1.0 / math.sqrt(dh)

    if not scratch:
        # Single query tile (tq == S): one wide fused (D x 3D) MXU matmul.
        x_c = x_ref[0].astype(cdt)                                   # (S, D)
        qkv = jnp.dot(x_c, wqkv_ref[...],
                      preferred_element_type=f32) + bqkv_ref[...]    # (S, 3D)
        q = qkv[:, :D] * scale              # fold 1/sqrt(dh) into q
        k = qkv[:, D:2 * D].astype(cdt)
        v = qkv[:, 2 * D:].astype(cdt)
        x_res = x_ref[0].astype(f32)        # residual tile (tq == S)
    else:
        # Query-tiled path: K/V computed ONCE per batch row (q step 0) into a
        # persistent VMEM scratch and reused by every subsequent q tile.
        kv_ref = scratch[0]                 # (S, 2D) bf16, persists across q
        qi = pl.program_id(1)

        @pl.when(qi == 0)
        def _():
            x_c = x_ref[0].astype(cdt)
            kv = jnp.dot(x_c, wqkv_ref[:, D:],
                         preferred_element_type=f32) + bqkv_ref[:, D:]
            kv_ref[...] = kv.astype(cdt)

        row0 = pl.multiple_of(qi * tq, tq)
        x_tile = x_ref[0, pl.ds(row0, tq), :]                        # (TQ, D)
        q = jnp.dot(x_tile.astype(cdt), wqkv_ref[:, :D],
                    preferred_element_type=f32) + bqkv_ref[:, :D]
        q = q * scale
        k = kv_ref[:, :D]
        v = kv_ref[:, D:]
        x_res = x_tile.astype(f32)

    # ---- head-batched attention ------------------------------------------
    q_h = q.reshape(tq, H, dh).astype(cdt)
    k_h = k.reshape(S, H, dh)
    v_h = v.reshape(S, H, dh)

    s = jnp.einsum("qhd,khd->hqk", q_h, k_h,
                   preferred_element_type=f32)                       # (H,TQ,S)
    s = s - jnp.max(s, axis=-1, keepdims=True)
    p = jnp.exp(s)
    p = p * pl.reciprocal(jnp.sum(p, axis=-1, keepdims=True), approx=True)

    ctx = jnp.einsum("hqk,khd->qhd", p.astype(cdt), v_h,
                     preferred_element_type=f32).reshape(tq, D)      # (TQ, D)
    # TODO(synk): for long sequences (S >~ 1k) the (H, TQ, S) f32 score tensor
    # should be bounded with a KV-tile / online-softmax (flash) loop.

    proj = jnp.dot(ctx.astype(cdt), wp_ref[...],
                   preferred_element_type=f32) + bp_ref[...]

    # ---- residual add (add2) + LayerNorm (biased variance, eps=1e-6) ------
    z = proj + x_res
    mean = jnp.mean(z, axis=-1, keepdims=True)
    var = jnp.mean((z - mean) ** 2, axis=-1, keepdims=True)
    h1 = (z - mean) * lax.rsqrt(var + eps) * g1_ref[...] + be1_ref[...]

    # ---- AttentionOutput: dense -> ReLU -> dense2 -> residual -> LayerNorm
    m = jnp.dot(h1.astype(cdt), w1_ref[...],
                preferred_element_type=f32) + b1_ref[...]
    m = jnp.maximum(m, 0.0)
    y = jnp.dot(m.astype(cdt), w2_ref[...],
                preferred_element_type=f32) + b2_ref[...]

    z2 = y + h1
    mean2 = jnp.mean(z2, axis=-1, keepdims=True)
    var2 = jnp.mean((z2 - mean2) ** 2, axis=-1, keepdims=True)
    out = (z2 - mean2) * lax.rsqrt(var2 + eps) * g2_ref[...] + be2_ref[...]

    o_ref[0] = out.astype(o_ref.dtype)


# --------------------------------------------------------------------------
# Wrappers
# --------------------------------------------------------------------------
def attention_layer(x, p, *, num_heads, eps=1e-6, q_tile=128):
    """One fused AttentionLayer (attention block + output block)."""
    B, S, din = x.shape
    dmodel = p["wp"].shape[0]
    dff = p["w1"].shape[1]
    assert p["wqkv"].shape == (din, 3 * dmodel)
    assert din == dmodel, "residual add in AttentionIn requires input dim == dmodel"
    assert dmodel % num_heads == 0

    tq = S if q_tile is None else min(q_tile, S)
    assert S % tq == 0 and (tq == S or tq % 8 == 0), "bad query tile size"
    nq = S // tq

    weights = (p["wqkv"], p["bqkv"], p["wp"], p["bp"], p["ln1_g"], p["ln1_b"],
               p["w1"], p["b1"], p["w2"], p["b2"], p["ln2_g"], p["ln2_b"])
    cdt = p["wqkv"].dtype

    # Constant operands (block index never changes) -> single-buffered.
    weight_specs = [
        pl.BlockSpec(w.shape, lambda b, q: (0, 0), pipeline_mode=pl.Buffered(1))
        for w in weights
    ]

    # Persistent K/V scratch only when the query axis is actually tiled.
    scratch_shapes = []
    if nq > 1:
        scratch_shapes.append(pltpu.VMEM((S, 2 * dmodel), cdt))

    # Advisory cost estimate so XLA can overlap this layer's weight DMA with
    # the previous layer's compute.
    w_bytes = sum(int(np.prod(w.shape)) * w.dtype.itemsize for w in weights)
    act_itemsize = jnp.dtype(x.dtype).itemsize
    flops = 2 * B * S * (3 * din * dmodel          # fused QKV projection
                         + 2 * S * dmodel          # QK^T and P.V einsums
                         + dmodel * dmodel         # output projection
                         + 2 * dmodel * dff)       # MLP
    cost = pl.CostEstimate(
        flops=flops,
        transcendentals=B * num_heads * S * S,     # softmax exp
        bytes_accessed=w_bytes + 2 * B * S * dmodel * act_itemsize)

    kernel = functools.partial(_layer_kernel, num_heads=num_heads, eps=eps, tq=tq)
    return pl.pallas_call(
        kernel,
        out_shape=jax.ShapeDtypeStruct((B, S, dmodel), x.dtype),
        grid=(B, nq),
        in_specs=[pl.BlockSpec((1, S, din), lambda b, q: (b, 0, 0))] + weight_specs,
        out_specs=pl.BlockSpec((1, tq, dmodel), lambda b, q: (b, q, 0)),
        scratch_shapes=scratch_shapes,
        compiler_params=pltpu.CompilerParams(
            # batch axis parallel (megacore / v7x), query axis arbitrary so the
            # persistent K/V scratch is valid across q steps on one core.
            dimension_semantics=("parallel", "arbitrary"),
            vmem_limit_bytes=48 * 1024 * 1024),
        cost_estimate=cost,
    )(x, *weights)


def attention_encoder_forward(hidden_states, layer_params, *, num_heads,
                              q_tile=128, act_dtype=jnp.bfloat16):
    """Mirrors AttentionEncoder.forward with default flags.

    Activations are carried in bf16 between layers (halves HBM traffic); all
    softmax / LayerNorm math stays in f32 inside the kernels.
    Returns [last_hidden_state, None, None] like the PyTorch module with
    output_hidden_states=False, output_attentions=False, return_dict=False.
    """
    h = hidden_states.astype(act_dtype)
    for p in layer_params:
        h = attention_layer(h, p, num_heads=num_heads, q_tile=q_tile)
    return [h, None, None]


# TODO(synk): self.mha (nn.MultiheadAttention) and self.intermediate
# (AttentionIntermediate) are constructed in the PyTorch __init__ but never
# used in forward, so they are intentionally omitted here.
# TODO(synk): save_attn / attention-gradient hooks and the relprop (LRP)
# machinery are training-time introspection with no forward-pass Pallas
# equivalent; attention probabilities are not returned (output_attentions=False).


# --------------------------------------------------------------------------
# Deterministic parameter init (PyTorch Linear-style uniform bounds)
# --------------------------------------------------------------------------
def init_layer_params(key, din, dmodel, dff, param_dtype=jnp.bfloat16):
    keys = jax.random.split(key, 12)

    def lin(kw, kb, fan_in, fan_out):
        bound = 1.0 / math.sqrt(fan_in)
        w = jax.random.uniform(kw, (fan_in, fan_out), jnp.float32, -bound, bound)
        b = jax.random.uniform(kb, (1, fan_out), jnp.float32, -bound, bound)
        return w, b

    wq, bq = lin(keys[0], keys[1], din, dmodel)
    wk, bk = lin(keys[2], keys[3], din, dmodel)
    wv, bv = lin(keys[4], keys[5], din, dmodel)
    wp, bp = lin(keys[6], keys[7], dmodel, dmodel)
    w1, b1 = lin(keys[8], keys[9], dmodel, dff)
    w2, b2 = lin(keys[10], keys[11], dff, dmodel)

    return dict(
        wqkv=jnp.concatenate([wq, wk, wv], axis=1).astype(param_dtype),
        bqkv=jnp.concatenate([bq, bk, bv], axis=1),           # f32
        wp=wp.astype(param_dtype), bp=bp,
        ln1_g=jnp.ones((1, dmodel), jnp.float32),
        ln1_b=jnp.zeros((1, dmodel), jnp.float32),
        w1=w1.astype(param_dtype), b1=b1,
        w2=w2.astype(param_dtype), b2=b2,
        ln2_g=jnp.ones((1, dmodel), jnp.float32),
        ln2_b=jnp.zeros((1, dmodel), jnp.float32),
    )


# --------------------------------------------------------------------------
# Pure-JAX f32 reference (for correctness check)
# --------------------------------------------------------------------------
def ref_forward(x, layer_params, *, num_heads, eps=1e-6):
    def layernorm(z, g, b):
        mean = jnp.mean(z, -1, keepdims=True)
        var = jnp.mean((z - mean) ** 2, -1, keepdims=True)
        return (z - mean) / jnp.sqrt(var + eps) * g + b

    h = x
    for p in layer_params:
        B, S, _ = h.shape
        D = p["wp"].shape[0]
        dh = D // num_heads
        wqkv = p["wqkv"].astype(jnp.float32)
        qkv = h @ wqkv + p["bqkv"]
        q = qkv[..., :D].reshape(B, S, num_heads, dh)
        k = qkv[..., D:2 * D].reshape(B, S, num_heads, dh)
        v = qkv[..., 2 * D:].reshape(B, S, num_heads, dh)
        s = jnp.einsum("bqhd,bkhd->bhqk", q, k) / math.sqrt(dh)
        pr = jax.nn.softmax(s, axis=-1)
        ctx = jnp.einsum("bhqk,bkhd->bqhd", pr, v).reshape(B, S, D)
        ctx = ctx @ p["wp"].astype(jnp.float32) + p["bp"]
        h1 = layernorm(ctx + h, p["ln1_g"], p["ln1_b"])
        m = jnp.maximum(h1 @ p["w1"].astype(jnp.float32) + p["b1"], 0.0)
        m = m @ p["w2"].astype(jnp.float32) + p["b2"]
        h = layernorm(m + h1, p["ln2_g"], p["ln2_b"])
    return h


# --------------------------------------------------------------------------
if __name__ == "__main__":
    # Small, lane-dense config (D multiple of 128, S multiple of 8),
    # consistent with the module: inputsize == dmodel (required by the
    # residual add inside AttentionIn).
    num_hidden_layers = 2
    B, S = 2, 32
    inputsize = dmodel = 128
    dff = 256
    num_heads = 4

    root = jax.random.PRNGKey(0)
    kx, kp = jax.random.split(root)
    x = jax.random.normal(kx, (B, S, inputsize), jnp.float32)

    layer_keys = jax.random.split(kp, num_hidden_layers)
    layer_params = [
        init_layer_params(layer_keys[i],
                          inputsize if i == 0 else dmodel, dmodel, dff)
        for i in range(num_hidden_layers)
    ]

    ref = ref_forward(x, layer_params, num_heads=num_heads)

    # Kernel runs matmuls in bf16 (f32 accumulation), carries bf16 activations
    # between layers, and uses the approx EUP reciprocal for the softmax
    # denominator -> tolerance vs. the pure-f32 reference is loosened.
    RTOL = ATOL = 7e-2

    # Path 1: single query tile (tq == S) -> fully fused wide QKV matmul.
    out_full, _, _ = attention_encoder_forward(x, layer_params,
                                               num_heads=num_heads)
    out_full = jax.block_until_ready(out_full)
    np.testing.assert_allclose(np.asarray(out_full.astype(jnp.float32)),
                               np.asarray(ref), rtol=RTOL, atol=ATOL)

    # Path 2: query-tiled path (q_tile=8 -> nq=4) exercising the hoisted
    # K/V projection (computed once per batch row, reused for all q tiles).
    out_tiled, _, _ = attention_encoder_forward(x, layer_params,
                                                num_heads=num_heads, q_tile=8)
    out_tiled = jax.block_until_ready(out_tiled)
    np.testing.assert_allclose(np.asarray(out_tiled.astype(jnp.float32)),
                               np.asarray(ref), rtol=RTOL, atol=ATOL)

    print("KERNEL_OK")
</pallas_src>

<mosaic_0001>
module attributes {stable_mosaic.version = 11 : i64} {
  func.func @_layer_kernel(%arg0: i32, %arg1: i32, %arg2: memref<1x32x128xbf16, #tpu.memory_space<vmem>>, %arg3: memref<128x384xbf16, #tpu.memory_space<vmem>>, %arg4: memref<1x384xf32, #tpu.memory_space<vmem>>, %arg5: memref<128x128xbf16, #tpu.memory_space<vmem>>, %arg6: memref<1x128xf32, #tpu.memory_space<vmem>>, %arg7: memref<1x128xf32, #tpu.memory_space<vmem>>, %arg8: memref<1x128xf32, #tpu.memory_space<vmem>>, %arg9: memref<128x256xbf16, #tpu.memory_space<vmem>>, %arg10: memref<1x256xf32, #tpu.memory_space<vmem>>, %arg11: memref<256x128xbf16, #tpu.memory_space<vmem>>, %arg12: memref<1x128xf32, #tpu.memory_space<vmem>>, %arg13: memref<1x128xf32, #tpu.memory_space<vmem>>, %arg14: memref<1x128xf32, #tpu.memory_space<vmem>>, %arg15: memref<1x32x128xbf16, #tpu.memory_space<vmem>>) attributes {dimension_semantics = [#tpu.dimension_semantics<parallel>, #tpu.dimension_semantics<arbitrary>], iteration_bounds = array<i64: 2, 1>, scalar_prefetch = 0 : i64, scratch_operands = 0 : i64, tpu.core_type = #tpu.core_type<tc>, window_params = [{transform_indices = @transform_0, window_bounds = array<i64: 1, 32, 128>}, {pipeline_mode = #tpu.pipeline_mode<synchronous>, transform_indices = @transform_1, window_bounds = array<i64: 128, 384>}, {pipeline_mode = #tpu.pipeline_mode<synchronous>, transform_indices = @transform_2, window_bounds = array<i64: 1, 384>}, {pipeline_mode = #tpu.pipeline_mode<synchronous>, transform_indices = @transform_3, window_bounds = array<i64: 128, 128>}, {pipeline_mode = #tpu.pipeline_mode<synchronous>, transform_indices = @transform_4, window_bounds = array<i64: 1, 128>}, {pipeline_mode = #tpu.pipeline_mode<synchronous>, transform_indices = @transform_5, window_bounds = array<i64: 1, 128>}, {pipeline_mode = #tpu.pipeline_mode<synchronous>, transform_indices = @transform_6, window_bounds = array<i64: 1, 128>}, {pipeline_mode = #tpu.pipeline_mode<synchronous>, transform_indices = @transform_7, window_bounds = array<i64: 128, 256>}, {pipeline_mode = #tpu.pipeline_mode<synchronous>, transform_indices = @transform_8, window_bounds = array<i64: 1, 256>}, {pipeline_mode = #tpu.pipeline_mode<synchronous>, transform_indices = @transform_9, window_bounds = array<i64: 256, 128>}, {pipeline_mode = #tpu.pipeline_mode<synchronous>, transform_indices = @transform_10, window_bounds = array<i64: 1, 128>}, {pipeline_mode = #tpu.pipeline_mode<synchronous>, transform_indices = @transform_11, window_bounds = array<i64: 1, 128>}, {pipeline_mode = #tpu.pipeline_mode<synchronous>, transform_indices = @transform_12, window_bounds = array<i64: 1, 128>}, {transform_indices = @transform_13, window_bounds = array<i64: 1, 32, 128>}]} {
    %c0 = arith.constant 0 : index
    %c0_0 = arith.constant 0 : index
    %c0_1 = arith.constant 0 : index
    %0 = vector.load %arg2[%c0, %c0_0, %c0_1] : memref<1x32x128xbf16, #tpu.memory_space<vmem>>, vector<1x32x128xbf16>
    %1 = vector.shape_cast %0 : vector<1x32x128xbf16> to vector<32x128xbf16>
    %c0_2 = arith.constant 0 : index
    %c0_3 = arith.constant 0 : index
    %2 = vector.load %arg3[%c0_2, %c0_3] : memref<128x384xbf16, #tpu.memory_space<vmem>>, vector<128x384xbf16>
    %cst = arith.constant dense<0.000000e+00> : vector<32x384xf32>
    %3 = tpu.matmul %1, %2, %cst {dimension_numbers = #tpu.dot_dimension_numbers<[1], [0], [0], [1], [0, 0, 1, 1], [], []>} : vector<32x128xbf16>, vector<128x384xbf16>, vector<32x384xf32> -> vector<32x384xf32>
    %c0_4 = arith.constant 0 : index
    %c0_5 = arith.constant 0 : index
    %4 = vector.load %arg4[%c0_4, %c0_5] : memref<1x384xf32, #tpu.memory_space<vmem>>, vector<1x384xf32>
    %5 = vector.broadcast %4 : vector<1x384xf32> to vector<32x384xf32>
    %6 = arith.addf %3, %5 : vector<32x384xf32>
    %7 = vector.extract_strided_slice %6 {offsets = [0, 0], sizes = [32, 128], strides = [1, 1]} : vector<32x384xf32> to vector<32x128xf32>
    %cst_6 = arith.constant 0.176776692 : f32
    %8 = vector.broadcast %cst_6 : f32 to vector<32x128xf32>
    %9 = arith.mulf %7, %8 : vector<32x128xf32>
    %10 = vector.extract_strided_slice %6 {offsets = [0, 128], sizes = [32, 128], strides = [1, 1]} : vector<32x384xf32> to vector<32x128xf32>
    %11 = arith.truncf %10 : vector<32x128xf32> to vector<32x128xbf16>
    %12 = vector.extract_strided_slice %6 {offsets = [0, 256], sizes = [32, 128], strides = [1, 1]} : vector<32x384xf32> to vector<32x128xf32>
    %13 = arith.truncf %12 : vector<32x128xf32> to vector<32x128xbf16>
    %c0_7 = arith.constant 0 : index
    %c0_8 = arith.constant 0 : index
    %c0_9 = arith.constant 0 : index
    %14 = vector.load %arg2[%c0_7, %c0_8, %c0_9] : memref<1x32x128xbf16, #tpu.memory_space<vmem>>, vector<1x32x128xbf16>
    %15 = vector.shape_cast %14 : vector<1x32x128xbf16> to vector<32x128xbf16>
    %16 = arith.extf %15 : vector<32x128xbf16> to vector<32x128xf32>
    %17 = vector.shape_cast %9 : vector<32x128xf32> to vector<32x4x32xf32>
    %18 = arith.truncf %17 : vector<32x4x32xf32> to vector<32x4x32xbf16>
    %19 = vector.shape_cast %11 : vector<32x128xbf16> to vector<32x4x32xbf16>
    %20 = vector.shape_cast %13 : vector<32x128xbf16> to vector<32x4x32xbf16>
    "tpu.trace_start"() <{level = 10 : i32, message = "qhd,khd->hqk"}> : () -> ()
    %cst_10 = arith.constant dense<0.000000e+00> : vector<4x32x32xf32>
    %21 = tpu.matmul %18, %19, %cst_10 {dimension_numbers = #tpu.dot_dimension_numbers<[2], [2], [0], [0], [0, 1, 0, 0, 1, 0], [1], [1]>} : vector<32x4x32xbf16>, vector<32x4x32xbf16>, vector<4x32x32xf32> -> vector<4x32x32xf32>
    "tpu.trace_stop"() : () -> ()
    %cst_11 = arith.constant dense<0xFF800000> : vector<4x32xf32>
    %22 = vector.multi_reduction <maximumf>, %21, %cst_11 [2] : vector<4x32x32xf32> to vector<4x32xf32>
    %23 = vector.shape_cast %22 : vector<4x32xf32> to vector<4x32x1xf32>
    %24 = vector.broadcast %23 : vector<4x32x1xf32> to vector<4x32x32xf32>
    %25 = arith.subf %21, %24 : vector<4x32x32xf32>
    %26 = math.exp %25 : vector<4x32x32xf32>
    %cst_12 = arith.constant dense<0.000000e+00> : vector<4x32xf32>
    %27 = vector.multi_reduction <add>, %26, %cst_12 [2] : vector<4x32x32xf32> to vector<4x32xf32>
    %28 = vector.shape_cast %27 : vector<4x32xf32> to vector<4x32x1xf32>
    %29 = tpu.reciprocal %28 {approx = true} : vector<4x32x1xf32> -> vector<4x32x1xf32>
    %30 = vector.broadcast %29 : vector<4x32x1xf32> to vector<4x32x32xf32>
    %31 = arith.mulf %26, %30 : vector<4x32x32xf32>
    %32 = arith.truncf %31 : vector<4x32x32xf32> to vector<4x32x32xbf16>
    "tpu.trace_start"() <{level = 10 : i32, message = "hqk,khd->qhd"}> : () -> ()
    %cst_13 = arith.constant dense<0.000000e+00> : vector<4x32x32xf32>
    %33 = tpu.matmul %20, %32, %cst_13 {dimension_numbers = #tpu.dot_dimension_numbers<[0], [2], [2], [1], [0, 1, 0, 2, 1, 1], [1], [0]>} : vector<32x4x32xbf16>, vector<4x32x32xbf16>, vector<4x32x32xf32> -> vector<4x32x32xf32>
    %34 = tpu.transpose %33, [2, 0, 1] : vector<4x32x32xf32> -> vector<32x4x32xf32>
    "tpu.trace_stop"() : () -> ()
    %35 = vector.shape_cast %34 : vector<32x4x32xf32> to vector<32x128xf32>
    %36 = arith.truncf %35 : vector<32x128xf32> to vector<32x128xbf16>
    %c0_14 = arith.constant 0 : index
    %c0_15 = arith.constant 0 : index
    %37 = vector.load %arg5[%c0_14, %c0_15] : memref<128x128xbf16, #tpu.memory_space<vmem>>, vector<128x128xbf16>
    %cst_16 = arith.constant dense<0.000000e+00> : vector<32x128xf32>
    %38 = tpu.matmul %36, %37, %cst_16 {dimension_numbers = #tpu.dot_dimension_numbers<[1], [0], [0], [1], [0, 0, 1, 1], [], []>} : vector<32x128xbf16>, vector<128x128xbf16>, vector<32x128xf32> -> vector<32x128xf32>
    %c0_17 = arith.constant 0 : index
    %c0_18 = arith.constant 0 : index
    %39 = vector.load %arg6[%c0_17, %c0_18] : memref<1x128xf32, #tpu.memory_space<vmem>>, vector<1x128xf32>
    %40 = vector.broadcast %39 : vector<1x128xf32> to vector<32x128xf32>
    %41 = arith.addf %38, %40 : vector<32x128xf32>
    %42 = arith.addf %41, %16 : vector<32x128xf32>
    %cst_19 = arith.constant dense<0.000000e+00> : vector<32xf32>
    %43 = vector.multi_reduction <add>, %42, %cst_19 [1] : vector<32x128xf32> to vector<32xf32>
    %44 = vector.shape_cast %43 : vector<32xf32> to vector<32x1xf32>
    %cst_20 = arith.constant 1.280000e+02 : f32
    %45 = vector.broadcast %cst_20 : f32 to vector<32x1xf32>
    %46 = arith.divf %44, %45 : vector<32x1xf32>
    %47 = vector.broadcast %46 : vector<32x1xf32> to vector<32x128xf32>
    %48 = arith.subf %42, %47 : vector<32x128xf32>
    %49 = arith.mulf %48, %48 : vector<32x128xf32>
    %cst_21 = arith.constant dense<0.000000e+00> : vector<32xf32>
    %50 = vector.multi_reduction <add>, %49, %cst_21 [1] : vector<32x128xf32> to vector<32xf32>
    %51 = vector.shape_cast %50 : vector<32xf32> to vector<32x1xf32>
    %cst_22 = arith.constant 1.280000e+02 : f32
    %52 = vector.broadcast %cst_22 : f32 to vector<32x1xf32>
    %53 = arith.divf %51, %52 : vector<32x1xf32>
    %54 = vector.broadcast %46 : vector<32x1xf32> to vector<32x128xf32>
    %55 = arith.subf %42, %54 : vector<32x128xf32>
    %cst_23 = arith.constant 9.99999997E-7 : f32
    %56 = vector.broadcast %cst_23 : f32 to vector<32x1xf32>
    %57 = arith.addf %53, %56 : vector<32x1xf32>
    %58 = math.rsqrt %57 : vector<32x1xf32>
    %59 = vector.broadcast %58 : vector<32x1xf32> to vector<32x128xf32>
    %60 = arith.mulf %55, %59 : vector<32x128xf32>
    %c0_24 = arith.constant 0 : index
    %c0_25 = arith.constant 0 : index
    %61 = vector.load %arg7[%c0_24, %c0_25] : memref<1x128xf32, #tpu.memory_space<vmem>>, vector<1x128xf32>
    %62 = vector.broadcast %61 : vector<1x128xf32> to vector<32x128xf32>
    %63 = arith.mulf %60, %62 : vector<32x128xf32>
    %c0_26 = arith.constant 0 : index
    %c0_27 = arith.constant 0 : index
    %64 = vector.load %arg8[%c0_26, %c0_27] : memref<1x128xf32, #tpu.memory_space<vmem>>, vector<1x128xf32>
    %65 = vector.broadcast %64 : vector<1x128xf32> to vector<32x128xf32>
    %66 = arith.addf %63, %65 : vector<32x128xf32>
    %67 = arith.truncf %66 : vector<32x128xf32> to vector<32x128xbf16>
    %c0_28 = arith.constant 0 : index
    %c0_29 = arith.constant 0 : index
    %68 = vector.load %arg9[%c0_28, %c0_29] : memref<128x256xbf16, #tpu.memory_space<vmem>>, vector<128x256xbf16>
    %cst_30 = arith.constant dense<0.000000e+00> : vector<32x256xf32>
    %69 = tpu.matmul %67, %68, %cst_30 {dimension_numbers = #tpu.dot_dimension_numbers<[1], [0], [0], [1], [0, 0, 1, 1], [], []>} : vector<32x128xbf16>, vector<128x256xbf16>, vector<32x256xf32> -> vector<32x256xf32>
    %c0_31 = arith.constant 0 : index
    %c0_32 = arith.constant 0 : index
    %70 = vector.load %arg10[%c0_31, %c0_32] : memref<1x256xf32, #tpu.memory_space<vmem>>, vector<1x256xf32>
    %71 = vector.broadcast %70 : vector<1x256xf32> to vector<32x256xf32>
    %72 = arith.addf %69, %71 : vector<32x256xf32>
    %cst_33 = arith.constant 0.000000e+00 : f32
    %73 = vector.broadcast %cst_33 : f32 to vector<32x256xf32>
    %74 = arith.maximumf %72, %73 : vector<32x256xf32>
    %75 = arith.truncf %74 : vector<32x256xf32> to vector<32x256xbf16>
    %c0_34 = arith.constant 0 : index
    %c0_35 = arith.constant 0 : index
    %76 = vector.load %arg11[%c0_34, %c0_35] : memref<256x128xbf16, #tpu.memory_space<vmem>>, vector<256x128xbf16>
    %cst_36 = arith.constant dense<0.000000e+00> : vector<32x128xf32>
    %77 = tpu.matmul %75, %76, %cst_36 {dimension_numbers = #tpu.dot_dimension_numbers<[1], [0], [0], [1], [0, 0, 1, 1], [], []>} : vector<32x256xbf16>, vector<256x128xbf16>, vector<32x128xf32> -> vector<32x128xf32>
    %c0_37 = arith.constant 0 : index
    %c0_38 = arith.constant 0 : index
    %78 = vector.load %arg12[%c0_37, %c0_38] : memref<1x128xf32, #tpu.memory_space<vmem>>, vector<1x128xf32>
    %79 = vector.broadcast %78 : vector<1x128xf32> to vector<32x128xf32>
    %80 = arith.addf %77, %79 : vector<32x128xf32>
    %81 = arith.addf %80, %66 : vector<32x128xf32>
    %cst_39 = arith.constant dense<0.000000e+00> : vector<32xf32>
    %82 = vector.multi_reduction <add>, %81, %cst_39 [1] : vector<32x128xf32> to vector<32xf32>
    %83 = vector.shape_cast %82 : vector<32xf32> to vector<32x1xf32>
    %cst_40 = arith.constant 1.280000e+02 : f32
    %84 = vector.broadcast %cst_40 : f32 to vector<32x1xf32>
    %85 = arith.divf %83, %84 : vector<32x1xf32>
    %86 = vector.broadcast %85 : vector<32x1xf32> to vector<32x128xf32>
    %87 = arith.subf %81, %86 : vector<32x128xf32>
    %88 = arith.mulf %87, %87 : vector<32x128xf32>
    %cst_41 = arith.constant dense<0.000000e+00> : vector<32xf32>
    %89 = vector.multi_reduction <add>, %88, %cst_41 [1] : vector<32x128xf32> to vector<32xf32>
    %90 = vector.shape_cast %89 : vector<32xf32> to vector<32x1xf32>
    %cst_42 = arith.constant 1.280000e+02 : f32
    %91 = vector.broadcast %cst_42 : f32 to vector<32x1xf32>
    %92 = arith.divf %90, %91 : vector<32x1xf32>
    %93 = vector.broadcast %85 : vector<32x1xf32> to vector<32x128xf32>
    %94 = arith.subf %81, %93 : vector<32x128xf32>
    %cst_43 = arith.constant 9.99999997E-7 : f32
    %95 = vector.broadcast %cst_43 : f32 to vector<32x1xf32>
    %96 = arith.addf %92, %95 : vector<32x1xf32>
    %97 = math.rsqrt %96 : vector<32x1xf32>
    %98 = vector.broadcast %97 : vector<32x1xf32> to vector<32x128xf32>
    %99 = arith.mulf %94, %98 : vector<32x128xf32>
    %c0_44 = arith.constant 0 : index
    %c0_45 = arith.constant 0 : index
    %100 = vector.load %arg13[%c0_44, %c0_45] : memref<1x128xf32, #tpu.memory_space<vmem>>, vector<1x128xf32>
    %101 = vector.broadcast %100 : vector<1x128xf32> to vector<32x128xf32>
    %102 = arith.mulf %99, %101 : vector<32x128xf32>
    %c0_46 = arith.constant 0 : index
    %c0_47 = arith.constant 0 : index
    %103 = vector.load %arg14[%c0_46, %c0_47] : memref<1x128xf32, #tpu.memory_space<vmem>>, vector<1x128xf32>
    %104 = vector.broadcast %103 : vector<1x128xf32> to vector<32x128xf32>
    %105 = arith.addf %102, %104 : vector<32x128xf32>
    %106 = arith.truncf %105 : vector<32x128xf32> to vector<32x128xbf16>
    %c0_48 = arith.constant 0 : index
    %c0_49 = arith.constant 0 : index
    %c0_50 = arith.constant 0 : index
    %107 = vector.load %arg15[%c0_48, %c0_49, %c0_50] : memref<1x32x128xbf16, #tpu.memory_space<vmem>>, vector<1x32x128xbf16>
    %108 = vector.shape_cast %107 : vector<1x32x128xbf16> to vector<32x128xbf16>
    %109 = vector.shape_cast %106 : vector<32x128xbf16> to vector<1x32x128xbf16>
    tpu.vector_store %arg15[%c0_48, %c0_49, %c0_50], %109 {strides = array<i32>} : memref<1x32x128xbf16, #tpu.memory_space<vmem>>, vector<1x32x128xbf16>,
    return
  }
  func.func @transform_0(%arg0: i32, %arg1: i32) -> (i32, i32, i32) {
    %c0_i32 = arith.constant 0 : i32
    %c0_i32_0 = arith.constant 0 : i32
    %c0_i32_1 = arith.constant 0 : i32
    return %arg0, %c0_i32, %c0_i32_0 : i32, i32, i32
  }
  func.func @transform_1(%arg0: i32, %arg1: i32) -> (i32, i32) {
    %c0_i32 = arith.constant 0 : i32
    %c0_i32_0 = arith.constant 0 : i32
    %c0_i32_1 = arith.constant 0 : i32
    return %c0_i32, %c0_i32_0 : i32, i32
  }
  func.func @transform_2(%arg0: i32, %arg1: i32) -> (i32, i32) {
    %c0_i32 = arith.constant 0 : i32
    %c0_i32_0 = arith.constant 0 : i32
    %c0_i32_1 = arith.constant 0 : i32
    return %c0_i32, %c0_i32_0 : i32, i32
  }
  func.func @transform_3(%arg0: i32, %arg1: i32) -> (i32, i32) {
    %c0_i32 = arith.constant 0 : i32
    %c0_i32_0 = arith.constant 0 : i32
    %c0_i32_1 = arith.constant 0 : i32
    return %c0_i32, %c0_i32_0 : i32, i32
  }
  func.func @transform_4(%arg0: i32, %arg1: i32) -> (i32, i32) {
    %c0_i32 = arith.constant 0 : i32
    %c0_i32_0 = arith.constant 0 : i32
    %c0_i32_1 = arith.constant 0 : i32
    return %c0_i32, %c0_i32_0 : i32, i32
  }
  func.func @transform_5(%arg0: i32, %arg1: i32) -> (i32, i32) {
    %c0_i32 = arith.constant 0 : i32
    %c0_i32_0 = arith.constant 0 : i32
    %c0_i32_1 = arith.constant 0 : i32
    return %c0_i32, %c0_i32_0 : i32, i32
  }
  func.func @transform_6(%arg0: i32, %arg1: i32) -> (i32, i32) {
    %c0_i32 = arith.constant 0 : i32
    %c0_i32_0 = arith.constant 0 : i32
    %c0_i32_1 = arith.constant 0 : i32
    return %c0_i32, %c0_i32_0 : i32, i32
  }
  func.func @transform_7(%arg0: i32, %arg1: i32) -> (i32, i32) {
    %c0_i32 = arith.constant 0 : i32
    %c0_i32_0 = arith.constant 0 : i32
    %c0_i32_1 = arith.constant 0 : i32
    return %c0_i32, %c0_i32_0 : i32, i32
  }
  func.func @transform_8(%arg0: i32, %arg1: i32) -> (i32, i32) {
    %c0_i32 = arith.constant 0 : i32
    %c0_i32_0 = arith.constant 0 : i32
    %c0_i32_1 = arith.constant 0 : i32
    return %c0_i32, %c0_i32_0 : i32, i32
  }
  func.func @transform_9(%arg0: i32, %arg1: i32) -> (i32, i32) {
    %c0_i32 = arith.constant 0 : i32
    %c0_i32_0 = arith.constant 0 : i32
    %c0_i32_1 = arith.constant 0 : i32
    return %c0_i32, %c0_i32_0 : i32, i32
  }
  func.func @transform_10(%arg0: i32, %arg1: i32) -> (i32, i32) {
    %c0_i32 = arith.constant 0 : i32
    %c0_i32_0 = arith.constant 0 : i32
    %c0_i32_1 = arith.constant 0 : i32
    return %c0_i32, %c0_i32_0 : i32, i32
  }
  func.func @transform_11(%arg0: i32, %arg1: i32) -> (i32, i32) {
    %c0_i32 = arith.constant 0 : i32
    %c0_i32_0 = arith.constant 0 : i32
    %c0_i32_1 = arith.constant 0 : i32
    return %c0_i32, %c0_i32_0 : i32, i32
  }
  func.func @transform_12(%arg0: i32, %arg1: i32) -> (i32, i32) {
    %c0_i32 = arith.constant 0 : i32
    %c0_i32_0 = arith.constant 0 : i32
    %c0_i32_1 = arith.constant 0 : i32
    return %c0_i32, %c0_i32_0 : i32, i32
  }
  func.func @transform_13(%arg0: i32, %arg1: i32) -> (i32, i32, i32) {
    %c0_i32 = arith.constant 0 : i32
    %c0_i32_0 = arith.constant 0 : i32
    return %arg0, %arg1, %c0_i32 : i32, i32, i32
  }
}

</mosaic_0001>

<llo_original>
// kernel: tpu_custom_call.1
$region0: #{tpu_custom_call.1}
  #allocation0 [shape = 'u32[]', space=smem, size = 0x4, offset = 0x4, fixed_abs, tag = 'smem constant byte address 0x4 - core index']
  #allocation1 [shape = 'u32[72,128]{1,0:T(1,128)}', space=vmem, size = 0x9000, scoped, tag = 'internal scratch']
  %s0 = inlined_call_operand.hbm [shape: bf16[2,32,128], index: 0, kind: input, shape index: {}]
  %s1 = inlined_call_operand.hbm [shape: bf16[128,384], index: 1, kind: input, shape index: {}]
  %s2 = inlined_call_operand.hbm [shape: f32[1,384], index: 2, kind: input, shape index: {}]
  %s3 = inlined_call_operand.hbm [shape: bf16[128,128], index: 3, kind: input, shape index: {}]
  %s4 = inlined_call_operand.vmem [shape: f32[1,128], index: 4, kind: input, shape index: {}]
  %s5 = inlined_call_operand.vmem [shape: f32[1,128], index: 5, kind: input, shape index: {}]
  %s6 = inlined_call_operand.vmem [shape: f32[1,128], index: 6, kind: input, shape index: {}]
  %s7 = inlined_call_operand.hbm [shape: bf16[128,256], index: 7, kind: input, shape index: {}]
  %s8 = inlined_call_operand.vmem [shape: f32[1,256], index: 8, kind: input, shape index: {}]
  %s9 = inlined_call_operand.hbm [shape: bf16[256,128], index: 9, kind: input, shape index: {}]
  %s10 = inlined_call_operand.vmem [shape: f32[1,128], index: 10, kind: input, shape index: {}]
  %s11 = inlined_call_operand.vmem [shape: f32[1,128], index: 11, kind: input, shape index: {}]
  %s12 = inlined_call_operand.vmem [shape: f32[1,128], index: 12, kind: input, shape index: {}]
  %s13 = inlined_call_operand.hbm [shape: bf16[2,32,128], index: 13, kind: output, shape index: {}]
  %s14 = sld [smem:[#allocation0]]
  $region109: #{tpu_custom_call.1} parent=0
    _
  %s16 = ssub.s32 1, %s14
  %s17 = scalar_select 0, %s16, %s14
  $region1: #{tpu_custom_call.1} parent=0
    #allocation2 [shape = 'u8[16384]{0}', space=vmem, size = 0x4000, scoped, tag = 'input window, operand 0']
    #allocation3 [shape = 's32[2]{0}', space=sflag, size = 0x8, scoped, tag = 'scoped memory for tpu_custom_call.1']
    #allocation4 [shape = 's32[2]{0}', space=sflag, size = 0x8, scoped, tag = 'scoped memory for tpu_custom_call.1']
    #allocation5 [shape = 'u8[98304]{0}', space=vmem, size = 0x18000, scoped, tag = 'input window, operand 1, single buffered']
    #allocation6 [shape = 's32[1]{0}', space=sflag, size = 0x4, scoped, tag = 'scoped memory for tpu_custom_call.1']
    #allocation7 [shape = 'u8[1536]{0}', space=vmem, size = 0x800, scoped, tag = 'input window, operand 2, single buffered']
    #allocation8 [shape = 'u8[32768]{0}', space=vmem, size = 0x8000, scoped, tag = 'input window, operand 3, single buffered']
    #allocation9 [shape = 's32[1]{0}', space=sflag, size = 0x4, scoped, tag = 'scoped memory for tpu_custom_call.1']
    #allocation10 [shape = 'u8[65536]{0}', space=vmem, size = 0x10000, scoped, tag = 'input window, operand 7, single buffered']
    #allocation11 [shape = 'u8[65536]{0}', space=vmem, size = 0x10000, scoped, tag = 'input window, operand 9, single buffered']
    #allocation12 [shape = 's32[1]{0}', space=sflag, size = 0x4, scoped, tag = 'scoped memory for tpu_custom_call.1']
    #allocation13 [shape = 'u8[16384]{0}', space=vmem, size = 0x4000, scoped, tag = 'output window, operand 0']
    %18 = vsyncpa [#allocation3], 0
    %s19 = scalar_lea.sflag [#allocation3], 1
    %20 = vsyncpa %s19, 0
    %21 = vsyncpa [#allocation6], 0
    %22 = vsyncpa [#allocation9], 0
    %23 = vsyncpa [#allocation12], 0
    %24 = vsyncpa [#allocation4], 0
    %s25 = scalar_lea.sflag [#allocation4], 1
    %26 = vsyncpa %s25, 0
    loop: start=0, step=1, limit=4
    $region2: #{tpu_custom_call.1} parent=1 // loop_pre_header
      _
    $region3: #{tpu_custom_call.1} parent=1 // loop_header
      %s28 = sphi 0, %s32
      %p29 = scmp.ge.s32.totalorder %s28, 4
      %s35 = sphi 0, %s47
      %s36 = sphi 0, %s43
      %s37 = sphi 0, %s35
      %s38 = sphi 0, %s36
      %s39 = sphi 0, %s37
      %s40 = sphi 0, %s38
      %s50 = sphi 0, %s52
      %s53 = sphi 0, %s50
      %s54 = sphi 0, %s53
      %s70 = sphi 0, %s54
      %s74 = sphi 0, %s74
      %s76 = sphi 0, %s74
      %s77 = sphi 0, %s76
      %s91 = sphi 0, %s77
      %s95 = sphi 0, %s95
      %s97 = sphi 0, %s95
      %s98 = sphi 0, %s97
      %s112 = sphi 0, %s98
      %s116 = sphi 0, %s116
      %s118 = sphi 0, %s116
      %s119 = sphi 0, %s118
      %s133 = sphi 0, %s119
      %s137 = sphi 0, %s137
      %s139 = sphi 0, %s137
      %s140 = sphi 0, %s139
      %s154 = sphi 0, %s140
      %s158 = sphi 0, %s158
      %s160 = sphi 0, %s158
      %s161 = sphi 0, %s160
      %s175 = sphi 0, %s161
      %s179 = sphi 0, %s179
      %s181 = sphi 0, %s179
      %s182 = sphi 0, %s181
      %s196 = sphi 0, %s182
      %s200 = sphi 0, %s200
      %s202 = sphi 0, %s200
      %s203 = sphi 0, %s202
      %s217 = sphi 0, %s203
      %s221 = sphi 0, %s221
      %s223 = sphi 0, %s221
      %s224 = sphi 0, %s223
      %s238 = sphi 0, %s224
      %s242 = sphi 0, %s242
      %s244 = sphi 0, %s242
      %s245 = sphi 0, %s244
      %s259 = sphi 0, %s245
      %s263 = sphi 0, %s263
      %s265 = sphi 0, %s263
      %s266 = sphi 0, %s265
      %s280 = sphi 0, %s266
      %s284 = sphi 0, %s284
      %s286 = sphi 0, %s284
      %s287 = sphi 0, %s286
      %s301 = sphi 0, %s287
      %s305 = sphi 0, %s305
      %s307 = sphi 0, %s305
      %s308 = sphi 0, %s307
      %s322 = sphi 0, %s308
      %s330 = sphi 0, %s332
      %s333 = sphi 0, %s330
      %s334 = sphi 0, %s333
      %s350 = sphi 0, %s334
    $region4: #{tpu_custom_call.1} parent=1 // loop_header_branch
      %31 = sbr.rel (%p29) target = $region8
    $region5: #{tpu_custom_call.1} parent=1 // loop_body
      %s33 = ssub.s32 %s28, 1
      %s34 = ssub.s32 %s28, 2
      %s41 = sadd.s32 1, %s36
      %p42 = scmp.ge.s32.totalorder %s41, 1
      %s43 = scalar_select %p42, 0, %s41
      %s44 = sadd.s32 1, %s35
      %s45 = scalar_select %p42, %s44, %s35
      %p46 = scmp.ge.s32.totalorder %s45, 2
      %s47 = scalar_select %p46, 0, %s45
      %s48 = ssub.s32 %s35, %s47
      %p49 = scmp.eq.s32.totalorder %s48, 0
      %s51 = sadd.s32 %s50, 1
      %s52 = scalar_select %p49, %s50, %s51
      %p55 = pneg %p49
      %p56 = scmp.eq.s32.totalorder %s28, 1
      %p57 = por %p55, %p56
      %p58 = scmp.ne.s32.totalorder %s50, %s53
      %p59 = scmp.eq.s32.totalorder %s28, 0
      %p60 = por %p58, %p59
      %p61 = scmp.ne.s32.totalorder %s50, %s53
      %p62 = scmp.eq.s32.totalorder %s33, 1
      %p63 = por %p61, %p62
      %p64 = scmp.ne.s32.totalorder %s53, %s54
      %p65 = scmp.eq.s32.totalorder %s33, 0
      %p66 = por %p64, %p65
      %p67 = scmp.ne.s32.totalorder %s53, %s54
      %p68 = scmp.eq.s32.totalorder %s34, 1
      %p69 = por %p67, %p68
      %p71 = scmp.ne.s32.totalorder %s54, %s70
      %p72 = scmp.eq.s32.totalorder %s34, 0
      %p73 = por %p71, %p72
      %s75 = sadd.s32 %s74, 1
      %p78 = scmp.eq.s32.totalorder %s28, 1
      %p79 = scmp.ne.s32.totalorder %s74, %s76
      %p80 = scmp.eq.s32.totalorder %s28, 0
      %p81 = por %p79, %p80
      %p82 = scmp.ne.s32.totalorder %s74, %s76
      %p83 = scmp.eq.s32.totalorder %s33, 1
      %p84 = por %p82, %p83
      %p85 = scmp.ne.s32.totalorder %s76, %s77
      %p86 = scmp.eq.s32.totalorder %s33, 0
      %p87 = por %p85, %p86
      %p88 = scmp.ne.s32.totalorder %s76, %s77
      %p89 = scmp.eq.s32.totalorder %s34, 1
      %p90 = por %p88, %p89
      %p92 = scmp.ne.s32.totalorder %s77, %s91
      %p93 = scmp.eq.s32.totalorder %s34, 0
      %p94 = por %p92, %p93
      %s96 = sadd.s32 %s95, 1
      %p99 = scmp.eq.s32.totalorder %s28, 1
      %p100 = scmp.ne.s32.totalorder %s95, %s97
      %p101 = scmp.eq.s32.totalorder %s28, 0
      %p102 = por %p100, %p101
      %p103 = scmp.ne.s32.totalorder %s95, %s97
      %p104 = scmp.eq.s32.totalorder %s33, 1
      %p105 = por %p103, %p104
      %p106 = scmp.ne.s32.totalorder %s97, %s98
      %p107 = scmp.eq.s32.totalorder %s33, 0
      %p108 = por %p106, %p107
      %p109 = scmp.ne.s32.totalorder %s97, %s98
      %p110 = scmp.eq.s32.totalorder %s34, 1
      %p111 = por %p109, %p110
      %p113 = scmp.ne.s32.totalorder %s98, %s112
      %p114 = scmp.eq.s32.totalorder %s34, 0
      %p115 = por %p113, %p114
      %s117 = sadd.s32 %s116, 1
      %p120 = scmp.eq.s32.totalorder %s28, 1
      %p121 = scmp.ne.s32.totalorder %s116, %s118
      %p122 = scmp.eq.s32.totalorder %s28, 0
      %p123 = por %p121, %p122
      %p124 = scmp.ne.s32.totalorder %s116, %s118
      %p125 = scmp.eq.s32.totalorder %s33, 1
      %p126 = por %p124, %p125
      %p127 = scmp.ne.s32.totalorder %s118, %s119
      %p128 = scmp.eq.s32.totalorder %s33, 0
      %p129 = por %p127, %p128
      %p130 = scmp.ne.s32.totalorder %s118, %s119
      %p131 = scmp.eq.s32.totalorder %s34, 1
      %p132 = por %p130, %p131
      %p134 = scmp.ne.s32.totalorder %s119, %s133
      %p135 = scmp.eq.s32.totalorder %s34, 0
      %p136 = por %p134, %p135
      %s138 = sadd.s32 %s137, 1
      %p141 = scmp.eq.s32.totalorder %s28, 1
      %p142 = scmp.ne.s32.totalorder %s137, %s139
      %p143 = scmp.eq.s32.totalorder %s28, 0
      %p144 = por %p142, %p143
      %p145 = scmp.ne.s32.totalorder %s137, %s139
      %p146 = scmp.eq.s32.totalorder %s33, 1
      %p147 = por %p145, %p146
      %p148 = scmp.ne.s32.totalorder %s139, %s140
      %p149 = scmp.eq.s32.totalorder %s33, 0
      %p150 = por %p148, %p149
      %p151 = scmp.ne.s32.totalorder %s139, %s140
      %p152 = scmp.eq.s32.totalorder %s34, 1
      %p153 = por %p151, %p152
      %p155 = scmp.ne.s32.totalorder %s140, %s154
      %p156 = scmp.eq.s32.totalorder %s34, 0
      %p157 = por %p155, %p156
      %s159 = sadd.s32 %s158, 1
      %p162 = scmp.eq.s32.totalorder %s28, 1
      %p163 = scmp.ne.s32.totalorder %s158, %s160
      %p164 = scmp.eq.s32.totalorder %s28, 0
      %p165 = por %p163, %p164
      %p166 = scmp.ne.s32.totalorder %s158, %s160
      %p167 = scmp.eq.s32.totalorder %s33, 1
      %p168 = por %p166, %p167
      %p169 = scmp.ne.s32.totalorder %s160, %s161
      %p170 = scmp.eq.s32.totalorder %s33, 0
      %p171 = por %p169, %p170
      %p172 = scmp.ne.s32.totalorder %s160, %s161
      %p173 = scmp.eq.s32.totalorder %s34, 1
      %p174 = por %p172, %p173
      %p176 = scmp.ne.s32.totalorder %s161, %s175
      %p177 = scmp.eq.s32.totalorder %s34, 0
      %p178 = por %p176, %p177
      %s180 = sadd.s32 %s179, 1
      %p183 = scmp.eq.s32.totalorder %s28, 1
      %p184 = scmp.ne.s32.totalorder %s179, %s181
      %p185 = scmp.eq.s32.totalorder %s28, 0
      %p186 = por %p184, %p185
      %p187 = scmp.ne.s32.totalorder %s179, %s181
      %p188 = scmp.eq.s32.totalorder %s33, 1
      %p189 = por %p187, %p188
      %p190 = scmp.ne.s32.totalorder %s181, %s182
      %p191 = scmp.eq.s32.totalorder %s33, 0
      %p192 = por %p190, %p191
      %p193 = scmp.ne.s32.totalorder %s181, %s182
      %p194 = scmp.eq.s32.totalorder %s34, 1
      %p195 = por %p193, %p194
      %p197 = scmp.ne.s32.totalorder %s182, %s196
      %p198 = scmp.eq.s32.totalorder %s34, 0
      %p199 = por %p197, %p198
      %s201 = sadd.s32 %s200, 1
      %p204 = scmp.eq.s32.totalorder %s28, 1
      %p205 = scmp.ne.s32.totalorder %s200, %s202
      %p206 = scmp.eq.s32.totalorder %s28, 0
      %p207 = por %p205, %p206
      %p208 = scmp.ne.s32.totalorder %s200, %s202
      %p209 = scmp.eq.s32.totalorder %s33, 1
      %p210 = por %p208, %p209
      %p211 = scmp.ne.s32.totalorder %s202, %s203
      %p212 = scmp.eq.s32.totalorder %s33, 0
      %p213 = por %p211, %p212
      %p214 = scmp.ne.s32.totalorder %s202, %s203
      %p215 = scmp.eq.s32.totalorder %s34, 1
      %p216 = por %p214, %p215
      %p218 = scmp.ne.s32.totalorder %s203, %s217
      %p219 = scmp.eq.s32.totalorder %s34, 0
      %p220 = por %p218, %p219
      %s222 = sadd.s32 %s221, 1
      %p225 = scmp.eq.s32.totalorder %s28, 1
      %p226 = scmp.ne.s32.totalorder %s221, %s223
      %p227 = scmp.eq.s32.totalorder %s28, 0
      %p228 = por %p226, %p227
      %p229 = scmp.ne.s32.totalorder %s221, %s223
      %p230 = scmp.eq.s32.totalorder %s33, 1
      %p231 = por %p229, %p230
      %p232 = scmp.ne.s32.totalorder %s223, %s224
      %p233 = scmp.eq.s32.totalorder %s33, 0
      %p234 = por %p232, %p233
      %p235 = scmp.ne.s32.totalorder %s223, %s224
      %p236 = scmp.eq.s32.totalorder %s34, 1
      %p237 = por %p235, %p236
      %p239 = scmp.ne.s32.totalorder %s224, %s238
      %p240 = scmp.eq.s32.totalorder %s34, 0
      %p241 = por %p239, %p240
      %s243 = sadd.s32 %s242, 1
      %p246 = scmp.eq.s32.totalorder %s28, 1
      %p247 = scmp.ne.s32.totalorder %s242, %s244
      %p248 = scmp.eq.s32.totalorder %s28, 0
      %p249 = por %p247, %p248
      %p250 = scmp.ne.s32.totalorder %s242, %s244
      %p251 = scmp.eq.s32.totalorder %s33, 1
      %p252 = por %p250, %p251
      %p253 = scmp.ne.s32.totalorder %s244, %s245
      %p254 = scmp.eq.s32.totalorder %s33, 0
      %p255 = por %p253, %p254
      %p256 = scmp.ne.s32.totalorder %s244, %s245
      %p257 = scmp.eq.s32.totalorder %s34, 1
      %p258 = por %p256, %p257
      %p260 = scmp.ne.s32.totalorder %s245, %s259
      %p261 = scmp.eq.s32.totalorder %s34, 0
      %p262 = por %p260, %p261
      %s264 = sadd.s32 %s263, 1
      %p267 = scmp.eq.s32.totalorder %s28, 1
      %p268 = scmp.ne.s32.totalorder %s263, %s265
      %p269 = scmp.eq.s32.totalorder %s28, 0
      %p270 = por %p268, %p269
      %p271 = scmp.ne.s32.totalorder %s263, %s265
      %p272 = scmp.eq.s32.totalorder %s33, 1
      %p273 = por %p271, %p272
      %p274 = scmp.ne.s32.totalorder %s265, %s266
      %p275 = scmp.eq.s32.totalorder %s33, 0
      %p276 = por %p274, %p275
      %p277 = scmp.ne.s32.totalorder %s265, %s266
      %p278 = scmp.eq.s32.totalorder %s34, 1
      %p279 = por %p277, %p278
      %p281 = scmp.ne.s32.totalorder %s266, %s280
      %p282 = scmp.eq.s32.totalorder %s34, 0
      %p283 = por %p281, %p282
      %s285 = sadd.s32 %s284, 1
      %p288 = scmp.eq.s32.totalorder %s28, 1
      %p289 = scmp.ne.s32.totalorder %s284, %s286
      %p290 = scmp.eq.s32.totalorder %s28, 0
      %p291 = por %p289, %p290
      %p292 = scmp.ne.s32.totalorder %s284, %s286
      %p293 = scmp.eq.s32.totalorder %s33, 1
      %p294 = por %p292, %p293
      %p295 = scmp.ne.s32.totalorder %s286, %s287
      %p296 = scmp.eq.s32.totalorder %s33, 0
      %p297 = por %p295, %p296
      %p298 = scmp.ne.s32.totalorder %s286, %s287
      %p299 = scmp.eq.s32.totalorder %s34, 1
      %p300 = por %p298, %p299
      %p302 = scmp.ne.s32.totalorder %s287, %s301
      %p303 = scmp.eq.s32.totalorder %s34, 0
      %p304 = por %p302, %p303
      %s306 = sadd.s32 %s305, 1
      %p309 = scmp.eq.s32.totalorder %s28, 1
      %p310 = scmp.ne.s32.totalorder %s305, %s307
      %p311 = scmp.eq.s32.totalorder %s28, 0
      %p312 = por %p310, %p311
      %p313 = scmp.ne.s32.totalorder %s305, %s307
      %p314 = scmp.eq.s32.totalorder %s33, 1
      %p315 = por %p313, %p314
      %p316 = scmp.ne.s32.totalorder %s307, %s308
      %p317 = scmp.eq.s32.totalorder %s33, 0
      %p318 = por %p316, %p317
      %p319 = scmp.ne.s32.totalorder %s307, %s308
      %p320 = scmp.eq.s32.totalorder %s34, 1
      %p321 = por %p319, %p320
      %p323 = scmp.ne.s32.totalorder %s308, %s322
      %p324 = scmp.eq.s32.totalorder %s34, 0
      %p325 = por %p323, %p324
      %s326 = ssub.s32 %s35, %s47
      %s327 = ssub.s32 %s36, %s43
      %s328 = sor.u32 %s326, %s327
      %p329 = scmp.eq.s32.totalorder %s328, 0
      %s331 = sadd.s32 %s330, 1
      %s332 = scalar_select %p329, %s330, %s331
      %p335 = pneg %p329
      %p336 = scmp.eq.s32.totalorder %s28, 1
      %p337 = por %p335, %p336
      %p338 = scmp.ne.s32.totalorder %s330, %s333
      %p339 = scmp.eq.s32.totalorder %s28, 0
      %p340 = por %p338, %p339
      %p341 = scmp.ne.s32.totalorder %s330, %s333
      %p342 = scmp.eq.s32.totalorder %s33, 1
      %p343 = por %p341, %p342
      %p344 = scmp.ne.s32.totalorder %s333, %s334
      %p345 = scmp.eq.s32.totalorder %s33, 0
      %p346 = por %p344, %p345
      %p347 = scmp.ne.s32.totalorder %s333, %s334
      %p348 = scmp.eq.s32.totalorder %s34, 1
      %p349 = por %p347, %p348
      %p351 = scmp.ne.s32.totalorder %s334, %s350
      %p352 = scmp.eq.s32.totalorder %s34, 0
      %p353 = por %p351, %p352
      %p354 = scmp.le.s32.totalorder 1, %s28
      %p355 = scmp.lt.s32.totalorder %s28, 3
      %p356 = pnand %p354, %p355
      %p357 = pneg %p356
      // Predicated region
      $region9: #{tpu_custom_call.1} parent=5 // pred_check
        _
      $region10: #{tpu_custom_call.1} parent=5 // pred_check_branch
        %359 = sbr.rel (%p356) target = $region12
      $region11: #{tpu_custom_call.1} parent=5 // pred_region
        %s360 = ssub.s32 %s28, 1
        // Predicated region
        $region13: #{tpu_custom_call.1} parent=11 // pred_check
          %p361 = pneg %p87
        $region14: #{tpu_custom_call.1} parent=11 // pred_check_branch
          %363 = sbr.rel (%p361) target = $region16
        $region15: #{tpu_custom_call.1} parent=11 // pred_region
          %365 = vsyncadd [#allocation6], 0
          %s366 = sshll.u32 %s1, 4
          %s367 = int_to_ptr.hbm [resolvable:$true] %s366
          %s368 = sshll.u32 [#allocation5], 4
          %s369 = int_to_ptr.vmem [resolvable:$true] %s368
          %374 = dma.hbm_to_vmem [thread:$0]  %s367, 3072, %s369, [#allocation6], 192, 192, 12
        $region16: #{tpu_custom_call.1} parent=11 // pred_fallthru
          _
        // Predicated region
        $region17: #{tpu_custom_call.1} parent=11 // pred_check
          %p375 = pneg %p108
        $region18: #{tpu_custom_call.1} parent=11 // pred_check_branch
          %377 = sbr.rel (%p375) target = $region20
        $region19: #{tpu_custom_call.1} parent=11 // pred_region
          %379 = vsyncadd [#allocation6], 0
          %s381 = sshll.u32 %s2, 4
          %s382 = int_to_ptr.hbm [resolvable:$true] %s381
          %s383 = sshll.u32 [#allocation7], 4
          %s384 = int_to_ptr.vmem [resolvable:$true] %s383
          %386 = dma.hbm_to_vmem [thread:$0]  %s382, 48, %s384, [#allocation6]
        $region20: #{tpu_custom_call.1} parent=11 // pred_fallthru
          _
        // Predicated region
        $region21: #{tpu_custom_call.1} parent=11 // pred_check
          %p387 = pneg %p129
        $region22: #{tpu_custom_call.1} parent=11 // pred_check_branch
          %389 = sbr.rel (%p387) target = $region24
        $region23: #{tpu_custom_call.1} parent=11 // pred_region
          %391 = vsyncadd [#allocation9], 0
          %s392 = sshll.u32 %s3, 4
          %s393 = int_to_ptr.hbm [resolvable:$true] %s392
          %s394 = sshll.u32 [#allocation8], 4
          %s395 = int_to_ptr.vmem [resolvable:$true] %s394
          %400 = dma.hbm_to_vmem [thread:$0]  %s393, 1024, %s395, [#allocation9], 64, 64, 4
        $region24: #{tpu_custom_call.1} parent=11 // pred_fallthru
          _
        // Predicated region
        $region25: #{tpu_custom_call.1} parent=11 // pred_check
          %p401 = pneg %p150
        $region26: #{tpu_custom_call.1} parent=11 // pred_check_branch
          %403 = sbr.rel (%p401) target = $region28
        $region27: #{tpu_custom_call.1} parent=11 // pred_region
          _
        $region28: #{tpu_custom_call.1} parent=11 // pred_fallthru
          _
        // Predicated region
        $region29: #{tpu_custom_call.1} parent=11 // pred_check
          %p404 = pneg %p171
        $region30: #{tpu_custom_call.1} parent=11 // pred_check_branch
          %406 = sbr.rel (%p404) target = $region32
        $region31: #{tpu_custom_call.1} parent=11 // pred_region
          _
        $region32: #{tpu_custom_call.1} parent=11 // pred_fallthru
          _
        // Predicated region
        $region33: #{tpu_custom_call.1} parent=11 // pred_check
          %p407 = pneg %p192
        $region34: #{tpu_custom_call.1} parent=11 // pred_check_branch
          %409 = sbr.rel (%p407) target = $region36
        $region35: #{tpu_custom_call.1} parent=11 // pred_region
          _
        $region36: #{tpu_custom_call.1} parent=11 // pred_fallthru
          _
        // Predicated region
        $region37: #{tpu_custom_call.1} parent=11 // pred_check
          %p410 = pneg %p213
        $region38: #{tpu_custom_call.1} parent=11 // pred_check_branch
          %412 = sbr.rel (%p410) target = $region40
        $region39: #{tpu_custom_call.1} parent=11 // pred_region
          %414 = vsyncadd [#allocation9], 0
          %s415 = sshll.u32 %s7, 4
          %s416 = int_to_ptr.hbm [resolvable:$true] %s415
          %s417 = sshll.u32 [#allocation10], 4
          %s418 = int_to_ptr.vmem [resolvable:$true] %s417
          %423 = dma.hbm_to_vmem [thread:$0]  %s416, 2048, %s418, [#allocation9], 128, 128, 8
        $region40: #{tpu_custom_call.1} parent=11 // pred_fallthru
          _
        // Predicated region
        $region41: #{tpu_custom_call.1} parent=11 // pred_check
          %p424 = pneg %p234
        $region42: #{tpu_custom_call.1} parent=11 // pred_check_branch
          %426 = sbr.rel (%p424) target = $region44
        $region43: #{tpu_custom_call.1} parent=11 // pred_region
          _
        $region44: #{tpu_custom_call.1} parent=11 // pred_fallthru
          _
        // Predicated region
        $region45: #{tpu_custom_call.1} parent=11 // pred_check
          %p427 = pneg %p255
        $region46: #{tpu_custom_call.1} parent=11 // pred_check_branch
          %429 = sbr.rel (%p427) target = $region48
        $region47: #{tpu_custom_call.1} parent=11 // pred_region
          %431 = vsyncadd [#allocation12], 0
          %s432 = sshll.u32 %s9, 4
          %s433 = int_to_ptr.hbm [resolvable:$true] %s432
          %s434 = sshll.u32 [#allocation11], 4
          %s435 = int_to_ptr.vmem [resolvable:$true] %s434
          %440 = dma.hbm_to_vmem [thread:$0]  %s433, 2048, %s435, [#allocation12], 64, 64, 4
        $region48: #{tpu_custom_call.1} parent=11 // pred_fallthru
          _
        // Predicated region
        $region49: #{tpu_custom_call.1} parent=11 // pred_check
          %p441 = pneg %p276
        $region50: #{tpu_custom_call.1} parent=11 // pred_check_branch
          %443 = sbr.rel (%p441) target = $region52
        $region51: #{tpu_custom_call.1} parent=11 // pred_region
          _
        $region52: #{tpu_custom_call.1} parent=11 // pred_fallthru
          _
        // Predicated region
        $region53: #{tpu_custom_call.1} parent=11 // pred_check
          %p444 = pneg %p297
        $region54: #{tpu_custom_call.1} parent=11 // pred_check_branch
          %446 = sbr.rel (%p444) target = $region56
        $region55: #{tpu_custom_call.1} parent=11 // pred_region
          _
        $region56: #{tpu_custom_call.1} parent=11 // pred_fallthru
          _
        // Predicated region
        $region57: #{tpu_custom_call.1} parent=11 // pred_check
          %p447 = pneg %p318
        $region58: #{tpu_custom_call.1} parent=11 // pred_check_branch
          %449 = sbr.rel (%p447) target = $region60
        $region59: #{tpu_custom_call.1} parent=11 // pred_region
          _
        $region60: #{tpu_custom_call.1} parent=11 // pred_fallthru
          _
      $region12: #{tpu_custom_call.1} parent=5 // pred_fallthru
        _
      %p450 = scmp.lt.s32.totalorder %s28, 2
      // Predicated region
      $region61: #{tpu_custom_call.1} parent=5 // pred_check
        %p451 = pneg %p450
      $region62: #{tpu_custom_call.1} parent=5 // pred_check_branch
        %453 = sbr.rel (%p451) target = $region64
      $region63: #{tpu_custom_call.1} parent=5 // pred_region
        // Predicated region
        $region65: #{tpu_custom_call.1} parent=63 // pred_check
          %p454 = pneg %p60
        $region66: #{tpu_custom_call.1} parent=63 // pred_check_branch
          %456 = sbr.rel (%p454) target = $region68
        $region67: #{tpu_custom_call.1} parent=63 // pred_region
          %s457 = sand.u32 %s50, 1
          %s458 = scalar_lea.sflag [#allocation3], %s457
          %s459 = sand.u32 %s50, 1
          %s460 = smul.addr %s459, 16
          %s461 = scalar_lea.vmem [#allocation2], %s460
          %463 = vsyncadd %s458, 0
          %s464 = smul.addr %s35, 4
          %s465 = smul.addr %s464, 4
          %s466 = scalar_lea.hbm %s0, %s465
          %s467 = sshll.u32 %s466, 4
          %s468 = int_to_ptr.hbm [resolvable:$true] %s467
          %s469 = sshll.u32 %s461, 4
          %s470 = int_to_ptr.vmem [resolvable:$true] %s469
          %475 = dma.hbm_to_vmem [thread:$0]  %s468, 256, %s470, %s458, 64, 64, 4
        $region68: #{tpu_custom_call.1} parent=63 // pred_fallthru
          _
      $region64: #{tpu_custom_call.1} parent=5 // pred_fallthru
        _
      %p476 = scmp.le.s32.totalorder 1, %s28
      %p477 = scmp.lt.s32.totalorder %s28, 3
      %p478 = pnand %p476, %p477
      %p479 = pneg %p478
      // Predicated region
      $region69: #{tpu_custom_call.1} parent=5 // pred_check
        _
      $region70: #{tpu_custom_call.1} parent=5 // pred_check_branch
        %481 = sbr.rel (%p478) target = $region72
      $region71: #{tpu_custom_call.1} parent=5 // pred_region
        %s482 = ssub.s32 %s28, 1
        %s483 = sand.u32 %s53, 1
        %s484 = scalar_lea.sflag [#allocation3], %s483
        %s485 = sand.u32 %s53, 1
        %s486 = smul.addr %s485, 16
        %s487 = scalar_lea.vmem [#allocation2], %s486
        // Predicated region
        $region73: #{tpu_custom_call.1} parent=71 // pred_check
          %p488 = pneg %p66
        $region74: #{tpu_custom_call.1} parent=71 // pred_check_branch
          %490 = sbr.rel (%p488) target = $region76
        $region75: #{tpu_custom_call.1} parent=71 // pred_region
          %492 = dma.done %s484, 256
        $region76: #{tpu_custom_call.1} parent=71 // pred_fallthru
          _
        // Predicated region
        $region77: #{tpu_custom_call.1} parent=71 // pred_check
          %p493 = pneg %p87
        $region78: #{tpu_custom_call.1} parent=71 // pred_check_branch
          %495 = sbr.rel (%p493) target = $region80
        $region79: #{tpu_custom_call.1} parent=71 // pred_region
          %497 = dma.done [#allocation6], 3072
        $region80: #{tpu_custom_call.1} parent=71 // pred_fallthru
          _
        // Predicated region
        $region81: #{tpu_custom_call.1} parent=71 // pred_check
          %p498 = pneg %p108
        $region82: #{tpu_custom_call.1} parent=71 // pred_check_branch
          %500 = sbr.rel (%p498) target = $region84
        $region83: #{tpu_custom_call.1} parent=71 // pred_region
          %502 = dma.done [#allocation6], 48
        $region84: #{tpu_custom_call.1} parent=71 // pred_fallthru
          _
        // Predicated region
        $region85: #{tpu_custom_call.1} parent=71 // pred_check
          %p503 = pneg %p129
        $region86: #{tpu_custom_call.1} parent=71 // pred_check_branch
          %505 = sbr.rel (%p503) target = $region88
        $region87: #{tpu_custom_call.1} parent=71 // pred_region
          %507 = dma.done [#allocation9], 1024
        $region88: #{tpu_custom_call.1} parent=71 // pred_fallthru
          _
        // Predicated region
        $region89: #{tpu_custom_call.1} parent=71 // pred_check
          %p508 = pneg %p213
        $region90: #{tpu_custom_call.1} parent=71 // pred_check_branch
          %510 = sbr.rel (%p508) target = $region92
        $region91: #{tpu_custom_call.1} parent=71 // pred_region
          %512 = dma.done [#allocation9], 2048
        $region92: #{tpu_custom_call.1} parent=71 // pred_fallthru
          _
        // Predicated region
        $region93: #{tpu_custom_call.1} parent=71 // pred_check
          %p513 = pneg %p255
        $region94: #{tpu_custom_call.1} parent=71 // pred_check_branch
          %515 = sbr.rel (%p513) target = $region96
        $region95: #{tpu_custom_call.1} parent=71 // pred_region
          %517 = dma.done [#allocation12], 2048
        $region96: #{tpu_custom_call.1} parent=71 // pred_fallthru
          _
        %s518 = sand.u32 %s53, 1
        %s519 = scalar_lea.sflag [#allocation3], %s518
        %s520 = sand.u32 %s53, 1
        %s521 = smul.addr %s520, 16
        %s522 = scalar_lea.vmem [#allocation2], %s521
        %p523 = pneg %p66
        %p524 = pneg %p63
        %p525 = pneg %p87
        %p526 = pneg %p84
        %p527 = pneg %p108
        %p528 = pneg %p105
        %p529 = pneg %p129
        %p530 = pneg %p126
        %p531 = pneg %p150
        %p532 = pneg %p147
        %p533 = pneg %p171
        %p534 = pneg %p168
        %p535 = pneg %p192
        %p536 = pneg %p189
        %p537 = pneg %p213
        %p538 = pneg %p210
        %p539 = pneg %p234
        %p540 = pneg %p231
        %p541 = pneg %p255
        %p542 = pneg %p252
        %p543 = pneg %p276
        %p544 = pneg %p273
        %p545 = pneg %p297
        %p546 = pneg %p294
        %p547 = pneg %p318
        %p548 = pneg %p315
        %p549 = pneg %p346
        %p550 = pneg %p343
        %s551 = sand.u32 %s333, 1
        %s552 = scalar_lea.sflag [#allocation4], %s551
        %s553 = sand.u32 %s333, 1
        %s554 = smul.addr %s553, 16
        %s555 = scalar_lea.vmem [#allocation13], %s554
        %s556 = smul.u32 4, %s38
        %v558 = vld [vmem:[%s487] sm:$0xf]
        %v559 = vld [vmem:[%s487 + $0x4] sm:$0xf]
        %v560 = vld [vmem:[%s487 + $0x8] sm:$0xf]
        %v561 = vld [vmem:[%s487 + $0xc] sm:$0xf]
        %v562 = vld [vmem:[#allocation5] sm:$0xff]
        %v563 = vld [vmem:[#allocation5 + $0x8] sm:$0xf]
        %v564 = vld [vmem:[#allocation5 + $0xc] sm:$0xff]
        %v565 = vld [vmem:[#allocation5 + $0x14] sm:$0xf]
        %v566 = vld [vmem:[#allocation5 + $0x18] sm:$0xff]
        %v567 = vld [vmem:[#allocation5 + $0x20] sm:$0xf]
        %v568 = vld [vmem:[#allocation5 + $0x24] sm:$0xff]
        %v569 = vld [vmem:[#allocation5 + $0x2c] sm:$0xf]
        %v570 = vld [vmem:[#allocation5 + $0x30] sm:$0xff]
        %v571 = vld [vmem:[#allocation5 + $0x38] sm:$0xf]
        %v572 = vld [vmem:[#allocation5 + $0x3c] sm:$0xff]
        %v573 = vld [vmem:[#allocation5 + $0x44] sm:$0xf]
        %v574 = vld [vmem:[#allocation5 + $0x48] sm:$0xff]
        %v575 = vld [vmem:[#allocation5 + $0x50] sm:$0xf]
        %v576 = vld [vmem:[#allocation5 + $0x54] sm:$0xff]
        %v577 = vld [vmem:[#allocation5 + $0x5c] sm:$0xf]
        %v578 = vld [vmem:[#allocation5 + $0x60] sm:$0xff]
        %v579 = vld [vmem:[#allocation5 + $0x68] sm:$0xf]
        %v580 = vld [vmem:[#allocation5 + $0x6c] sm:$0xff]
        %v581 = vld [vmem:[#allocation5 + $0x74] sm:$0xf]
        %v582 = vld [vmem:[#allocation5 + $0x78] sm:$0xff]
        %v583 = vld [vmem:[#allocation5 + $0x80] sm:$0xf]
        %v584 = vld [vmem:[#allocation5 + $0x84] sm:$0xff]
        %v585 = vld [vmem:[#allocation5 + $0x8c] sm:$0xf]
        %v586 = vld [vmem:[#allocation5 + $0x90] sm:$0xff]
        %v587 = vld [vmem:[#allocation5 + $0x98] sm:$0xf]
        %v588 = vld [vmem:[#allocation5 + $0x9c] sm:$0xff]
        %v589 = vld [vmem:[#allocation5 + $0xa4] sm:$0xf]
        %v590 = vld [vmem:[#allocation5 + $0xa8] sm:$0xff]
        %v591 = vld [vmem:[#allocation5 + $0xb0] sm:$0xf]
        %v592 = vld [vmem:[#allocation5 + $0xb4] sm:$0xff]
        %v593 = vld [vmem:[#allocation5 + $0xbc] sm:$0xf]
        %v594 = vld [vmem:[#allocation7] sm:$0x7]
        %v596 = vperm.slane %v594, 0
        %v597 = vperm.slane %v594, 1
        %v598 = vperm.slane %v594, 2
        %v606 = vunpack.c.l.b16 %v558
        %v607 = vunpack.c.l.b16 %v559
        %v608 = vunpack.c.l.b16 %v560
        %v609 = vunpack.c.l.b16 %v561
        %v610 = vpack.c.b16 %v607, %v606
        %v611 = vpack.c.b16 %v609, %v608
        %v646 = vunpack.c.l.b16 %v562
        %v647 = vunpack.c.h.b16 %v562
        %v648 = vunpack.c.l.b16 %v563
        %v649 = vunpack.c.l.b16 %v564
        %v650 = vunpack.c.h.b16 %v564
        %v651 = vunpack.c.l.b16 %v565
        %v652 = vunpack.c.l.b16 %v566
        %v653 = vunpack.c.h.b16 %v566
        %v654 = vunpack.c.l.b16 %v567
        %v655 = vunpack.c.l.b16 %v568
        %v656 = vunpack.c.h.b16 %v568
        %v657 = vunpack.c.l.b16 %v569
        %v658 = vunpack.c.l.b16 %v570
        %v659 = vunpack.c.h.b16 %v570
        %v660 = vunpack.c.l.b16 %v571
        %v661 = vunpack.c.l.b16 %v572
        %v662 = vunpack.c.h.b16 %v572
        %v663 = vunpack.c.l.b16 %v573
        %v664 = vunpack.c.l.b16 %v574
        %v665 = vunpack.c.h.b16 %v574
        %v666 = vunpack.c.l.b16 %v575
        %v667 = vunpack.c.l.b16 %v576
        %v668 = vunpack.c.h.b16 %v576
        %v669 = vunpack.c.l.b16 %v577
        %v670 = vunpack.c.l.b16 %v578
        %v671 = vunpack.c.h.b16 %v578
        %v672 = vunpack.c.l.b16 %v579
        %v673 = vunpack.c.l.b16 %v580
        %v674 = vunpack.c.h.b16 %v580
        %v675 = vunpack.c.l.b16 %v581
        %v676 = vunpack.c.l.b16 %v582
        %v677 = vunpack.c.h.b16 %v582
        %v678 = vunpack.c.l.b16 %v583
        %v679 = vunpack.c.l.b16 %v584
        %v680 = vunpack.c.h.b16 %v584
        %v681 = vunpack.c.l.b16 %v585
        %v682 = vunpack.c.l.b16 %v586
        %v683 = vunpack.c.h.b16 %v586
        %v684 = vunpack.c.l.b16 %v587
        %v685 = vunpack.c.l.b16 %v588
        %v686 = vunpack.c.h.b16 %v588
        %v687 = vunpack.c.l.b16 %v589
        %v688 = vunpack.c.l.b16 %v590
        %v689 = vunpack.c.h.b16 %v590
        %v690 = vunpack.c.l.b16 %v591
        %v691 = vunpack.c.l.b16 %v592
        %v692 = vunpack.c.h.b16 %v592
        %v693 = vunpack.c.l.b16 %v593
        %v694 = vpack.c.b16 %v649, %v646
        %v695 = vpack.c.b16 %v650, %v647
        %v696 = vpack.c.b16 %v651, %v648
        %v697 = vpack.c.b16 %v655, %v652
        %v698 = vpack.c.b16 %v656, %v653
        %v699 = vpack.c.b16 %v657, %v654
        %v700 = vpack.c.b16 %v661, %v658
        %v701 = vpack.c.b16 %v662, %v659
        %v702 = vpack.c.b16 %v663, %v660
        %v703 = vpack.c.b16 %v667, %v664
        %v704 = vpack.c.b16 %v668, %v665
        %v705 = vpack.c.b16 %v669, %v666
        %v706 = vpack.c.b16 %v673, %v670
        %v707 = vpack.c.b16 %v674, %v671
        %v708 = vpack.c.b16 %v675, %v672
        %v709 = vpack.c.b16 %v679, %v676
        %v710 = vpack.c.b16 %v680, %v677
        %v711 = vpack.c.b16 %v681, %v678
        %v712 = vpack.c.b16 %v685, %v682
        %v713 = vpack.c.b16 %v686, %v683
        %v714 = vpack.c.b16 %v687, %v684
        %v715 = vpack.c.b16 %v691, %v688
        %v716 = vpack.c.b16 %v692, %v689
        %v717 = vpack.c.b16 %v693, %v690
        %742 = vmatpush.bf16.msra.mxu0 %v715
        %743 = vmatpush.bf16.msra.mxu0 %v712
        %744 = vmatpush.bf16.msra.mxu0 %v709
        %745 = vmatpush.bf16.msra.mxu0 %v706
        %746 = vmatpush.bf16.msra.mxu0 %v703
        %747 = vmatpush.bf16.msra.mxu0 %v700
        %748 = vmatpush.bf16.msra.mxu0 %v697
        %749 = vmatpush.bf16.msra.mxu0 %v694
        %750 = vmatmul.bf16.gmra.mxu0 %v610
        %v751 = vpop.f32.mrf.mxu0
        %v752 = vadd.f32 %v596, %v751
        %v753 = vpop.f32.mrf.mxu0
        %v754 = vadd.f32 %v596, %v753
        %755 = vmatmul.bf16.gmra.mxu0 %v611
        %v756 = vpop.f32.mrf.mxu0
        %v757 = vadd.f32 %v596, %v756
        %v758 = vpop.f32.mrf.mxu0
        %v759 = vadd.f32 %v596, %v758
        %760 = vdwg.mxu0
        %761 = vmatpush.bf16.msra.mxu0 %v716
        %762 = vmatpush.bf16.msra.mxu0 %v713
        %763 = vmatpush.bf16.msra.mxu0 %v710
        %764 = vmatpush.bf16.msra.mxu0 %v707
        %765 = vmatpush.bf16.msra.mxu0 %v704
        %766 = vmatpush.bf16.msra.mxu0 %v701
        %767 = vmatpush.bf16.msra.mxu0 %v698
        %768 = vmatpush.bf16.msra.mxu0 %v695
        %769 = vmatmul.bf16.gmra.mxu0 %v610
        %v770 = vpop.f32.mrf.mxu0
        %v771 = vadd.f32 %v597, %v770
        %v772 = vpop.f32.mrf.mxu0
        %v773 = vadd.f32 %v597, %v772
        %774 = vmatmul.bf16.gmra.mxu0 %v611
        %v775 = vpop.f32.mrf.mxu0
        %v776 = vadd.f32 %v597, %v775
        %v777 = vpop.f32.mrf.mxu0
        %v778 = vadd.f32 %v597, %v777
        %779 = vdwg.mxu0
        %780 = vmatpush.bf16.msra.mxu0 %v717
        %781 = vmatpush.bf16.msra.mxu0 %v714
        %782 = vmatpush.bf16.msra.mxu0 %v711
        %783 = vmatpush.bf16.msra.mxu0 %v708
        %784 = vmatpush.bf16.msra.mxu0 %v705
        %785 = vmatpush.bf16.msra.mxu0 %v702
        %786 = vmatpush.bf16.msra.mxu0 %v699
        %787 = vmatpush.bf16.msra.mxu0 %v696
        %788 = vmatmul.bf16.gmra.mxu0 %v610
        %v789 = vpop.f32.mrf.mxu0
        %v790 = vadd.f32 %v598, %v789
        %v791 = vpop.f32.mrf.mxu0
        %v792 = vadd.f32 %v598, %v791
        %793 = vmatmul.bf16.gmra.mxu0 %v611
        %v794 = vpop.f32.mrf.mxu0
        %v795 = vadd.f32 %v598, %v794
        %v796 = vpop.f32.mrf.mxu0
        %v797 = vadd.f32 %v598, %v796
        %798 = vdwg.mxu0
        %v799 = vmul.f32 %v752, 0.17677669
        %v800 = vmul.f32 %v754, 0.17677669
        %v801 = vmul.f32 %v757, 0.17677669
        %v802 = vmul.f32 %v759, 0.17677669
        %v803 = vpack.c.bf16 %v771, %v771
        %v804 = vpack.c.bf16 %v773, %v773
        %v805 = vpack.c.bf16 %v776, %v776
        %v806 = vpack.c.bf16 %v778, %v778
        %v807 = vpack.c.bf16 %v790, %v790
        %v808 = vpack.c.bf16 %v792, %v792
        %v809 = vpack.c.bf16 %v795, %v795
        %v810 = vpack.c.bf16 %v797, %v797
        %v811 = vunpack.c.l.bf16 %v558
        %v812 = vunpack.c.l.bf16 %v559
        %v813 = vunpack.c.l.bf16 %v560
        %v814 = vunpack.c.l.bf16 %v561
        %819 = vrot.lane.b32.xlu0 %v799, 96
        %v820 = vpop.permute.xlu0 %819
        %821 = vrot.lane.b32.xlu0 %v800, 96
        %v822 = vpop.permute.xlu0 %821
        %823 = vrot.lane.b32.xlu0 %v801, 96
        %v824 = vpop.permute.xlu0 %823
        %825 = vrot.lane.b32.xlu0 %v802, 96
        %v826 = vpop.permute.xlu0 %825
        %831 = vrot.lane.b32.xlu0 %v799, 64
        %v832 = vpop.permute.xlu0 %831
        %833 = vrot.lane.b32.xlu0 %v800, 64
        %v834 = vpop.permute.xlu0 %833
        %835 = vrot.lane.b32.xlu0 %v801, 64
        %v836 = vpop.permute.xlu0 %835
        %837 = vrot.lane.b32.xlu0 %v802, 64
        %v838 = vpop.permute.xlu0 %837
        %843 = vrot.lane.b32.xlu0 %v799, 32
        %v844 = vpop.permute.xlu0 %843
        %845 = vrot.lane.b32.xlu0 %v800, 32
        %v846 = vpop.permute.xlu0 %845
        %847 = vrot.lane.b32.xlu0 %v801, 32
        %v848 = vpop.permute.xlu0 %847
        %849 = vrot.lane.b32.xlu0 %v802, 32
        %v850 = vpop.permute.xlu0 %849
        %v855 = vrot.slane %v832, 4
        %vm856 = vcmask 1047556
        %v857 = vsel %vm856, %v855, %v799
        %v858 = vrot.slane %v799, 4
        %v859 = vsel %vm856, %v832, %v858
        %v861 = vunpack.c.l.s4 1983009808
        %v862 = vunpack.c.0.s8 %v861
        %v863 = vperm.slane %v857, %v862
        %v865 = vunpack.c.l.s4 1983009808
        %v866 = vunpack.c.0.s8 %v865
        %v867 = vperm.slane %v859, %v866
        %v868 = vrot.slane %v844, 4
        %v869 = vsel %vm856, %v868, %v820
        %v870 = vrot.slane %v820, 4
        %v871 = vsel %vm856, %v844, %v870
        %v873 = vunpack.c.l.s4 1983009808
        %v874 = vunpack.c.0.s8 %v873
        %v875 = vperm.slane %v869, %v874
        %v877 = vunpack.c.l.s4 1983009808
        %v878 = vunpack.c.0.s8 %v877
        %v879 = vperm.slane %v871, %v878
        %v880 = vrot.slane %v875, 4
        %v881 = vsel %vm856, %v880, %v863
        %v882 = vrot.slane %v863, 4
        %v883 = vsel %vm856, %v875, %v882
        %v885 = vunpack.c.l.s4 1934713408
        %v886 = vunpack.c.0.s8 %v885
        %v887 = vperm.slane %v881, %v886
        %v889 = vunpack.c.l.s4 1934713408
        %v890 = vunpack.c.0.s8 %v889
        %v891 = vperm.slane %v883, %v890
        %v892 = vrot.slane %v879, 4
        %v893 = vsel %vm856, %v892, %v867
        %v894 = vrot.slane %v867, 4
        %v895 = vsel %vm856, %v879, %v894
        %v897 = vunpack.c.l.s4 1934713408
        %v898 = vunpack.c.0.s8 %v897
        %v899 = vperm.slane %v893, %v898
        %v901 = vunpack.c.l.s4 1934713408
        %v902 = vunpack.c.0.s8 %v901
        %v903 = vperm.slane %v895, %v902
        %v904 = vrot.slane %v887, 4
        %v905 = vsel %vm856, 0.0, %v904
        %v906 = vrot.slane %v891, 4
        %v907 = vsel %vm856, 0.0, %v906
        %v908 = vrot.slane %v899, 4
        %v909 = vsel %vm856, 0.0, %v908
        %v910 = vrot.slane %v903, 4
        %v911 = vsel %vm856, 0.0, %v910
        %v912 = vrot.slane %v834, 4
        %v913 = vsel %vm856, %v912, %v800
        %v914 = vrot.slane %v800, 4
        %v915 = vsel %vm856, %v834, %v914
        %v917 = vunpack.c.l.s4 1983009808
        %v918 = vunpack.c.0.s8 %v917
        %v919 = vperm.slane %v913, %v918
        %v921 = vunpack.c.l.s4 1983009808
        %v922 = vunpack.c.0.s8 %v921
        %v923 = vperm.slane %v915, %v922
        %v924 = vrot.slane %v846, 4
        %v925 = vsel %vm856, %v924, %v822
        %v926 = vrot.slane %v822, 4
        %v927 = vsel %vm856, %v846, %v926
        %v929 = vunpack.c.l.s4 1983009808
        %v930 = vunpack.c.0.s8 %v929
        %v931 = vperm.slane %v925, %v930
        %v933 = vunpack.c.l.s4 1983009808
        %v934 = vunpack.c.0.s8 %v933
        %v935 = vperm.slane %v927, %v934
        %v936 = vrot.slane %v931, 4
        %v937 = vsel %vm856, %v936, %v919
        %v938 = vrot.slane %v919, 4
        %v939 = vsel %vm856, %v931, %v938
        %v941 = vunpack.c.l.s4 1934713408
        %v942 = vunpack.c.0.s8 %v941
        %v943 = vperm.slane %v937, %v942
        %v945 = vunpack.c.l.s4 1934713408
        %v946 = vunpack.c.0.s8 %v945
        %v947 = vperm.slane %v939, %v946
        %v948 = vrot.slane %v935, 4
        %v949 = vsel %vm856, %v948, %v923
        %v950 = vrot.slane %v923, 4
        %v951 = vsel %vm856, %v935, %v950
        %v953 = vunpack.c.l.s4 1934713408
        %v954 = vunpack.c.0.s8 %v953
        %v955 = vperm.slane %v949, %v954
        %v957 = vunpack.c.l.s4 1934713408
        %v958 = vunpack.c.0.s8 %v957
        %v959 = vperm.slane %v951, %v958
        %v960 = vrot.slane %v943, 4
        %v961 = vsel %vm856, 0.0, %v960
        %v962 = vrot.slane %v947, 4
        %v963 = vsel %vm856, 0.0, %v962
        %v964 = vrot.slane %v955, 4
        %v965 = vsel %vm856, 0.0, %v964
        %v966 = vrot.slane %v959, 4
        %v967 = vsel %vm856, 0.0, %v966
        %v968 = vrot.slane %v836, 4
        %v969 = vsel %vm856, %v968, %v801
        %v970 = vrot.slane %v801, 4
        %v971 = vsel %vm856, %v836, %v970
        %v973 = vunpack.c.l.s4 1983009808
        %v974 = vunpack.c.0.s8 %v973
        %v975 = vperm.slane %v969, %v974
        %v977 = vunpack.c.l.s4 1983009808
        %v978 = vunpack.c.0.s8 %v977
        %v979 = vperm.slane %v971, %v978
        %v980 = vrot.slane %v848, 4
        %v981 = vsel %vm856, %v980, %v824
        %v982 = vrot.slane %v824, 4
        %v983 = vsel %vm856, %v848, %v982
        %v985 = vunpack.c.l.s4 1983009808
        %v986 = vunpack.c.0.s8 %v985
        %v987 = vperm.slane %v981, %v986
        %v989 = vunpack.c.l.s4 1983009808
        %v990 = vunpack.c.0.s8 %v989
        %v991 = vperm.slane %v983, %v990
        %v992 = vrot.slane %v987, 4
        %v993 = vsel %vm856, %v992, %v975
        %v994 = vrot.slane %v975, 4
        %v995 = vsel %vm856, %v987, %v994
        %v997 = vunpack.c.l.s4 1934713408
        %v998 = vunpack.c.0.s8 %v997
        %v999 = vperm.slane %v993, %v998
        %v1001 = vunpack.c.l.s4 1934713408
        %v1002 = vunpack.c.0.s8 %v1001
        %v1003 = vperm.slane %v995, %v1002
        %v1004 = vrot.slane %v991, 4
        %v1005 = vsel %vm856, %v1004, %v979
        %v1006 = vrot.slane %v979, 4
        %v1007 = vsel %vm856, %v991, %v1006
        %v1009 = vunpack.c.l.s4 1934713408
        %v1010 = vunpack.c.0.s8 %v1009
        %v1011 = vperm.slane %v1005, %v1010
        %v1013 = vunpack.c.l.s4 1934713408
        %v1014 = vunpack.c.0.s8 %v1013
        %v1015 = vperm.slane %v1007, %v1014
        %v1016 = vrot.slane %v999, 4
        %v1017 = vsel %vm856, 0.0, %v1016
        %v1018 = vrot.slane %v1003, 4
        %v1019 = vsel %vm856, 0.0, %v1018
        %v1020 = vrot.slane %v1011, 4
        %v1021 = vsel %vm856, 0.0, %v1020
        %v1022 = vrot.slane %v1015, 4
        %v1023 = vsel %vm856, 0.0, %v1022
        %v1024 = vrot.slane %v838, 4
        %v1025 = vsel %vm856, %v1024, %v802
        %v1026 = vrot.slane %v802, 4
        %v1027 = vsel %vm856, %v838, %v1026
        %v1029 = vunpack.c.l.s4 1983009808
        %v1030 = vunpack.c.0.s8 %v1029
        %v1031 = vperm.slane %v1025, %v1030
        %v1033 = vunpack.c.l.s4 1983009808
        %v1034 = vunpack.c.0.s8 %v1033
        %v1035 = vperm.slane %v1027, %v1034
        %v1036 = vrot.slane %v850, 4
        %v1037 = vsel %vm856, %v1036, %v826
        %v1038 = vrot.slane %v826, 4
        %v1039 = vsel %vm856, %v850, %v1038
        %v1041 = vunpack.c.l.s4 1983009808
        %v1042 = vunpack.c.0.s8 %v1041
        %v1043 = vperm.slane %v1037, %v1042
        %v1045 = vunpack.c.l.s4 1983009808
        %v1046 = vunpack.c.0.s8 %v1045
        %v1047 = vperm.slane %v1039, %v1046
        %v1048 = vrot.slane %v1043, 4
        %v1049 = vsel %vm856, %v1048, %v1031
        %v1050 = vrot.slane %v1031, 4
        %v1051 = vsel %vm856, %v1043, %v1050
        %v1053 = vunpack.c.l.s4 1934713408
        %v1054 = vunpack.c.0.s8 %v1053
        %v1055 = vperm.slane %v1049, %v1054
        %v1057 = vunpack.c.l.s4 1934713408
        %v1058 = vunpack.c.0.s8 %v1057
        %v1059 = vperm.slane %v1051, %v1058
        %v1060 = vrot.slane %v1047, 4
        %v1061 = vsel %vm856, %v1060, %v1035
        %v1062 = vrot.slane %v1035, 4
        %v1063 = vsel %vm856, %v1047, %v1062
        %v1065 = vunpack.c.l.s4 1934713408
        %v1066 = vunpack.c.0.s8 %v1065
        %v1067 = vperm.slane %v1061, %v1066
        %v1069 = vunpack.c.l.s4 1934713408
        %v1070 = vunpack.c.0.s8 %v1069
        %v1071 = vperm.slane %v1063, %v1070
        %v1072 = vrot.slane %v1055, 4
        %v1073 = vsel %vm856, 0.0, %v1072
        %v1074 = vrot.slane %v1059, 4
        %v1075 = vsel %vm856, 0.0, %v1074
        %v1076 = vrot.slane %v1067, 4
        %v1077 = vsel %vm856, 0.0, %v1076
        %v1078 = vrot.slane %v1071, 4
        %v1079 = vsel %vm856, 0.0, %v1078
        %v1080 = vpack.c.bf16 %v887, %v887
        %v1081 = vpack.c.bf16 %v905, %v905
        %v1082 = vpack.c.bf16 %v891, %v891
        %v1083 = vpack.c.bf16 %v907, %v907
        %v1084 = vpack.c.bf16 %v899, %v899
        %v1085 = vpack.c.bf16 %v909, %v909
        %v1086 = vpack.c.bf16 %v903, %v903
        %v1087 = vpack.c.bf16 %v911, %v911
        %v1088 = vpack.c.bf16 %v943, %v943
        %v1089 = vpack.c.bf16 %v961, %v961
        %v1090 = vpack.c.bf16 %v947, %v947
        %v1091 = vpack.c.bf16 %v963, %v963
        %v1092 = vpack.c.bf16 %v955, %v955
        %v1093 = vpack.c.bf16 %v965, %v965
        %v1094 = vpack.c.bf16 %v959, %v959
        %v1095 = vpack.c.bf16 %v967, %v967
        %v1096 = vpack.c.bf16 %v999, %v999
        %v1097 = vpack.c.bf16 %v1017, %v1017
        %v1098 = vpack.c.bf16 %v1003, %v1003
        %v1099 = vpack.c.bf16 %v1019, %v1019
        %v1100 = vpack.c.bf16 %v1011, %v1011
        %v1101 = vpack.c.bf16 %v1021, %v1021
        %v1102 = vpack.c.bf16 %v1015, %v1015
        %v1103 = vpack.c.bf16 %v1023, %v1023
        %v1104 = vpack.c.bf16 %v1055, %v1055
        %v1105 = vpack.c.bf16 %v1073, %v1073
        %v1106 = vpack.c.bf16 %v1059, %v1059
        %v1107 = vpack.c.bf16 %v1075, %v1075
        %v1108 = vpack.c.bf16 %v1067, %v1067
        %v1109 = vpack.c.bf16 %v1077, %v1077
        %v1110 = vpack.c.bf16 %v1071, %v1071
        %v1111 = vpack.c.bf16 %v1079, %v1079
        %1116 = vrot.lane.b32.xlu0 %v803, 96
        %v1117 = vpop.permute.xlu0 %1116
        %1118 = vrot.lane.b32.xlu0 %v804, 96
        %v1119 = vpop.permute.xlu0 %1118
        %1120 = vrot.lane.b32.xlu0 %v805, 96
        %v1121 = vpop.permute.xlu0 %1120
        %1122 = vrot.lane.b32.xlu0 %v806, 96
        %v1123 = vpop.permute.xlu0 %1122
        %1124 = vrot.lane.b32.xlu0 %v803, 64
        %v1125 = vpop.permute.xlu0 %1124
        %1126 = vrot.lane.b32.xlu0 %v804, 64
        %v1127 = vpop.permute.xlu0 %1126
        %1128 = vrot.lane.b32.xlu0 %v805, 64
        %v1129 = vpop.permute.xlu0 %1128
        %1130 = vrot.lane.b32.xlu0 %v806, 64
        %v1131 = vpop.permute.xlu0 %1130
        %1132 = vrot.lane.b32.xlu0 %v803, 32
        %v1133 = vpop.permute.xlu0 %1132
        %1134 = vrot.lane.b32.xlu0 %v804, 32
        %v1135 = vpop.permute.xlu0 %1134
        %1136 = vrot.lane.b32.xlu0 %v805, 32
        %v1137 = vpop.permute.xlu0 %1136
        %1138 = vrot.lane.b32.xlu0 %v806, 32
        %v1139 = vpop.permute.xlu0 %1138
        %1144 = vrot.lane.b32.xlu0 %v807, 96
        %v1145 = vpop.permute.xlu0 %1144
        %1146 = vrot.lane.b32.xlu0 %v808, 96
        %v1147 = vpop.permute.xlu0 %1146
        %1148 = vrot.lane.b32.xlu0 %v809, 96
        %v1149 = vpop.permute.xlu0 %1148
        %1150 = vrot.lane.b32.xlu0 %v810, 96
        %v1151 = vpop.permute.xlu0 %1150
        %1152 = vrot.lane.b32.xlu0 %v807, 64
        %v1153 = vpop.permute.xlu0 %1152
        %1154 = vrot.lane.b32.xlu0 %v808, 64
        %v1155 = vpop.permute.xlu0 %1154
        %1156 = vrot.lane.b32.xlu0 %v809, 64
        %v1157 = vpop.permute.xlu0 %1156
        %1158 = vrot.lane.b32.xlu0 %v810, 64
        %v1159 = vpop.permute.xlu0 %1158
        %1160 = vrot.lane.b32.xlu0 %v807, 32
        %v1161 = vpop.permute.xlu0 %1160
        %1162 = vrot.lane.b32.xlu0 %v808, 32
        %v1163 = vpop.permute.xlu0 %1162
        %1164 = vrot.lane.b32.xlu0 %v809, 32
        %v1165 = vpop.permute.xlu0 %1164
        %1166 = vrot.lane.b32.xlu0 %v810, 32
        %v1167 = vpop.permute.xlu0 %1166
        %v1168 = vrot.slane %v1084, 4
        %vm1169 = vcmask 1047556
        %v1170 = vsel %vm1169, %v1168, %v1080
        %v1172 = vunpack.c.l.s4 1983009808
        %v1173 = vunpack.c.0.s8 %v1172
        %v1174 = vperm.slane %v1170, %v1173
        %v1175 = vrot.slane %v1086, 4
        %v1176 = vsel %vm1169, %v1175, %v1082
        %v1178 = vunpack.c.l.s4 1983009808
        %v1179 = vunpack.c.0.s8 %v1178
        %v1180 = vperm.slane %v1176, %v1179
        %v1181 = vrot.slane %v1180, 4
        %v1182 = vsel %vm1169, %v1181, %v1174
        %v1184 = vunpack.c.l.s4 1934713408
        %v1185 = vunpack.c.0.s8 %v1184
        %v1186 = vperm.slane %v1182, %v1185
        %v1187 = vrot.slane %v1186, 4
        %v1188 = vsel %vm1169, 0, %v1187
        %v1189 = vrot.slane %v1085, 4
        %v1190 = vsel %vm1169, %v1189, %v1081
        %v1192 = vunpack.c.l.s4 1983009808
        %v1193 = vunpack.c.0.s8 %v1192
        %v1194 = vperm.slane %v1190, %v1193
        %v1195 = vrot.slane %v1087, 4
        %v1196 = vsel %vm1169, %v1195, %v1083
        %v1198 = vunpack.c.l.s4 1983009808
        %v1199 = vunpack.c.0.s8 %v1198
        %v1200 = vperm.slane %v1196, %v1199
        %v1201 = vrot.slane %v1200, 4
        %v1202 = vsel %vm1169, %v1201, %v1194
        %v1204 = vunpack.c.l.s4 1934713408
        %v1205 = vunpack.c.0.s8 %v1204
        %v1206 = vperm.slane %v1202, %v1205
        %v1207 = vrot.slane %v1206, 4
        %v1208 = vsel %vm1169, 0, %v1207
        %v1209 = vrot.slane %v1092, 4
        %v1210 = vsel %vm1169, %v1209, %v1088
        %v1212 = vunpack.c.l.s4 1983009808
        %v1213 = vunpack.c.0.s8 %v1212
        %v1214 = vperm.slane %v1210, %v1213
        %v1215 = vrot.slane %v1094, 4
        %v1216 = vsel %vm1169, %v1215, %v1090
        %v1218 = vunpack.c.l.s4 1983009808
        %v1219 = vunpack.c.0.s8 %v1218
        %v1220 = vperm.slane %v1216, %v1219
        %v1221 = vrot.slane %v1220, 4
        %v1222 = vsel %vm1169, %v1221, %v1214
        %v1224 = vunpack.c.l.s4 1934713408
        %v1225 = vunpack.c.0.s8 %v1224
        %v1226 = vperm.slane %v1222, %v1225
        %v1227 = vrot.slane %v1226, 4
        %v1228 = vsel %vm1169, 0, %v1227
        %v1229 = vrot.slane %v1093, 4
        %v1230 = vsel %vm1169, %v1229, %v1089
        %v1232 = vunpack.c.l.s4 1983009808
        %v1233 = vunpack.c.0.s8 %v1232
        %v1234 = vperm.slane %v1230, %v1233
        %v1235 = vrot.slane %v1095, 4
        %v1236 = vsel %vm1169, %v1235, %v1091
        %v1238 = vunpack.c.l.s4 1983009808
        %v1239 = vunpack.c.0.s8 %v1238
        %v1240 = vperm.slane %v1236, %v1239
        %v1241 = vrot.slane %v1240, 4
        %v1242 = vsel %vm1169, %v1241, %v1234
        %v1244 = vunpack.c.l.s4 1934713408
        %v1245 = vunpack.c.0.s8 %v1244
        %v1246 = vperm.slane %v1242, %v1245
        %v1247 = vrot.slane %v1246, 4
        %v1248 = vsel %vm1169, 0, %v1247
        %v1249 = vrot.slane %v1100, 4
        %v1250 = vsel %vm1169, %v1249, %v1096
        %v1252 = vunpack.c.l.s4 1983009808
        %v1253 = vunpack.c.0.s8 %v1252
        %v1254 = vperm.slane %v1250, %v1253
        %v1255 = vrot.slane %v1102, 4
        %v1256 = vsel %vm1169, %v1255, %v1098
        %v1258 = vunpack.c.l.s4 1983009808
        %v1259 = vunpack.c.0.s8 %v1258
        %v1260 = vperm.slane %v1256, %v1259
        %v1261 = vrot.slane %v1260, 4
        %v1262 = vsel %vm1169, %v1261, %v1254
        %v1264 = vunpack.c.l.s4 1934713408
        %v1265 = vunpack.c.0.s8 %v1264
        %v1266 = vperm.slane %v1262, %v1265
        %v1267 = vrot.slane %v1266, 4
        %v1268 = vsel %vm1169, 0, %v1267
        %v1269 = vrot.slane %v1101, 4
        %v1270 = vsel %vm1169, %v1269, %v1097
        %v1272 = vunpack.c.l.s4 1983009808
        %v1273 = vunpack.c.0.s8 %v1272
        %v1274 = vperm.slane %v1270, %v1273
        %v1275 = vrot.slane %v1103, 4
        %v1276 = vsel %vm1169, %v1275, %v1099
        %v1278 = vunpack.c.l.s4 1983009808
        %v1279 = vunpack.c.0.s8 %v1278
        %v1280 = vperm.slane %v1276, %v1279
        %v1281 = vrot.slane %v1280, 4
        %v1282 = vsel %vm1169, %v1281, %v1274
        %v1284 = vunpack.c.l.s4 1934713408
        %v1285 = vunpack.c.0.s8 %v1284
        %v1286 = vperm.slane %v1282, %v1285
        %v1287 = vrot.slane %v1286, 4
        %v1288 = vsel %vm1169, 0, %v1287
        %v1289 = vrot.slane %v1108, 4
        %v1290 = vsel %vm1169, %v1289, %v1104
        %v1292 = vunpack.c.l.s4 1983009808
        %v1293 = vunpack.c.0.s8 %v1292
        %v1294 = vperm.slane %v1290, %v1293
        %v1295 = vrot.slane %v1110, 4
        %v1296 = vsel %vm1169, %v1295, %v1106
        %v1298 = vunpack.c.l.s4 1983009808
        %v1299 = vunpack.c.0.s8 %v1298
        %v1300 = vperm.slane %v1296, %v1299
        %v1301 = vrot.slane %v1300, 4
        %v1302 = vsel %vm1169, %v1301, %v1294
        %v1304 = vunpack.c.l.s4 1934713408
        %v1305 = vunpack.c.0.s8 %v1304
        %v1306 = vperm.slane %v1302, %v1305
        %v1307 = vrot.slane %v1306, 4
        %v1308 = vsel %vm1169, 0, %v1307
        %v1309 = vrot.slane %v1109, 4
        %v1310 = vsel %vm1169, %v1309, %v1105
        %v1312 = vunpack.c.l.s4 1983009808
        %v1313 = vunpack.c.0.s8 %v1312
        %v1314 = vperm.slane %v1310, %v1313
        %v1315 = vrot.slane %v1111, 4
        %v1316 = vsel %vm1169, %v1315, %v1107
        %v1318 = vunpack.c.l.s4 1983009808
        %v1319 = vunpack.c.0.s8 %v1318
        %v1320 = vperm.slane %v1316, %v1319
        %v1321 = vrot.slane %v1320, 4
        %v1322 = vsel %vm1169, %v1321, %v1314
        %v1324 = vunpack.c.l.s4 1934713408
        %v1325 = vunpack.c.0.s8 %v1324
        %v1326 = vperm.slane %v1322, %v1325
        %v1327 = vrot.slane %v1326, 4
        %v1328 = vsel %vm1169, 0, %v1327
        %v1331 = vpack.i.b16 %v1206, %v1186
        %v1332 = vshrl.u32 %v1186, 16
        %v1333 = vshrl.u32 %v1206, 16
        %v1334 = vpack.i.b16 %v1333, %v1332
        %v1337 = vpack.i.b16 %v1208, %v1188
        %v1338 = vshrl.u32 %v1188, 16
        %v1339 = vshrl.u32 %v1208, 16
        %v1340 = vpack.i.b16 %v1339, %v1338
        %v1343 = vpack.i.b16 %v1246, %v1226
        %v1344 = vshrl.u32 %v1226, 16
        %v1345 = vshrl.u32 %v1246, 16
        %v1346 = vpack.i.b16 %v1345, %v1344
        %v1349 = vpack.i.b16 %v1248, %v1228
        %v1350 = vshrl.u32 %v1228, 16
        %v1351 = vshrl.u32 %v1248, 16
        %v1352 = vpack.i.b16 %v1351, %v1350
        %v1355 = vpack.i.b16 %v1286, %v1266
        %v1356 = vshrl.u32 %v1266, 16
        %v1357 = vshrl.u32 %v1286, 16
        %v1358 = vpack.i.b16 %v1357, %v1356
        %v1361 = vpack.i.b16 %v1288, %v1268
        %v1362 = vshrl.u32 %v1268, 16
        %v1363 = vshrl.u32 %v1288, 16
        %v1364 = vpack.i.b16 %v1363, %v1362
        %v1367 = vpack.i.b16 %v1326, %v1306
        %v1368 = vshrl.u32 %v1306, 16
        %v1369 = vshrl.u32 %v1326, 16
        %v1370 = vpack.i.b16 %v1369, %v1368
        %v1373 = vpack.i.b16 %v1328, %v1308
        %v1374 = vshrl.u32 %v1308, 16
        %v1375 = vshrl.u32 %v1328, 16
        %v1376 = vpack.i.b16 %v1375, %v1374
        %v1377 = vunpack.c.l.b16 %v803
        %v1378 = vunpack.c.l.b16 %v804
        %v1379 = vunpack.c.l.b16 %v805
        %v1380 = vunpack.c.l.b16 %v806
        %v1381 = vunpack.c.l.b16 %v1117
        %v1382 = vunpack.c.l.b16 %v1119
        %v1383 = vunpack.c.l.b16 %v1121
        %v1384 = vunpack.c.l.b16 %v1123
        %v1385 = vunpack.c.l.b16 %v1125
        %v1386 = vunpack.c.l.b16 %v1127
        %v1387 = vunpack.c.l.b16 %v1129
        %v1388 = vunpack.c.l.b16 %v1131
        %v1389 = vunpack.c.l.b16 %v1133
        %v1390 = vunpack.c.l.b16 %v1135
        %v1391 = vunpack.c.l.b16 %v1137
        %v1392 = vunpack.c.l.b16 %v1139
        %v1393 = vpack.c.b16 %v1378, %v1377
        %v1394 = vpack.c.b16 %v1380, %v1379
        %v1395 = vpack.c.b16 %v1382, %v1381
        %v1396 = vpack.c.b16 %v1384, %v1383
        %v1397 = vpack.c.b16 %v1386, %v1385
        %v1398 = vpack.c.b16 %v1388, %v1387
        %v1399 = vpack.c.b16 %v1390, %v1389
        %v1400 = vpack.c.b16 %v1392, %v1391
        %1409 = vxpose.xlu0.c.b16.start [1/8] %v1393, 128
        %1410 = vxpose.xlu0.c.b16.cont [2/8] %v1394, 128
        %1411 = vxpose.xlu0.c.b16.cont [3/8] 0, 128
        %1412 = vxpose.xlu0.c.b16.cont [4/8] 0, 128
        %1413 = vxpose.xlu0.c.b16.cont [5/8] 0, 128
        %1414 = vxpose.xlu0.c.b16.cont [6/8] 0, 128
        %1415 = vxpose.xlu0.c.b16.cont [7/8] 0, 128
        %1416 = vxpose.xlu0.c.b16.end [8/8] 0, 128
        %v1417 = vpop.trf.xlu0
        %v1418 = vpop.trf.xlu0
        %v1419 = vpop.trf.xlu0
        %v1420 = vpop.trf.xlu0
        %v1421 = vpop.trf.xlu0
        %v1422 = vpop.trf.xlu0
        %v1423 = vpop.trf.xlu0
        %v1424 = vpop.trf.xlu0
        %1425 = vxpose.xlu0.c.b16.start [1/8] %v1395, 128
        %1426 = vxpose.xlu0.c.b16.cont [2/8] %v1396, 128
        %1427 = vxpose.xlu0.c.b16.cont [3/8] 0, 128
        %1428 = vxpose.xlu0.c.b16.cont [4/8] 0, 128
        %1429 = vxpose.xlu0.c.b16.cont [5/8] 0, 128
        %1430 = vxpose.xlu0.c.b16.cont [6/8] 0, 128
        %1431 = vxpose.xlu0.c.b16.cont [7/8] 0, 128
        %1432 = vxpose.xlu0.c.b16.end [8/8] 0, 128
        %v1433 = vpop.trf.xlu0
        %v1434 = vpop.trf.xlu0
        %v1435 = vpop.trf.xlu0
        %v1436 = vpop.trf.xlu0
        %v1437 = vpop.trf.xlu0
        %v1438 = vpop.trf.xlu0
        %v1439 = vpop.trf.xlu0
        %v1440 = vpop.trf.xlu0
        %1441 = vxpose.xlu0.c.b16.start [1/8] %v1397, 128
        %1442 = vxpose.xlu0.c.b16.cont [2/8] %v1398, 128
        %1443 = vxpose.xlu0.c.b16.cont [3/8] 0, 128
        %1444 = vxpose.xlu0.c.b16.cont [4/8] 0, 128
        %1445 = vxpose.xlu0.c.b16.cont [5/8] 0, 128
        %1446 = vxpose.xlu0.c.b16.cont [6/8] 0, 128
        %1447 = vxpose.xlu0.c.b16.cont [7/8] 0, 128
        %1448 = vxpose.xlu0.c.b16.end [8/8] 0, 128
        %v1449 = vpop.trf.xlu0
        %v1450 = vpop.trf.xlu0
        %v1451 = vpop.trf.xlu0
        %v1452 = vpop.trf.xlu0
        %v1453 = vpop.trf.xlu0
        %v1454 = vpop.trf.xlu0
        %v1455 = vpop.trf.xlu0
        %v1456 = vpop.trf.xlu0
        %1457 = vxpose.xlu0.c.b16.start [1/8] %v1399, 128
        %1458 = vxpose.xlu0.c.b16.cont [2/8] %v1400, 128
        %1459 = vxpose.xlu0.c.b16.cont [3/8] 0, 128
        %1460 = vxpose.xlu0.c.b16.cont [4/8] 0, 128
        %1461 = vxpose.xlu0.c.b16.cont [5/8] 0, 128
        %1462 = vxpose.xlu0.c.b16.cont [6/8] 0, 128
        %1463 = vxpose.xlu0.c.b16.cont [7/8] 0, 128
        %1464 = vxpose.xlu0.c.b16.end [8/8] 0, 128
        %v1465 = vpop.trf.xlu0
        %v1466 = vpop.trf.xlu0
        %v1467 = vpop.trf.xlu0
        %v1468 = vpop.trf.xlu0
        %v1469 = vpop.trf.xlu0
        %v1470 = vpop.trf.xlu0
        %v1471 = vpop.trf.xlu0
        %v1472 = vpop.trf.xlu0
        %v1473 = vunpack.c.l.b16 %v1331
        %v1474 = vunpack.c.l.b16 %v1343
        %v1475 = vunpack.c.l.b16 %v1355
        %v1476 = vunpack.c.l.b16 %v1367
        %v1477 = vpack.c.b16 %v1474, %v1473
        %v1478 = vpack.c.b16 %v1476, %v1475
        %vm1479 = vcmask 261120
        %v1481 = vsel %vm1479, %v1477, 0
        %v1484 = vsel %vm1479, %v1478, 0
        %1486 = vmatpush.bf16.msra.mxu0 0
        %1487 = vmatpush.bf16.msra.mxu0 0
        %1488 = vmatpush.bf16.msra.mxu0 0
        %1489 = vmatpush.bf16.msra.mxu0 0
        %1490 = vmatpush.bf16.msra.mxu0 0
        %1491 = vmatpush.bf16.msra.mxu0 0
        %1492 = vmatpush.bf16.msra.mxu0 %v1418
        %1493 = vmatpush.bf16.msra.mxu0 %v1417
        %1494 = vmatmul.bf16.gmra.mxu0 %v1481
        %v1495 = vpop.f32.mrf.mxu0
        %v1496 = vadd.f32 0.0, %v1495
        %v1497 = vpop.f32.mrf.mxu0
        %v1498 = vadd.f32 0.0, %v1497
        %1499 = vmatmul.bf16.gmra.mxu0 %v1484
        %v1500 = vpop.f32.mrf.mxu0
        %v1501 = vadd.f32 0.0, %v1500
        %v1502 = vpop.f32.mrf.mxu0
        %v1503 = vadd.f32 0.0, %v1502
        %1504 = vdwg.mxu0
        %v1505 = vunpack.c.l.b16 %v1334
        %v1506 = vunpack.c.l.b16 %v1346
        %v1507 = vunpack.c.l.b16 %v1358
        %v1508 = vunpack.c.l.b16 %v1370
        %v1509 = vpack.c.b16 %v1506, %v1505
        %v1510 = vpack.c.b16 %v1508, %v1507
        %v1512 = vsel %vm1479, %v1509, 0
        %v1515 = vsel %vm1479, %v1510, 0
        %1517 = vmatpush.bf16.msra.mxu0 0
        %1518 = vmatpush.bf16.msra.mxu0 0
        %1519 = vmatpush.bf16.msra.mxu0 0
        %1520 = vmatpush.bf16.msra.mxu0 0
        %1521 = vmatpush.bf16.msra.mxu0 0
        %1522 = vmatpush.bf16.msra.mxu0 0
        %1523 = vmatpush.bf16.msra.mxu0 %v1434
        %1524 = vmatpush.bf16.msra.mxu0 %v1433
        %1525 = vmatmul.bf16.gmra.mxu0 %v1512
        %v1526 = vpop.f32.mrf.mxu0
        %v1527 = vadd.f32 0.0, %v1526
        %v1528 = vpop.f32.mrf.mxu0
        %v1529 = vadd.f32 0.0, %v1528
        %1530 = vmatmul.bf16.gmra.mxu0 %v1515
        %v1531 = vpop.f32.mrf.mxu0
        %v1532 = vadd.f32 0.0, %v1531
        %v1533 = vpop.f32.mrf.mxu0
        %v1534 = vadd.f32 0.0, %v1533
        %1535 = vdwg.mxu0
        %v1536 = vunpack.c.l.b16 %v1337
        %v1537 = vunpack.c.l.b16 %v1349
        %v1538 = vunpack.c.l.b16 %v1361
        %v1539 = vunpack.c.l.b16 %v1373
        %v1540 = vpack.c.b16 %v1537, %v1536
        %v1541 = vpack.c.b16 %v1539, %v1538
        %v1543 = vsel %vm1479, %v1540, 0
        %v1546 = vsel %vm1479, %v1541, 0
        %1548 = vmatpush.bf16.msra.mxu0 0
        %1549 = vmatpush.bf16.msra.mxu0 0
        %1550 = vmatpush.bf16.msra.mxu0 0
        %1551 = vmatpush.bf16.msra.mxu0 0
        %1552 = vmatpush.bf16.msra.mxu0 0
        %1553 = vmatpush.bf16.msra.mxu0 0
        %1554 = vmatpush.bf16.msra.mxu0 %v1450
        %1555 = vmatpush.bf16.msra.mxu0 %v1449
        %1556 = vmatmul.bf16.gmra.mxu0 %v1543
        %v1557 = vpop.f32.mrf.mxu0
        %v1558 = vadd.f32 0.0, %v1557
        %v1559 = vpop.f32.mrf.mxu0
        %v1560 = vadd.f32 0.0, %v1559
        %1561 = vmatmul.bf16.gmra.mxu0 %v1546
        %v1562 = vpop.f32.mrf.mxu0
        %v1563 = vadd.f32 0.0, %v1562
        %v1564 = vpop.f32.mrf.mxu0
        %v1565 = vadd.f32 0.0, %v1564
        %1566 = vdwg.mxu0
        %v1567 = vunpack.c.l.b16 %v1340
        %v1568 = vunpack.c.l.b16 %v1352
        %v1569 = vunpack.c.l.b16 %v1364
        %v1570 = vunpack.c.l.b16 %v1376
        %v1571 = vpack.c.b16 %v1568, %v1567
        %v1572 = vpack.c.b16 %v1570, %v1569
        %v1574 = vsel %vm1479, %v1571, 0
        %v1577 = vsel %vm1479, %v1572, 0
        %1579 = vmatpush.bf16.msra.mxu0 0
        %1580 = vmatpush.bf16.msra.mxu0 0
        %1581 = vmatpush.bf16.msra.mxu0 0
        %1582 = vmatpush.bf16.msra.mxu0 0
        %1583 = vmatpush.bf16.msra.mxu0 0
        %1584 = vmatpush.bf16.msra.mxu0 0
        %1585 = vmatpush.bf16.msra.mxu0 %v1466
        %1586 = vmatpush.bf16.msra.mxu0 %v1465
        %1587 = vmatmul.bf16.gmra.mxu0 %v1574
        %v1588 = vpop.f32.mrf.mxu0
        %v1589 = vadd.f32 0.0, %v1588
        %v1590 = vpop.f32.mrf.mxu0
        %v1591 = vadd.f32 0.0, %v1590
        %1592 = vmatmul.bf16.gmra.mxu0 %v1577
        %v1593 = vpop.f32.mrf.mxu0
        %v1594 = vadd.f32 0.0, %v1593
        %v1595 = vpop.f32.mrf.mxu0
        %v1596 = vadd.f32 0.0, %v1595
        %1597 = vdwg.mxu0
        %v1598 = vsel %vm1479, %v1496, -inf
        %1599 = vmax.xlane.f32.xlu0 %v1598
        %v1600 = vpop.xlane.xlu0 %1599
        %v1601 = vsel %vm1479, %v1498, -inf
        %1602 = vmax.xlane.f32.xlu0 %v1601
        %v1603 = vpop.xlane.xlu0 %1602
        %v1604 = vsel %vm1479, %v1501, -inf
        %1605 = vmax.xlane.f32.xlu0 %v1604
        %v1606 = vpop.xlane.xlu0 %1605
        %v1607 = vsel %vm1479, %v1503, -inf
        %1608 = vmax.xlane.f32.xlu0 %v1607
        %v1609 = vpop.xlane.xlu0 %1608
        %v1610 = vsel %vm1479, %v1527, -inf
        %1611 = vmax.xlane.f32.xlu0 %v1610
        %v1612 = vpop.xlane.xlu0 %1611
        %v1613 = vsel %vm1479, %v1529, -inf
        %1614 = vmax.xlane.f32.xlu0 %v1613
        %v1615 = vpop.xlane.xlu0 %1614
        %v1616 = vsel %vm1479, %v1532, -inf
        %1617 = vmax.xlane.f32.xlu0 %v1616
        %v1618 = vpop.xlane.xlu0 %1617
        %v1619 = vsel %vm1479, %v1534, -inf
        %1620 = vmax.xlane.f32.xlu0 %v1619
        %v1621 = vpop.xlane.xlu0 %1620
        %v1622 = vsel %vm1479, %v1558, -inf
        %1623 = vmax.xlane.f32.xlu0 %v1622
        %v1624 = vpop.xlane.xlu0 %1623
        %v1625 = vsel %vm1479, %v1560, -inf
        %1626 = vmax.xlane.f32.xlu0 %v1625
        %v1627 = vpop.xlane.xlu0 %1626
        %v1628 = vsel %vm1479, %v1563, -inf
        %1629 = vmax.xlane.f32.xlu0 %v1628
        %v1630 = vpop.xlane.xlu0 %1629
        %v1631 = vsel %vm1479, %v1565, -inf
        %1632 = vmax.xlane.f32.xlu0 %v1631
        %v1633 = vpop.xlane.xlu0 %1632
        %v1634 = vsel %vm1479, %v1589, -inf
        %1635 = vmax.xlane.f32.xlu0 %v1634
        %v1636 = vpop.xlane.xlu0 %1635
        %v1637 = vsel %vm1479, %v1591, -inf
        %1638 = vmax.xlane.f32.xlu0 %v1637
        %v1639 = vpop.xlane.xlu0 %1638
        %v1640 = vsel %vm1479, %v1594, -inf
        %1641 = vmax.xlane.f32.xlu0 %v1640
        %v1642 = vpop.xlane.xlu0 %1641
        %v1643 = vsel %vm1479, %v1596, -inf
        %1644 = vmax.xlane.f32.xlu0 %v1643
        %v1645 = vpop.xlane.xlu0 %1644
        %v1646 = vsub.f32 %v1496, %v1600
        %v1647 = vsub.f32 %v1498, %v1603
        %v1648 = vsub.f32 %v1501, %v1606
        %v1649 = vsub.f32 %v1503, %v1609
        %v1650 = vsub.f32 %v1527, %v1612
        %v1651 = vsub.f32 %v1529, %v1615
        %v1652 = vsub.f32 %v1532, %v1618
        %v1653 = vsub.f32 %v1534, %v1621
        %v1654 = vsub.f32 %v1558, %v1624
        %v1655 = vsub.f32 %v1560, %v1627
        %v1656 = vsub.f32 %v1563, %v1630
        %v1657 = vsub.f32 %v1565, %v1633
        %v1658 = vsub.f32 %v1589, %v1636
        %v1659 = vsub.f32 %v1591, %v1639
        %v1660 = vsub.f32 %v1594, %v1642
        %v1661 = vsub.f32 %v1596, %v1645
        %v1662 = vmul.f32 %v1646, 1.442695
        %v1663 = vpow.pop %v1662
        %v1664 = vmul.f32 %v1647, 1.442695
        %v1665 = vpow.pop %v1664
        %v1666 = vmul.f32 %v1648, 1.442695
        %v1667 = vpow.pop %v1666
        %v1668 = vmul.f32 %v1649, 1.442695
        %v1669 = vpow.pop %v1668
        %v1670 = vmul.f32 %v1650, 1.442695
        %v1671 = vpow.pop %v1670
        %v1672 = vmul.f32 %v1651, 1.442695
        %v1673 = vpow.pop %v1672
        %v1674 = vmul.f32 %v1652, 1.442695
        %v1675 = vpow.pop %v1674
        %v1676 = vmul.f32 %v1653, 1.442695
        %v1677 = vpow.pop %v1676
        %v1678 = vmul.f32 %v1654, 1.442695
        %v1679 = vpow.pop %v1678
        %v1680 = vmul.f32 %v1655, 1.442695
        %v1681 = vpow.pop %v1680
        %v1682 = vmul.f32 %v1656, 1.442695
        %v1683 = vpow.pop %v1682
        %v1684 = vmul.f32 %v1657, 1.442695
        %v1685 = vpow.pop %v1684
        %v1686 = vmul.f32 %v1658, 1.442695
        %v1687 = vpow.pop %v1686
        %v1688 = vmul.f32 %v1659, 1.442695
        %v1689 = vpow.pop %v1688
        %v1690 = vmul.f32 %v1660, 1.442695
        %v1691 = vpow.pop %v1690
        %v1692 = vmul.f32 %v1661, 1.442695
        %v1693 = vpow.pop %v1692
        %v1694 = vsel %vm1479, %v1663, 0.0
        %1695 = vadd.xlane.f32.xlu0 %v1694
        %v1696 = vpop.xlane.xlu0 %1695
        %v1697 = vsel %vm1479, %v1665, 0.0
        %1698 = vadd.xlane.f32.xlu0 %v1697
        %v1699 = vpop.xlane.xlu0 %1698
        %v1700 = vsel %vm1479, %v1667, 0.0
        %1701 = vadd.xlane.f32.xlu0 %v1700
        %v1702 = vpop.xlane.xlu0 %1701
        %v1703 = vsel %vm1479, %v1669, 0.0
        %1704 = vadd.xlane.f32.xlu0 %v1703
        %v1705 = vpop.xlane.xlu0 %1704
        %v1706 = vsel %vm1479, %v1671, 0.0
        %1707 = vadd.xlane.f32.xlu0 %v1706
        %v1708 = vpop.xlane.xlu0 %1707
        %v1709 = vsel %vm1479, %v1673, 0.0
        %1710 = vadd.xlane.f32.xlu0 %v1709
        %v1711 = vpop.xlane.xlu0 %1710
        %v1712 = vsel %vm1479, %v1675, 0.0
        %1713 = vadd.xlane.f32.xlu0 %v1712
        %v1714 = vpop.xlane.xlu0 %1713
        %v1715 = vsel %vm1479, %v1677, 0.0
        %1716 = vadd.xlane.f32.xlu0 %v1715
        %v1717 = vpop.xlane.xlu0 %1716
        %v1718 = vsel %vm1479, %v1679, 0.0
        %1719 = vadd.xlane.f32.xlu0 %v1718
        %v1720 = vpop.xlane.xlu0 %1719
        %v1721 = vsel %vm1479, %v1681, 0.0
        %1722 = vadd.xlane.f32.xlu0 %v1721
        %v1723 = vpop.xlane.xlu0 %1722
        %v1724 = vsel %vm1479, %v1683, 0.0
        %1725 = vadd.xlane.f32.xlu0 %v1724
        %v1726 = vpop.xlane.xlu0 %1725
        %v1727 = vsel %vm1479, %v1685, 0.0
        %1728 = vadd.xlane.f32.xlu0 %v1727
        %v1729 = vpop.xlane.xlu0 %1728
        %v1730 = vsel %vm1479, %v1687, 0.0
        %1731 = vadd.xlane.f32.xlu0 %v1730
        %v1732 = vpop.xlane.xlu0 %1731
        %v1733 = vsel %vm1479, %v1689, 0.0
        %1734 = vadd.xlane.f32.xlu0 %v1733
        %v1735 = vpop.xlane.xlu0 %1734
        %v1736 = vsel %vm1479, %v1691, 0.0
        %1737 = vadd.xlane.f32.xlu0 %v1736
        %v1738 = vpop.xlane.xlu0 %1737
        %v1739 = vsel %vm1479, %v1693, 0.0
        %1740 = vadd.xlane.f32.xlu0 %v1739
        %v1741 = vpop.xlane.xlu0 %1740
        %v1742 = vrcp.pop %v1696
        %v1743 = vrcp.pop %v1699
        %v1744 = vrcp.pop %v1702
        %v1745 = vrcp.pop %v1705
        %v1746 = vrcp.pop %v1708
        %v1747 = vrcp.pop %v1711
        %v1748 = vrcp.pop %v1714
        %v1749 = vrcp.pop %v1717
        %v1750 = vrcp.pop %v1720
        %v1751 = vrcp.pop %v1723
        %v1752 = vrcp.pop %v1726
        %v1753 = vrcp.pop %v1729
        %v1754 = vrcp.pop %v1732
        %v1755 = vrcp.pop %v1735
        %v1756 = vrcp.pop %v1738
        %v1757 = vrcp.pop %v1741
        %v1758 = vmul.f32 %v1663, %v1742
        %v1759 = vmul.f32 %v1665, %v1743
        %v1760 = vmul.f32 %v1667, %v1744
        %v1761 = vmul.f32 %v1669, %v1745
        %v1762 = vmul.f32 %v1671, %v1746
        %v1763 = vmul.f32 %v1673, %v1747
        %v1764 = vmul.f32 %v1675, %v1748
        %v1765 = vmul.f32 %v1677, %v1749
        %v1766 = vmul.f32 %v1679, %v1750
        %v1767 = vmul.f32 %v1681, %v1751
        %v1768 = vmul.f32 %v1683, %v1752
        %v1769 = vmul.f32 %v1685, %v1753
        %v1770 = vmul.f32 %v1687, %v1754
        %v1771 = vmul.f32 %v1689, %v1755
        %v1772 = vmul.f32 %v1691, %v1756
        %v1773 = vmul.f32 %v1693, %v1757
        %v1774 = vpack.c.bf16 %v1758, %v1758
        %v1775 = vpack.c.bf16 %v1759, %v1759
        %v1776 = vpack.c.bf16 %v1760, %v1760
        %v1777 = vpack.c.bf16 %v1761, %v1761
        %v1778 = vpack.c.bf16 %v1762, %v1762
        %v1779 = vpack.c.bf16 %v1763, %v1763
        %v1780 = vpack.c.bf16 %v1764, %v1764
        %v1781 = vpack.c.bf16 %v1765, %v1765
        %v1782 = vpack.c.bf16 %v1766, %v1766
        %v1783 = vpack.c.bf16 %v1767, %v1767
        %v1784 = vpack.c.bf16 %v1768, %v1768
        %v1785 = vpack.c.bf16 %v1769, %v1769
        %v1786 = vpack.c.bf16 %v1770, %v1770
        %v1787 = vpack.c.bf16 %v1771, %v1771
        %v1788 = vpack.c.bf16 %v1772, %v1772
        %v1789 = vpack.c.bf16 %v1773, %v1773
        %v1790 = vunpack.c.l.b16 %v807
        %v1791 = vunpack.c.l.b16 %v808
        %v1792 = vunpack.c.l.b16 %v809
        %v1793 = vunpack.c.l.b16 %v810
        %v1794 = vunpack.c.l.b16 %v1145
        %v1795 = vunpack.c.l.b16 %v1147
        %v1796 = vunpack.c.l.b16 %v1149
        %v1797 = vunpack.c.l.b16 %v1151
        %v1798 = vunpack.c.l.b16 %v1153
        %v1799 = vunpack.c.l.b16 %v1155
        %v1800 = vunpack.c.l.b16 %v1157
        %v1801 = vunpack.c.l.b16 %v1159
        %v1802 = vunpack.c.l.b16 %v1161
        %v1803 = vunpack.c.l.b16 %v1163
        %v1804 = vunpack.c.l.b16 %v1165
        %v1805 = vunpack.c.l.b16 %v1167
        %v1806 = vpack.c.b16 %v1791, %v1790
        %v1807 = vpack.c.b16 %v1793, %v1792
        %v1808 = vpack.c.b16 %v1795, %v1794
        %v1809 = vpack.c.b16 %v1797, %v1796
        %v1810 = vpack.c.b16 %v1799, %v1798
        %v1811 = vpack.c.b16 %v1801, %v1800
        %v1812 = vpack.c.b16 %v1803, %v1802
        %v1813 = vpack.c.b16 %v1805, %v1804
        %1822 = vxpose.xlu0.c.b16.start [1/8] %v1806, 128
        %1823 = vxpose.xlu0.c.b16.cont [2/8] %v1807, 128
        %1824 = vxpose.xlu0.c.b16.cont [3/8] 0, 128
        %1825 = vxpose.xlu0.c.b16.cont [4/8] 0, 128
        %1826 = vxpose.xlu0.c.b16.cont [5/8] 0, 128
        %1827 = vxpose.xlu0.c.b16.cont [6/8] 0, 128
        %1828 = vxpose.xlu0.c.b16.cont [7/8] 0, 128
        %1829 = vxpose.xlu0.c.b16.end [8/8] 0, 128
        %v1830 = vpop.trf.xlu0
        %v1831 = vpop.trf.xlu0
        %v1832 = vpop.trf.xlu0
        %v1833 = vpop.trf.xlu0
        %v1834 = vpop.trf.xlu0
        %v1835 = vpop.trf.xlu0
        %v1836 = vpop.trf.xlu0
        %v1837 = vpop.trf.xlu0
        %1838 = vxpose.xlu0.c.b16.start [1/8] %v1808, 128
        %1839 = vxpose.xlu0.c.b16.cont [2/8] %v1809, 128
        %1840 = vxpose.xlu0.c.b16.cont [3/8] 0, 128
        %1841 = vxpose.xlu0.c.b16.cont [4/8] 0, 128
        %1842 = vxpose.xlu0.c.b16.cont [5/8] 0, 128
        %1843 = vxpose.xlu0.c.b16.cont [6/8] 0, 128
        %1844 = vxpose.xlu0.c.b16.cont [7/8] 0, 128
        %1845 = vxpose.xlu0.c.b16.end [8/8] 0, 128
        %v1846 = vpop.trf.xlu0
        %v1847 = vpop.trf.xlu0
        %v1848 = vpop.trf.xlu0
        %v1849 = vpop.trf.xlu0
        %v1850 = vpop.trf.xlu0
        %v1851 = vpop.trf.xlu0
        %v1852 = vpop.trf.xlu0
        %v1853 = vpop.trf.xlu0
        %1854 = vxpose.xlu0.c.b16.start [1/8] %v1810, 128
        %1855 = vxpose.xlu0.c.b16.cont [2/8] %v1811, 128
        %1856 = vxpose.xlu0.c.b16.cont [3/8] 0, 128
        %1857 = vxpose.xlu0.c.b16.cont [4/8] 0, 128
        %1858 = vxpose.xlu0.c.b16.cont [5/8] 0, 128
        %1859 = vxpose.xlu0.c.b16.cont [6/8] 0, 128
        %1860 = vxpose.xlu0.c.b16.cont [7/8] 0, 128
        %1861 = vxpose.xlu0.c.b16.end [8/8] 0, 128
        %v1862 = vpop.trf.xlu0
        %v1863 = vpop.trf.xlu0
        %v1864 = vpop.trf.xlu0
        %v1865 = vpop.trf.xlu0
        %v1866 = vpop.trf.xlu0
        %v1867 = vpop.trf.xlu0
        %v1868 = vpop.trf.xlu0
        %v1869 = vpop.trf.xlu0
        %1870 = vxpose.xlu0.c.b16.start [1/8] %v1812, 128
        %1871 = vxpose.xlu0.c.b16.cont [2/8] %v1813, 128
        %1872 = vxpose.xlu0.c.b16.cont [3/8] 0, 128
        %1873 = vxpose.xlu0.c.b16.cont [4/8] 0, 128
        %1874 = vxpose.xlu0.c.b16.cont [5/8] 0, 128
        %1875 = vxpose.xlu0.c.b16.cont [6/8] 0, 128
        %1876 = vxpose.xlu0.c.b16.cont [7/8] 0, 128
        %1877 = vxpose.xlu0.c.b16.end [8/8] 0, 128
        %v1878 = vpop.trf.xlu0
        %v1879 = vpop.trf.xlu0
        %v1880 = vpop.trf.xlu0
        %v1881 = vpop.trf.xlu0
        %v1882 = vpop.trf.xlu0
        %v1883 = vpop.trf.xlu0
        %v1884 = vpop.trf.xlu0
        %v1885 = vpop.trf.xlu0
        %v1890 = vunpack.c.l.b16 %v1774
        %v1891 = vunpack.c.l.b16 %v1775
        %v1892 = vunpack.c.l.b16 %v1776
        %v1893 = vunpack.c.l.b16 %v1777
        %v1894 = vpack.c.b16 %v1891, %v1890
        %v1895 = vpack.c.b16 %v1893, %v1892
        %v1897 = vsel %vm1479, %v1830, 0
        %v1900 = vsel %vm1479, %v1831, 0
        %v1903 = vsel %vm1479, %v1894, 0
        %v1906 = vsel %vm1479, %v1895, 0
        %1908 = vmatpush.bf16.xpose.msra.mxu0 0
        %1909 = vmatpush.bf16.xpose.msra.mxu0 0
        %1910 = vmatpush.bf16.xpose.msra.mxu0 0
        %1911 = vmatpush.bf16.xpose.msra.mxu0 0
        %1912 = vmatpush.bf16.xpose.msra.mxu0 0
        %1913 = vmatpush.bf16.xpose.msra.mxu0 0
        %1914 = vmatpush.bf16.xpose.msra.mxu0 %v1906
        %1915 = vmatpush.bf16.xpose.msra.mxu0 %v1903
        %1916 = vmatmul.bf16.gmra.mxu0 %v1897
        %v1917 = vpop.f32.mrf.mxu0
        %v1918 = vadd.f32 0.0, %v1917
        %v1919 = vpop.f32.mrf.mxu0
        %v1920 = vadd.f32 0.0, %v1919
        %1921 = vmatmul.bf16.gmra.mxu0 %v1900
        %v1922 = vpop.f32.mrf.mxu0
        %v1923 = vadd.f32 0.0, %v1922
        %v1924 = vpop.f32.mrf.mxu0
        %v1925 = vadd.f32 0.0, %v1924
        %1926 = vdwg.mxu0
        %v1931 = vunpack.c.l.b16 %v1778
        %v1932 = vunpack.c.l.b16 %v1779
        %v1933 = vunpack.c.l.b16 %v1780
        %v1934 = vunpack.c.l.b16 %v1781
        %v1935 = vpack.c.b16 %v1932, %v1931
        %v1936 = vpack.c.b16 %v1934, %v1933
        %v1938 = vsel %vm1479, %v1846, 0
        %v1941 = vsel %vm1479, %v1847, 0
        %v1944 = vsel %vm1479, %v1935, 0
        %v1947 = vsel %vm1479, %v1936, 0
        %1949 = vmatpush.bf16.xpose.msra.mxu0 0
        %1950 = vmatpush.bf16.xpose.msra.mxu0 0
        %1951 = vmatpush.bf16.xpose.msra.mxu0 0
        %1952 = vmatpush.bf16.xpose.msra.mxu0 0
        %1953 = vmatpush.bf16.xpose.msra.mxu0 0
        %1954 = vmatpush.bf16.xpose.msra.mxu0 0
        %1955 = vmatpush.bf16.xpose.msra.mxu0 %v1947
        %1956 = vmatpush.bf16.xpose.msra.mxu0 %v1944
        %1957 = vmatmul.bf16.gmra.mxu0 %v1938
        %v1958 = vpop.f32.mrf.mxu0
        %v1959 = vadd.f32 0.0, %v1958
        %v1960 = vpop.f32.mrf.mxu0
        %v1961 = vadd.f32 0.0, %v1960
        %1962 = vmatmul.bf16.gmra.mxu0 %v1941
        %v1963 = vpop.f32.mrf.mxu0
        %v1964 = vadd.f32 0.0, %v1963
        %v1965 = vpop.f32.mrf.mxu0
        %v1966 = vadd.f32 0.0, %v1965
        %1967 = vdwg.mxu0
        %v1972 = vunpack.c.l.b16 %v1782
        %v1973 = vunpack.c.l.b16 %v1783
        %v1974 = vunpack.c.l.b16 %v1784
        %v1975 = vunpack.c.l.b16 %v1785
        %v1976 = vpack.c.b16 %v1973, %v1972
        %v1977 = vpack.c.b16 %v1975, %v1974
        %v1979 = vsel %vm1479, %v1862, 0
        %v1982 = vsel %vm1479, %v1863, 0
        %v1985 = vsel %vm1479, %v1976, 0
        %v1988 = vsel %vm1479, %v1977, 0
        %1990 = vmatpush.bf16.xpose.msra.mxu0 0
        %1991 = vmatpush.bf16.xpose.msra.mxu0 0
        %1992 = vmatpush.bf16.xpose.msra.mxu0 0
        %1993 = vmatpush.bf16.xpose.msra.mxu0 0
        %1994 = vmatpush.bf16.xpose.msra.mxu0 0
        %1995 = vmatpush.bf16.xpose.msra.mxu0 0
        %1996 = vmatpush.bf16.xpose.msra.mxu0 %v1988
        %1997 = vmatpush.bf16.xpose.msra.mxu0 %v1985
        %1998 = vmatmul.bf16.gmra.mxu0 %v1979
        %v1999 = vpop.f32.mrf.mxu0
        %v2000 = vadd.f32 0.0, %v1999
        %v2001 = vpop.f32.mrf.mxu0
        %v2002 = vadd.f32 0.0, %v2001
        %2003 = vmatmul.bf16.gmra.mxu0 %v1982
        %v2004 = vpop.f32.mrf.mxu0
        %v2005 = vadd.f32 0.0, %v2004
        %v2006 = vpop.f32.mrf.mxu0
        %v2007 = vadd.f32 0.0, %v2006
        %2008 = vdwg.mxu0
        %v2013 = vunpack.c.l.b16 %v1786
        %v2014 = vunpack.c.l.b16 %v1787
        %v2015 = vunpack.c.l.b16 %v1788
        %v2016 = vunpack.c.l.b16 %v1789
        %v2017 = vpack.c.b16 %v2014, %v2013
        %v2018 = vpack.c.b16 %v2016, %v2015
        %v2020 = vsel %vm1479, %v1878, 0
        %v2023 = vsel %vm1479, %v1879, 0
        %v2026 = vsel %vm1479, %v2017, 0
        %v2029 = vsel %vm1479, %v2018, 0
        %2031 = vmatpush.bf16.xpose.msra.mxu0 0
        %2032 = vmatpush.bf16.xpose.msra.mxu0 0
        %2033 = vmatpush.bf16.xpose.msra.mxu0 0
        %2034 = vmatpush.bf16.xpose.msra.mxu0 0
        %2035 = vmatpush.bf16.xpose.msra.mxu0 0
        %2036 = vmatpush.bf16.xpose.msra.mxu0 0
        %2037 = vmatpush.bf16.xpose.msra.mxu0 %v2029
        %2038 = vmatpush.bf16.xpose.msra.mxu0 %v2026
        %2039 = vmatmul.bf16.gmra.mxu0 %v2020
        %v2040 = vpop.f32.mrf.mxu0
        %v2041 = vadd.f32 0.0, %v2040
        %v2042 = vpop.f32.mrf.mxu0
        %v2043 = vadd.f32 0.0, %v2042
        %2044 = vmatmul.bf16.gmra.mxu0 %v2023
        %v2045 = vpop.f32.mrf.mxu0
        %v2046 = vadd.f32 0.0, %v2045
        %v2047 = vpop.f32.mrf.mxu0
        %v2048 = vadd.f32 0.0, %v2047
        %2049 = vdwg.mxu0
        %2050 = vxpose.xlu0.b32.start [1/16] %v1918, 128
        %2051 = vxpose.xlu0.b32.cont [2/16] %v1920, 128
        %2052 = vxpose.xlu0.b32.cont [3/16] %v1923, 128
        %2053 = vxpose.xlu0.b32.cont [4/16] %v1925, 128
        %2054 = vxpose.xlu0.b32.cont [5/16] 0.0, 128
        %2055 = vxpose.xlu0.b32.cont [6/16] 0.0, 128
        %2056 = vxpose.xlu0.b32.cont [7/16] 0.0, 128
        %2057 = vxpose.xlu0.b32.cont [8/16] 0.0, 128
        %2058 = vxpose.xlu0.b32.cont [9/16] 0.0, 128
        %2059 = vxpose.xlu0.b32.cont [10/16] 0.0, 128
        %2060 = vxpose.xlu0.b32.cont [11/16] 0.0, 128
        %2061 = vxpose.xlu0.b32.cont [12/16] 0.0, 128
        %2062 = vxpose.xlu0.b32.cont [13/16] 0.0, 128
        %2063 = vxpose.xlu0.b32.cont [14/16] 0.0, 128
        %2064 = vxpose.xlu0.b32.cont [15/16] 0.0, 128
        %2065 = vxpose.xlu0.b32.end [16/16] 0.0, 128
        %v2066 = vpop.trf.xlu0
        %v2067 = vpop.trf.xlu0
        %v2068 = vpop.trf.xlu0
        %v2069 = vpop.trf.xlu0
        %v2070 = vpop.trf.xlu0
        %v2071 = vpop.trf.xlu0
        %v2072 = vpop.trf.xlu0
        %v2073 = vpop.trf.xlu0
        %v2074 = vpop.trf.xlu0
        %v2075 = vpop.trf.xlu0
        %v2076 = vpop.trf.xlu0
        %v2077 = vpop.trf.xlu0
        %v2078 = vpop.trf.xlu0
        %v2079 = vpop.trf.xlu0
        %v2080 = vpop.trf.xlu0
        %v2081 = vpop.trf.xlu0
        %2082 = vxpose.xlu0.b32.start [1/16] %v1959, 128
        %2083 = vxpose.xlu0.b32.cont [2/16] %v1961, 128
        %2084 = vxpose.xlu0.b32.cont [3/16] %v1964, 128
        %2085 = vxpose.xlu0.b32.cont [4/16] %v1966, 128
        %2086 = vxpose.xlu0.b32.cont [5/16] 0.0, 128
        %2087 = vxpose.xlu0.b32.cont [6/16] 0.0, 128
        %2088 = vxpose.xlu0.b32.cont [7/16] 0.0, 128
        %2089 = vxpose.xlu0.b32.cont [8/16] 0.0, 128
        %2090 = vxpose.xlu0.b32.cont [9/16] 0.0, 128
        %2091 = vxpose.xlu0.b32.cont [10/16] 0.0, 128
        %2092 = vxpose.xlu0.b32.cont [11/16] 0.0, 128
        %2093 = vxpose.xlu0.b32.cont [12/16] 0.0, 128
        %2094 = vxpose.xlu0.b32.cont [13/16] 0.0, 128
        %2095 = vxpose.xlu0.b32.cont [14/16] 0.0, 128
        %2096 = vxpose.xlu0.b32.cont [15/16] 0.0, 128
        %2097 = vxpose.xlu0.b32.end [16/16] 0.0, 128
        %v2098 = vpop.trf.xlu0
        %v2099 = vpop.trf.xlu0
        %v2100 = vpop.trf.xlu0
        %v2101 = vpop.trf.xlu0
        %v2102 = vpop.trf.xlu0
        %v2103 = vpop.trf.xlu0
        %v2104 = vpop.trf.xlu0
        %v2105 = vpop.trf.xlu0
        %v2106 = vpop.trf.xlu0
        %v2107 = vpop.trf.xlu0
        %v2108 = vpop.trf.xlu0
        %v2109 = vpop.trf.xlu0
        %v2110 = vpop.trf.xlu0
        %v2111 = vpop.trf.xlu0
        %v2112 = vpop.trf.xlu0
        %v2113 = vpop.trf.xlu0
        %2114 = vxpose.xlu0.b32.start [1/16] %v2000, 128
        %2115 = vxpose.xlu0.b32.cont [2/16] %v2002, 128
        %2116 = vxpose.xlu0.b32.cont [3/16] %v2005, 128
        %2117 = vxpose.xlu0.b32.cont [4/16] %v2007, 128
        %2118 = vxpose.xlu0.b32.cont [5/16] 0.0, 128
        %2119 = vxpose.xlu0.b32.cont [6/16] 0.0, 128
        %2120 = vxpose.xlu0.b32.cont [7/16] 0.0, 128
        %2121 = vxpose.xlu0.b32.cont [8/16] 0.0, 128
        %2122 = vxpose.xlu0.b32.cont [9/16] 0.0, 128
        %2123 = vxpose.xlu0.b32.cont [10/16] 0.0, 128
        %2124 = vxpose.xlu0.b32.cont [11/16] 0.0, 128
        %2125 = vxpose.xlu0.b32.cont [12/16] 0.0, 128
        %2126 = vxpose.xlu0.b32.cont [13/16] 0.0, 128
        %2127 = vxpose.xlu0.b32.cont [14/16] 0.0, 128
        %2128 = vxpose.xlu0.b32.cont [15/16] 0.0, 128
        %2129 = vxpose.xlu0.b32.end [16/16] 0.0, 128
        %v2130 = vpop.trf.xlu0
        %v2131 = vpop.trf.xlu0
        %v2132 = vpop.trf.xlu0
        %v2133 = vpop.trf.xlu0
        %v2134 = vpop.trf.xlu0
        %v2135 = vpop.trf.xlu0
        %v2136 = vpop.trf.xlu0
        %v2137 = vpop.trf.xlu0
        %v2138 = vpop.trf.xlu0
        %v2139 = vpop.trf.xlu0
        %v2140 = vpop.trf.xlu0
        %v2141 = vpop.trf.xlu0
        %v2142 = vpop.trf.xlu0
        %v2143 = vpop.trf.xlu0
        %v2144 = vpop.trf.xlu0
        %v2145 = vpop.trf.xlu0
        %2146 = vxpose.xlu0.b32.start [1/16] %v2041, 128
        %2147 = vxpose.xlu0.b32.cont [2/16] %v2043, 128
        %2148 = vxpose.xlu0.b32.cont [3/16] %v2046, 128
        %2149 = vxpose.xlu0.b32.cont [4/16] %v2048, 128
        %2150 = vxpose.xlu0.b32.cont [5/16] 0.0, 128
        %2151 = vxpose.xlu0.b32.cont [6/16] 0.0, 128
        %2152 = vxpose.xlu0.b32.cont [7/16] 0.0, 128
        %2153 = vxpose.xlu0.b32.cont [8/16] 0.0, 128
        %2154 = vxpose.xlu0.b32.cont [9/16] 0.0, 128
        %2155 = vxpose.xlu0.b32.cont [10/16] 0.0, 128
        %2156 = vxpose.xlu0.b32.cont [11/16] 0.0, 128
        %2157 = vxpose.xlu0.b32.cont [12/16] 0.0, 128
        %2158 = vxpose.xlu0.b32.cont [13/16] 0.0, 128
        %2159 = vxpose.xlu0.b32.cont [14/16] 0.0, 128
        %2160 = vxpose.xlu0.b32.cont [15/16] 0.0, 128
        %2161 = vxpose.xlu0.b32.end [16/16] 0.0, 128
        %v2162 = vpop.trf.xlu0
        %v2163 = vpop.trf.xlu0
        %v2164 = vpop.trf.xlu0
        %v2165 = vpop.trf.xlu0
        %v2166 = vpop.trf.xlu0
        %v2167 = vpop.trf.xlu0
        %v2168 = vpop.trf.xlu0
        %v2169 = vpop.trf.xlu0
        %v2170 = vpop.trf.xlu0
        %v2171 = vpop.trf.xlu0
        %v2172 = vpop.trf.xlu0
        %v2173 = vpop.trf.xlu0
        %v2174 = vpop.trf.xlu0
        %v2175 = vpop.trf.xlu0
        %v2176 = vpop.trf.xlu0
        %v2177 = vpop.trf.xlu0
        %v2178 = vrot.slane %v2130, 4
        %v2179 = vsel %vm856, %v2178, %v2066
        %v2180 = vrot.slane %v2066, 4
        %v2181 = vsel %vm856, %v2130, %v2180
        %v2183 = vunpack.c.l.s4 1983009808
        %v2184 = vunpack.c.0.s8 %v2183
        %v2185 = vperm.slane %v2179, %v2184
        %v2187 = vunpack.c.l.s4 1983009808
        %v2188 = vunpack.c.0.s8 %v2187
        %v2189 = vperm.slane %v2181, %v2188
        %v2190 = vrot.slane %v2162, 4
        %v2191 = vsel %vm856, %v2190, %v2098
        %v2192 = vrot.slane %v2098, 4
        %v2193 = vsel %vm856, %v2162, %v2192
        %v2195 = vunpack.c.l.s4 1983009808
        %v2196 = vunpack.c.0.s8 %v2195
        %v2197 = vperm.slane %v2191, %v2196
        %v2199 = vunpack.c.l.s4 1983009808
        %v2200 = vunpack.c.0.s8 %v2199
        %v2201 = vperm.slane %v2193, %v2200
        %v2202 = vrot.slane %v2197, 4
        %v2203 = vsel %vm856, %v2202, %v2185
        %v2204 = vrot.slane %v2185, 4
        %v2205 = vsel %vm856, %v2197, %v2204
        %v2207 = vunpack.c.l.s4 1934713408
        %v2208 = vunpack.c.0.s8 %v2207
        %v2209 = vperm.slane %v2203, %v2208
        %v2211 = vunpack.c.l.s4 1934713408
        %v2212 = vunpack.c.0.s8 %v2211
        %v2213 = vperm.slane %v2205, %v2212
        %v2214 = vrot.slane %v2201, 4
        %v2215 = vsel %vm856, %v2214, %v2189
        %v2216 = vrot.slane %v2189, 4
        %v2217 = vsel %vm856, %v2201, %v2216
        %v2219 = vunpack.c.l.s4 1934713408
        %v2220 = vunpack.c.0.s8 %v2219
        %v2221 = vperm.slane %v2215, %v2220
        %v2223 = vunpack.c.l.s4 1934713408
        %v2224 = vunpack.c.0.s8 %v2223
        %v2225 = vperm.slane %v2217, %v2224
        %v2226 = vrot.slane %v2209, 4
        %v2227 = vsel %vm856, 0.0, %v2226
        %v2228 = vrot.slane %v2213, 4
        %v2229 = vsel %vm856, 0.0, %v2228
        %v2230 = vrot.slane %v2221, 4
        %v2231 = vsel %vm856, 0.0, %v2230
        %v2232 = vrot.slane %v2225, 4
        %v2233 = vsel %vm856, 0.0, %v2232
        %v2234 = vrot.slane %v2131, 4
        %v2235 = vsel %vm856, %v2234, %v2067
        %v2236 = vrot.slane %v2067, 4
        %v2237 = vsel %vm856, %v2131, %v2236
        %v2239 = vunpack.c.l.s4 1983009808
        %v2240 = vunpack.c.0.s8 %v2239
        %v2241 = vperm.slane %v2235, %v2240
        %v2243 = vunpack.c.l.s4 1983009808
        %v2244 = vunpack.c.0.s8 %v2243
        %v2245 = vperm.slane %v2237, %v2244
        %v2246 = vrot.slane %v2163, 4
        %v2247 = vsel %vm856, %v2246, %v2099
        %v2248 = vrot.slane %v2099, 4
        %v2249 = vsel %vm856, %v2163, %v2248
        %v2251 = vunpack.c.l.s4 1983009808
        %v2252 = vunpack.c.0.s8 %v2251
        %v2253 = vperm.slane %v2247, %v2252
        %v2255 = vunpack.c.l.s4 1983009808
        %v2256 = vunpack.c.0.s8 %v2255
        %v2257 = vperm.slane %v2249, %v2256
        %v2258 = vrot.slane %v2253, 4
        %v2259 = vsel %vm856, %v2258, %v2241
        %v2260 = vrot.slane %v2241, 4
        %v2261 = vsel %vm856, %v2253, %v2260
        %v2263 = vunpack.c.l.s4 1934713408
        %v2264 = vunpack.c.0.s8 %v2263
        %v2265 = vperm.slane %v2259, %v2264
        %v2267 = vunpack.c.l.s4 1934713408
        %v2268 = vunpack.c.0.s8 %v2267
        %v2269 = vperm.slane %v2261, %v2268
        %v2270 = vrot.slane %v2257, 4
        %v2271 = vsel %vm856, %v2270, %v2245
        %v2272 = vrot.slane %v2245, 4
        %v2273 = vsel %vm856, %v2257, %v2272
        %v2275 = vunpack.c.l.s4 1934713408
        %v2276 = vunpack.c.0.s8 %v2275
        %v2277 = vperm.slane %v2271, %v2276
        %v2279 = vunpack.c.l.s4 1934713408
        %v2280 = vunpack.c.0.s8 %v2279
        %v2281 = vperm.slane %v2273, %v2280
        %v2282 = vrot.slane %v2265, 4
        %v2283 = vsel %vm856, 0.0, %v2282
        %v2284 = vrot.slane %v2269, 4
        %v2285 = vsel %vm856, 0.0, %v2284
        %v2286 = vrot.slane %v2277, 4
        %v2287 = vsel %vm856, 0.0, %v2286
        %v2288 = vrot.slane %v2281, 4
        %v2289 = vsel %vm856, 0.0, %v2288
        %v2290 = vrot.slane %v2132, 4
        %v2291 = vsel %vm856, %v2290, %v2068
        %v2292 = vrot.slane %v2068, 4
        %v2293 = vsel %vm856, %v2132, %v2292
        %v2295 = vunpack.c.l.s4 1983009808
        %v2296 = vunpack.c.0.s8 %v2295
        %v2297 = vperm.slane %v2291, %v2296
        %v2299 = vunpack.c.l.s4 1983009808
        %v2300 = vunpack.c.0.s8 %v2299
        %v2301 = vperm.slane %v2293, %v2300
        %v2302 = vrot.slane %v2164, 4
        %v2303 = vsel %vm856, %v2302, %v2100
        %v2304 = vrot.slane %v2100, 4
        %v2305 = vsel %vm856, %v2164, %v2304
        %v2307 = vunpack.c.l.s4 1983009808
        %v2308 = vunpack.c.0.s8 %v2307
        %v2309 = vperm.slane %v2303, %v2308
        %v2311 = vunpack.c.l.s4 1983009808
        %v2312 = vunpack.c.0.s8 %v2311
        %v2313 = vperm.slane %v2305, %v2312
        %v2314 = vrot.slane %v2309, 4
        %v2315 = vsel %vm856, %v2314, %v2297
        %v2316 = vrot.slane %v2297, 4
        %v2317 = vsel %vm856, %v2309, %v2316
        %v2319 = vunpack.c.l.s4 1934713408
        %v2320 = vunpack.c.0.s8 %v2319
        %v2321 = vperm.slane %v2315, %v2320
        %v2323 = vunpack.c.l.s4 1934713408
        %v2324 = vunpack.c.0.s8 %v2323
        %v2325 = vperm.slane %v2317, %v2324
        %v2326 = vrot.slane %v2313, 4
        %v2327 = vsel %vm856, %v2326, %v2301
        %v2328 = vrot.slane %v2301, 4
        %v2329 = vsel %vm856, %v2313, %v2328
        %v2331 = vunpack.c.l.s4 1934713408
        %v2332 = vunpack.c.0.s8 %v2331
        %v2333 = vperm.slane %v2327, %v2332
        %v2335 = vunpack.c.l.s4 1934713408
        %v2336 = vunpack.c.0.s8 %v2335
        %v2337 = vperm.slane %v2329, %v2336
        %v2338 = vrot.slane %v2321, 4
        %v2339 = vsel %vm856, 0.0, %v2338
        %v2340 = vrot.slane %v2325, 4
        %v2341 = vsel %vm856, 0.0, %v2340
        %v2342 = vrot.slane %v2333, 4
        %v2343 = vsel %vm856, 0.0, %v2342
        %v2344 = vrot.slane %v2337, 4
        %v2345 = vsel %vm856, 0.0, %v2344
        %v2346 = vrot.slane %v2133, 4
        %v2347 = vsel %vm856, %v2346, %v2069
        %v2348 = vrot.slane %v2069, 4
        %v2349 = vsel %vm856, %v2133, %v2348
        %v2351 = vunpack.c.l.s4 1983009808
        %v2352 = vunpack.c.0.s8 %v2351
        %v2353 = vperm.slane %v2347, %v2352
        %v2355 = vunpack.c.l.s4 1983009808
        %v2356 = vunpack.c.0.s8 %v2355
        %v2357 = vperm.slane %v2349, %v2356
        %v2358 = vrot.slane %v2165, 4
        %v2359 = vsel %vm856, %v2358, %v2101
        %v2360 = vrot.slane %v2101, 4
        %v2361 = vsel %vm856, %v2165, %v2360
        %v2363 = vunpack.c.l.s4 1983009808
        %v2364 = vunpack.c.0.s8 %v2363
        %v2365 = vperm.slane %v2359, %v2364
        %v2367 = vunpack.c.l.s4 1983009808
        %v2368 = vunpack.c.0.s8 %v2367
        %v2369 = vperm.slane %v2361, %v2368
        %v2370 = vrot.slane %v2365, 4
        %v2371 = vsel %vm856, %v2370, %v2353
        %v2372 = vrot.slane %v2353, 4
        %v2373 = vsel %vm856, %v2365, %v2372
        %v2375 = vunpack.c.l.s4 1934713408
        %v2376 = vunpack.c.0.s8 %v2375
        %v2377 = vperm.slane %v2371, %v2376
        %v2379 = vunpack.c.l.s4 1934713408
        %v2380 = vunpack.c.0.s8 %v2379
        %v2381 = vperm.slane %v2373, %v2380
        %v2382 = vrot.slane %v2369, 4
        %v2383 = vsel %vm856, %v2382, %v2357
        %v2384 = vrot.slane %v2357, 4
        %v2385 = vsel %vm856, %v2369, %v2384
        %v2387 = vunpack.c.l.s4 1934713408
        %v2388 = vunpack.c.0.s8 %v2387
        %v2389 = vperm.slane %v2383, %v2388
        %v2391 = vunpack.c.l.s4 1934713408
        %v2392 = vunpack.c.0.s8 %v2391
        %v2393 = vperm.slane %v2385, %v2392
        %v2394 = vrot.slane %v2377, 4
        %v2395 = vsel %vm856, 0.0, %v2394
        %v2396 = vrot.slane %v2381, 4
        %v2397 = vsel %vm856, 0.0, %v2396
        %v2398 = vrot.slane %v2389, 4
        %v2399 = vsel %vm856, 0.0, %v2398
        %v2400 = vrot.slane %v2393, 4
        %v2401 = vsel %vm856, 0.0, %v2400
        %v2402 = vsel %vm856, %v2228, %v2209
        %v2404 = vunpack.c.l.s4 1983009808
        %v2405 = vunpack.c.0.s8 %v2404
        %v2406 = vperm.slane %v2402, %v2405
        %v2407 = vrot.slane %v2229, 4
        %v2408 = vsel %vm856, %v2407, %v2227
        %v2410 = vunpack.c.l.s4 1983009808
        %v2411 = vunpack.c.0.s8 %v2410
        %v2412 = vperm.slane %v2408, %v2411
        %v2413 = vsel %vm856, %v2232, %v2221
        %v2415 = vunpack.c.l.s4 1983009808
        %v2416 = vunpack.c.0.s8 %v2415
        %v2417 = vperm.slane %v2413, %v2416
        %v2418 = vrot.slane %v2233, 4
        %v2419 = vsel %vm856, %v2418, %v2231
        %v2421 = vunpack.c.l.s4 1983009808
        %v2422 = vunpack.c.0.s8 %v2421
        %v2423 = vperm.slane %v2419, %v2422
        %v2424 = vrot.slane %v2412, 4
        %v2425 = vsel %vm856, %v2424, %v2406
        %v2426 = vrot.slane %v2406, 4
        %v2427 = vsel %vm856, %v2412, %v2426
        %v2429 = vunpack.c.l.s4 1934713408
        %v2430 = vunpack.c.0.s8 %v2429
        %v2431 = vperm.slane %v2425, %v2430
        %v2433 = vunpack.c.l.s4 1934713408
        %v2434 = vunpack.c.0.s8 %v2433
        %v2435 = vperm.slane %v2427, %v2434
        %v2436 = vrot.slane %v2423, 4
        %v2437 = vsel %vm856, %v2436, %v2417
        %v2438 = vrot.slane %v2417, 4
        %v2439 = vsel %vm856, %v2423, %v2438
        %v2441 = vunpack.c.l.s4 1934713408
        %v2442 = vunpack.c.0.s8 %v2441
        %v2443 = vperm.slane %v2437, %v2442
        %v2445 = vunpack.c.l.s4 1934713408
        %v2446 = vunpack.c.0.s8 %v2445
        %v2447 = vperm.slane %v2439, %v2446
        %v2448 = vrot.slane %v2443, 4
        %v2449 = vsel %vm856, %v2448, %v2431
        %v2450 = vrot.slane %v2431, 4
        %v2451 = vsel %vm856, %v2443, %v2450
        %v2452 = vrot.slane %v2447, 4
        %v2453 = vsel %vm856, %v2452, %v2435
        %v2454 = vrot.slane %v2435, 4
        %v2455 = vsel %vm856, %v2447, %v2454
        %v2456 = vsel %vm856, %v2284, %v2265
        %v2458 = vunpack.c.l.s4 1983009808
        %v2459 = vunpack.c.0.s8 %v2458
        %v2460 = vperm.slane %v2456, %v2459
        %v2461 = vrot.slane %v2285, 4
        %v2462 = vsel %vm856, %v2461, %v2283
        %v2464 = vunpack.c.l.s4 1983009808
        %v2465 = vunpack.c.0.s8 %v2464
        %v2466 = vperm.slane %v2462, %v2465
        %v2467 = vsel %vm856, %v2288, %v2277
        %v2469 = vunpack.c.l.s4 1983009808
        %v2470 = vunpack.c.0.s8 %v2469
        %v2471 = vperm.slane %v2467, %v2470
        %v2472 = vrot.slane %v2289, 4
        %v2473 = vsel %vm856, %v2472, %v2287
        %v2475 = vunpack.c.l.s4 1983009808
        %v2476 = vunpack.c.0.s8 %v2475
        %v2477 = vperm.slane %v2473, %v2476
        %v2478 = vrot.slane %v2466, 4
        %v2479 = vsel %vm856, %v2478, %v2460
        %v2480 = vrot.slane %v2460, 4
        %v2481 = vsel %vm856, %v2466, %v2480
        %v2483 = vunpack.c.l.s4 1934713408
        %v2484 = vunpack.c.0.s8 %v2483
        %v2485 = vperm.slane %v2479, %v2484
        %v2487 = vunpack.c.l.s4 1934713408
        %v2488 = vunpack.c.0.s8 %v2487
        %v2489 = vperm.slane %v2481, %v2488
        %v2490 = vrot.slane %v2477, 4
        %v2491 = vsel %vm856, %v2490, %v2471
        %v2492 = vrot.slane %v2471, 4
        %v2493 = vsel %vm856, %v2477, %v2492
        %v2495 = vunpack.c.l.s4 1934713408
        %v2496 = vunpack.c.0.s8 %v2495
        %v2497 = vperm.slane %v2491, %v2496
        %v2499 = vunpack.c.l.s4 1934713408
        %v2500 = vunpack.c.0.s8 %v2499
        %v2501 = vperm.slane %v2493, %v2500
        %v2502 = vrot.slane %v2497, 4
        %v2503 = vsel %vm856, %v2502, %v2485
        %v2504 = vrot.slane %v2485, 4
        %v2505 = vsel %vm856, %v2497, %v2504
        %v2506 = vrot.slane %v2501, 4
        %v2507 = vsel %vm856, %v2506, %v2489
        %v2508 = vrot.slane %v2489, 4
        %v2509 = vsel %vm856, %v2501, %v2508
        %v2510 = vsel %vm856, %v2340, %v2321
        %v2512 = vunpack.c.l.s4 1983009808
        %v2513 = vunpack.c.0.s8 %v2512
        %v2514 = vperm.slane %v2510, %v2513
        %v2515 = vrot.slane %v2341, 4
        %v2516 = vsel %vm856, %v2515, %v2339
        %v2518 = vunpack.c.l.s4 1983009808
        %v2519 = vunpack.c.0.s8 %v2518
        %v2520 = vperm.slane %v2516, %v2519
        %v2521 = vsel %vm856, %v2344, %v2333
        %v2523 = vunpack.c.l.s4 1983009808
        %v2524 = vunpack.c.0.s8 %v2523
        %v2525 = vperm.slane %v2521, %v2524
        %v2526 = vrot.slane %v2345, 4
        %v2527 = vsel %vm856, %v2526, %v2343
        %v2529 = vunpack.c.l.s4 1983009808
        %v2530 = vunpack.c.0.s8 %v2529
        %v2531 = vperm.slane %v2527, %v2530
        %v2532 = vrot.slane %v2520, 4
        %v2533 = vsel %vm856, %v2532, %v2514
        %v2534 = vrot.slane %v2514, 4
        %v2535 = vsel %vm856, %v2520, %v2534
        %v2537 = vunpack.c.l.s4 1934713408
        %v2538 = vunpack.c.0.s8 %v2537
        %v2539 = vperm.slane %v2533, %v2538
        %v2541 = vunpack.c.l.s4 1934713408
        %v2542 = vunpack.c.0.s8 %v2541
        %v2543 = vperm.slane %v2535, %v2542
        %v2544 = vrot.slane %v2531, 4
        %v2545 = vsel %vm856, %v2544, %v2525
        %v2546 = vrot.slane %v2525, 4
        %v2547 = vsel %vm856, %v2531, %v2546
        %v2549 = vunpack.c.l.s4 1934713408
        %v2550 = vunpack.c.0.s8 %v2549
        %v2551 = vperm.slane %v2545, %v2550
        %v2553 = vunpack.c.l.s4 1934713408
        %v2554 = vunpack.c.0.s8 %v2553
        %v2555 = vperm.slane %v2547, %v2554
        %v2556 = vrot.slane %v2551, 4
        %v2557 = vsel %vm856, %v2556, %v2539
        %v2558 = vrot.slane %v2539, 4
        %v2559 = vsel %vm856, %v2551, %v2558
        %v2560 = vrot.slane %v2555, 4
        %v2561 = vsel %vm856, %v2560, %v2543
        %v2562 = vrot.slane %v2543, 4
        %v2563 = vsel %vm856, %v2555, %v2562
        %v2564 = vsel %vm856, %v2396, %v2377
        %v2566 = vunpack.c.l.s4 1983009808
        %v2567 = vunpack.c.0.s8 %v2566
        %v2568 = vperm.slane %v2564, %v2567
        %v2569 = vrot.slane %v2397, 4
        %v2570 = vsel %vm856, %v2569, %v2395
        %v2572 = vunpack.c.l.s4 1983009808
        %v2573 = vunpack.c.0.s8 %v2572
        %v2574 = vperm.slane %v2570, %v2573
        %v2575 = vsel %vm856, %v2400, %v2389
        %v2577 = vunpack.c.l.s4 1983009808
        %v2578 = vunpack.c.0.s8 %v2577
        %v2579 = vperm.slane %v2575, %v2578
        %v2580 = vrot.slane %v2401, 4
        %v2581 = vsel %vm856, %v2580, %v2399
        %v2583 = vunpack.c.l.s4 1983009808
        %v2584 = vunpack.c.0.s8 %v2583
        %v2585 = vperm.slane %v2581, %v2584
        %v2586 = vrot.slane %v2574, 4
        %v2587 = vsel %vm856, %v2586, %v2568
        %v2588 = vrot.slane %v2568, 4
        %v2589 = vsel %vm856, %v2574, %v2588
        %v2591 = vunpack.c.l.s4 1934713408
        %v2592 = vunpack.c.0.s8 %v2591
        %v2593 = vperm.slane %v2587, %v2592
        %v2595 = vunpack.c.l.s4 1934713408
        %v2596 = vunpack.c.0.s8 %v2595
        %v2597 = vperm.slane %v2589, %v2596
        %v2598 = vrot.slane %v2585, 4
        %v2599 = vsel %vm856, %v2598, %v2579
        %v2600 = vrot.slane %v2579, 4
        %v2601 = vsel %vm856, %v2585, %v2600
        %v2603 = vunpack.c.l.s4 1934713408
        %v2604 = vunpack.c.0.s8 %v2603
        %v2605 = vperm.slane %v2599, %v2604
        %v2607 = vunpack.c.l.s4 1934713408
        %v2608 = vunpack.c.0.s8 %v2607
        %v2609 = vperm.slane %v2601, %v2608
        %v2610 = vrot.slane %v2605, 4
        %v2611 = vsel %vm856, %v2610, %v2593
        %v2612 = vrot.slane %v2593, 4
        %v2613 = vsel %vm856, %v2605, %v2612
        %v2614 = vrot.slane %v2609, 4
        %v2615 = vsel %vm856, %v2614, %v2597
        %v2616 = vrot.slane %v2597, 4
        %v2617 = vsel %vm856, %v2609, %v2616
        %2622 = vrot.lane.b32.xlu0 %v2451, 32
        %v2623 = vpop.permute.xlu0 %2622
        %2624 = vrot.lane.b32.xlu0 %v2505, 32
        %v2625 = vpop.permute.xlu0 %2624
        %2626 = vrot.lane.b32.xlu0 %v2559, 32
        %v2627 = vpop.permute.xlu0 %2626
        %2628 = vrot.lane.b32.xlu0 %v2613, 32
        %v2629 = vpop.permute.xlu0 %2628
        %2638 = vrot.lane.b32.xlu0 %v2453, 64
        %v2639 = vpop.permute.xlu0 %2638
        %2640 = vrot.lane.b32.xlu0 %v2507, 64
        %v2641 = vpop.permute.xlu0 %2640
        %2642 = vrot.lane.b32.xlu0 %v2561, 64
        %v2643 = vpop.permute.xlu0 %2642
        %2644 = vrot.lane.b32.xlu0 %v2615, 64
        %v2645 = vpop.permute.xlu0 %2644
        %2654 = vrot.lane.b32.xlu0 %v2455, 96
        %v2655 = vpop.permute.xlu0 %2654
        %2656 = vrot.lane.b32.xlu0 %v2509, 96
        %v2657 = vpop.permute.xlu0 %2656
        %2658 = vrot.lane.b32.xlu0 %v2563, 96
        %v2659 = vpop.permute.xlu0 %2658
        %2660 = vrot.lane.b32.xlu0 %v2617, 96
        %v2661 = vpop.permute.xlu0 %2660
        %v2666 = vsel %vm1479, %v2449, %v2623
        %v2667 = vsel %vm1479, %v2503, %v2625
        %v2668 = vsel %vm1479, %v2557, %v2627
        %v2669 = vsel %vm1479, %v2611, %v2629
        %vm2670 = vcmask 523264
        %v2671 = vsel %vm2670, %v2666, %v2639
        %v2672 = vsel %vm2670, %v2667, %v2641
        %v2673 = vsel %vm2670, %v2668, %v2643
        %v2674 = vsel %vm2670, %v2669, %v2645
        %vm2675 = vcmask 785408
        %v2676 = vsel %vm2675, %v2671, %v2655
        %v2677 = vsel %vm2675, %v2672, %v2657
        %v2678 = vsel %vm2675, %v2673, %v2659
        %v2679 = vsel %vm2675, %v2674, %v2661
        %v2680 = vpack.c.bf16 %v2677, %v2676
        %v2681 = vpack.c.bf16 %v2679, %v2678
        %v2682 = vld [vmem:[#allocation8] sm:$0xf]
        %v2683 = vld [vmem:[#allocation8 + $0x4] sm:$0xf]
        %v2684 = vld [vmem:[#allocation8 + $0x8] sm:$0xf]
        %v2685 = vld [vmem:[#allocation8 + $0xc] sm:$0xf]
        %v2686 = vld [vmem:[#allocation8 + $0x10] sm:$0xf]
        %v2687 = vld [vmem:[#allocation8 + $0x14] sm:$0xf]
        %v2688 = vld [vmem:[#allocation8 + $0x18] sm:$0xf]
        %v2689 = vld [vmem:[#allocation8 + $0x1c] sm:$0xf]
        %v2690 = vld [vmem:[#allocation8 + $0x20] sm:$0xf]
        %v2691 = vld [vmem:[#allocation8 + $0x24] sm:$0xf]
        %v2692 = vld [vmem:[#allocation8 + $0x28] sm:$0xf]
        %v2693 = vld [vmem:[#allocation8 + $0x2c] sm:$0xf]
        %v2694 = vld [vmem:[#allocation8 + $0x30] sm:$0xf]
        %v2695 = vld [vmem:[#allocation8 + $0x34] sm:$0xf]
        %v2696 = vld [vmem:[#allocation8 + $0x38] sm:$0xf]
        %v2697 = vld [vmem:[#allocation8 + $0x3c] sm:$0xf]
        %v2698 = vld [vmem:[%s4] sm:$0x1]
        %v2700 = vperm.slane %v2698, 0
        %v2718 = vunpack.c.l.b16 %v2682
        %v2719 = vunpack.c.l.b16 %v2683
        %v2720 = vunpack.c.l.b16 %v2684
        %v2721 = vunpack.c.l.b16 %v2685
        %v2722 = vunpack.c.l.b16 %v2686
        %v2723 = vunpack.c.l.b16 %v2687
        %v2724 = vunpack.c.l.b16 %v2688
        %v2725 = vunpack.c.l.b16 %v2689
        %v2726 = vunpack.c.l.b16 %v2690
        %v2727 = vunpack.c.l.b16 %v2691
        %v2728 = vunpack.c.l.b16 %v2692
        %v2729 = vunpack.c.l.b16 %v2693
        %v2730 = vunpack.c.l.b16 %v2694
        %v2731 = vunpack.c.l.b16 %v2695
        %v2732 = vunpack.c.l.b16 %v2696
        %v2733 = vunpack.c.l.b16 %v2697
        %v2734 = vpack.c.b16 %v2719, %v2718
        %v2735 = vpack.c.b16 %v2721, %v2720
        %v2736 = vpack.c.b16 %v2723, %v2722
        %v2737 = vpack.c.b16 %v2725, %v2724
        %v2738 = vpack.c.b16 %v2727, %v2726
        %v2739 = vpack.c.b16 %v2729, %v2728
        %v2740 = vpack.c.b16 %v2731, %v2730
        %v2741 = vpack.c.b16 %v2733, %v2732
        %2750 = vmatpush.bf16.msra.mxu0 %v2741
        %2751 = vmatpush.bf16.msra.mxu0 %v2740
        %2752 = vmatpush.bf16.msra.mxu0 %v2739
        %2753 = vmatpush.bf16.msra.mxu0 %v2738
        %2754 = vmatpush.bf16.msra.mxu0 %v2737
        %2755 = vmatpush.bf16.msra.mxu0 %v2736
        %2756 = vmatpush.bf16.msra.mxu0 %v2735
        %2757 = vmatpush.bf16.msra.mxu0 %v2734
        %2758 = vmatmul.bf16.gmra.mxu0 %v2680
        %v2759 = vpop.f32.mrf.mxu0
        %v2760 = vadd.f32 %v2700, %v2759
        %v2761 = vpop.f32.mrf.mxu0
        %v2762 = vadd.f32 %v2700, %v2761
        %2763 = vmatmul.bf16.gmra.mxu0 %v2681
        %v2764 = vpop.f32.mrf.mxu0
        %v2765 = vadd.f32 %v2700, %v2764
        %v2766 = vpop.f32.mrf.mxu0
        %v2767 = vadd.f32 %v2700, %v2766
        %2768 = vdwg.mxu0
        %v2769 = vadd.f32 %v2760, %v811
        %v2770 = vadd.f32 %v2762, %v812
        %v2771 = vadd.f32 %v2765, %v813
        %v2772 = vadd.f32 %v2767, %v814
        %2773 = vadd.xlane.f32.xlu0 %v2769
        %v2774 = vpop.xlane.xlu0 %2773
        %2775 = vadd.xlane.f32.xlu0 %v2770
        %v2776 = vpop.xlane.xlu0 %2775
        %2777 = vadd.xlane.f32.xlu0 %v2771
        %v2778 = vpop.xlane.xlu0 %2777
        %2779 = vadd.xlane.f32.xlu0 %v2772
        %v2780 = vpop.xlane.xlu0 %2779
        %v2781 = vrcp.pop 128.0
        %v2782 = vmul.f32 128.0, %v2781
        %v2783 = vsub.f32 1.0, %v2782
        %v2784 = vmul.f32 %v2781, %v2783
        %v2785 = vadd.f32 %v2781, %v2784
        %vm2786 = vweird.f32 %v2781
        %v2787 = vsel %vm2786, %v2781, %v2785
        %v2788 = vmul.f32 %v2774, %v2787
        %v2789 = vmul.f32 %v2776, %v2787
        %v2790 = vmul.f32 %v2778, %v2787
        %v2791 = vmul.f32 %v2780, %v2787
        %v2792 = vsub.f32 %v2769, %v2788
        %v2793 = vsub.f32 %v2770, %v2789
        %v2794 = vsub.f32 %v2771, %v2790
        %v2795 = vsub.f32 %v2772, %v2791
        %v2796 = vmul.f32 %v2792, %v2792
        %v2797 = vmul.f32 %v2793, %v2793
        %v2798 = vmul.f32 %v2794, %v2794
        %v2799 = vmul.f32 %v2795, %v2795
        %2800 = vadd.xlane.f32.xlu0 %v2796
        %v2801 = vpop.xlane.xlu0 %2800
        %2802 = vadd.xlane.f32.xlu0 %v2797
        %v2803 = vpop.xlane.xlu0 %2802
        %2804 = vadd.xlane.f32.xlu0 %v2798
        %v2805 = vpop.xlane.xlu0 %2804
        %2806 = vadd.xlane.f32.xlu0 %v2799
        %v2807 = vpop.xlane.xlu0 %2806
        %v2808 = vmul.f32 %v2801, %v2787
        %v2809 = vmul.f32 %v2803, %v2787
        %v2810 = vmul.f32 %v2805, %v2787
        %v2811 = vmul.f32 %v2807, %v2787
        %v2812 = vadd.f32 %v2808, 1e-06
        %v2813 = vadd.f32 %v2809, 1e-06
        %v2814 = vadd.f32 %v2810, 1e-06
        %v2815 = vadd.f32 %v2811, 1e-06
        %v2816 = vrsqrt.pop %v2812
        %v2817 = vmul.f32 %v2816, %v2812
        %v2818 = vmul.f32 %v2817, %v2816
        %v2819 = vmul.f32 0.5, %v2818
        %v2820 = vsub.f32 1.5, %v2819
        %v2821 = vmul.f32 %v2816, %v2820
        %vm2822 = vweird.f32 %v2812
        %vm2823 = vweird.f32 %v2816
        %vm2824 = vmor %vm2822, %vm2823
        %v2825 = vsel %vm2824, %v2816, %v2821
        %v2826 = vrsqrt.pop %v2813
        %v2827 = vmul.f32 %v2826, %v2813
        %v2828 = vmul.f32 %v2827, %v2826
        %v2829 = vmul.f32 0.5, %v2828
        %v2830 = vsub.f32 1.5, %v2829
        %v2831 = vmul.f32 %v2826, %v2830
        %vm2832 = vweird.f32 %v2813
        %vm2833 = vweird.f32 %v2826
        %vm2834 = vmor %vm2832, %vm2833
        %v2835 = vsel %vm2834, %v2826, %v2831
        %v2836 = vrsqrt.pop %v2814
        %v2837 = vmul.f32 %v2836, %v2814
        %v2838 = vmul.f32 %v2837, %v2836
        %v2839 = vmul.f32 0.5, %v2838
        %v2840 = vsub.f32 1.5, %v2839
        %v2841 = vmul.f32 %v2836, %v2840
        %vm2842 = vweird.f32 %v2814
        %vm2843 = vweird.f32 %v2836
        %vm2844 = vmor %vm2842, %vm2843
        %v2845 = vsel %vm2844, %v2836, %v2841
        %v2846 = vrsqrt.pop %v2815
        %v2847 = vmul.f32 %v2846, %v2815
        %v2848 = vmul.f32 %v2847, %v2846
        %v2849 = vmul.f32 0.5, %v2848
        %v2850 = vsub.f32 1.5, %v2849
        %v2851 = vmul.f32 %v2846, %v2850
        %vm2852 = vweird.f32 %v2815
        %vm2853 = vweird.f32 %v2846
        %vm2854 = vmor %vm2852, %vm2853
        %v2855 = vsel %vm2854, %v2846, %v2851
        %v2856 = vmul.f32 %v2792, %v2825
        %v2857 = vmul.f32 %v2793, %v2835
        %v2858 = vmul.f32 %v2794, %v2845
        %v2859 = vmul.f32 %v2795, %v2855
        %v2860 = vld [vmem:[%s5] sm:$0x1]
        %v2862 = vperm.slane %v2860, 0
        %v2864 = vmul.f32 %v2856, %v2862
        %v2865 = vmul.f32 %v2857, %v2862
        %v2866 = vmul.f32 %v2858, %v2862
        %v2867 = vmul.f32 %v2859, %v2862
        %v2868 = vld [vmem:[%s6] sm:$0x1]
        %v2870 = vperm.slane %v2868, 0
        %v2872 = vadd.f32 %v2864, %v2870
        %v2873 = vadd.f32 %v2865, %v2870
        %v2874 = vadd.f32 %v2866, %v2870
        %v2875 = vadd.f32 %v2867, %v2870
        %v2876 = vpack.c.bf16 %v2873, %v2872
        %v2877 = vpack.c.bf16 %v2875, %v2874
        %v2878 = vld [vmem:[#allocation10] sm:$0xff]
        %v2879 = vld [vmem:[#allocation10 + $0x8] sm:$0xff]
        %v2880 = vld [vmem:[#allocation10 + $0x10] sm:$0xff]
        %v2881 = vld [vmem:[#allocation10 + $0x18] sm:$0xff]
        %v2882 = vld [vmem:[#allocation10 + $0x20] sm:$0xff]
        %v2883 = vld [vmem:[#allocation10 + $0x28] sm:$0xff]
        %v2884 = vld [vmem:[#allocation10 + $0x30] sm:$0xff]
        %v2885 = vld [vmem:[#allocation10 + $0x38] sm:$0xff]
        %v2886 = vld [vmem:[#allocation10 + $0x40] sm:$0xff]
        %v2887 = vld [vmem:[#allocation10 + $0x48] sm:$0xff]
        %v2888 = vld [vmem:[#allocation10 + $0x50] sm:$0xff]
        %v2889 = vld [vmem:[#allocation10 + $0x58] sm:$0xff]
        %v2890 = vld [vmem:[#allocation10 + $0x60] sm:$0xff]
        %v2891 = vld [vmem:[#allocation10 + $0x68] sm:$0xff]
        %v2892 = vld [vmem:[#allocation10 + $0x70] sm:$0xff]
        %v2893 = vld [vmem:[#allocation10 + $0x78] sm:$0xff]
        %v2894 = vld [vmem:[%s8] sm:$0x3]
        %v2896 = vperm.slane %v2894, 0
        %v2897 = vperm.slane %v2894, 1
        %v2916 = vunpack.c.l.b16 %v2878
        %v2917 = vunpack.c.h.b16 %v2878
        %v2918 = vunpack.c.l.b16 %v2879
        %v2919 = vunpack.c.h.b16 %v2879
        %v2920 = vunpack.c.l.b16 %v2880
        %v2921 = vunpack.c.h.b16 %v2880
        %v2922 = vunpack.c.l.b16 %v2881
        %v2923 = vunpack.c.h.b16 %v2881
        %v2924 = vunpack.c.l.b16 %v2882
        %v2925 = vunpack.c.h.b16 %v2882
        %v2926 = vunpack.c.l.b16 %v2883
        %v2927 = vunpack.c.h.b16 %v2883
        %v2928 = vunpack.c.l.b16 %v2884
        %v2929 = vunpack.c.h.b16 %v2884
        %v2930 = vunpack.c.l.b16 %v2885
        %v2931 = vunpack.c.h.b16 %v2885
        %v2932 = vunpack.c.l.b16 %v2886
        %v2933 = vunpack.c.h.b16 %v2886
        %v2934 = vunpack.c.l.b16 %v2887
        %v2935 = vunpack.c.h.b16 %v2887
        %v2936 = vunpack.c.l.b16 %v2888
        %v2937 = vunpack.c.h.b16 %v2888
        %v2938 = vunpack.c.l.b16 %v2889
        %v2939 = vunpack.c.h.b16 %v2889
        %v2940 = vunpack.c.l.b16 %v2890
        %v2941 = vunpack.c.h.b16 %v2890
        %v2942 = vunpack.c.l.b16 %v2891
        %v2943 = vunpack.c.h.b16 %v2891
        %v2944 = vunpack.c.l.b16 %v2892
        %v2945 = vunpack.c.h.b16 %v2892
        %v2946 = vunpack.c.l.b16 %v2893
        %v2947 = vunpack.c.h.b16 %v2893
        %v2948 = vpack.c.b16 %v2918, %v2916
        %v2949 = vpack.c.b16 %v2919, %v2917
        %v2950 = vpack.c.b16 %v2922, %v2920
        %v2951 = vpack.c.b16 %v2923, %v2921
        %v2952 = vpack.c.b16 %v2926, %v2924
        %v2953 = vpack.c.b16 %v2927, %v2925
        %v2954 = vpack.c.b16 %v2930, %v2928
        %v2955 = vpack.c.b16 %v2931, %v2929
        %v2956 = vpack.c.b16 %v2934, %v2932
        %v2957 = vpack.c.b16 %v2935, %v2933
        %v2958 = vpack.c.b16 %v2938, %v2936
        %v2959 = vpack.c.b16 %v2939, %v2937
        %v2960 = vpack.c.b16 %v2942, %v2940
        %v2961 = vpack.c.b16 %v2943, %v2941
        %v2962 = vpack.c.b16 %v2946, %v2944
        %v2963 = vpack.c.b16 %v2947, %v2945
        %2980 = vmatpush.bf16.msra.mxu0 %v2962
        %2981 = vmatpush.bf16.msra.mxu0 %v2960
        %2982 = vmatpush.bf16.msra.mxu0 %v2958
        %2983 = vmatpush.bf16.msra.mxu0 %v2956
        %2984 = vmatpush.bf16.msra.mxu0 %v2954
        %2985 = vmatpush.bf16.msra.mxu0 %v2952
        %2986 = vmatpush.bf16.msra.mxu0 %v2950
        %2987 = vmatpush.bf16.msra.mxu0 %v2948
        %2988 = vmatmul.bf16.gmra.mxu0 %v2876
        %v2989 = vpop.f32.mrf.mxu0
        %v2990 = vadd.f32 %v2896, %v2989
        %v2991 = vpop.f32.mrf.mxu0
        %v2992 = vadd.f32 %v2896, %v2991
        %2993 = vmatmul.bf16.gmra.mxu0 %v2877
        %v2994 = vpop.f32.mrf.mxu0
        %v2995 = vadd.f32 %v2896, %v2994
        %v2996 = vpop.f32.mrf.mxu0
        %v2997 = vadd.f32 %v2896, %v2996
        %2998 = vdwg.mxu0
        %2999 = vmatpush.bf16.msra.mxu0 %v2963
        %3000 = vmatpush.bf16.msra.mxu0 %v2961
        %3001 = vmatpush.bf16.msra.mxu0 %v2959
        %3002 = vmatpush.bf16.msra.mxu0 %v2957
        %3003 = vmatpush.bf16.msra.mxu0 %v2955
        %3004 = vmatpush.bf16.msra.mxu0 %v2953
        %3005 = vmatpush.bf16.msra.mxu0 %v2951
        %3006 = vmatpush.bf16.msra.mxu0 %v2949
        %3007 = vmatmul.bf16.gmra.mxu0 %v2876
        %v3008 = vpop.f32.mrf.mxu0
        %v3009 = vadd.f32 %v2897, %v3008
        %v3010 = vpop.f32.mrf.mxu0
        %v3011 = vadd.f32 %v2897, %v3010
        %3012 = vmatmul.bf16.gmra.mxu0 %v2877
        %v3013 = vpop.f32.mrf.mxu0
        %v3014 = vadd.f32 %v2897, %v3013
        %v3015 = vpop.f32.mrf.mxu0
        %v3016 = vadd.f32 %v2897, %v3015
        %3017 = vdwg.mxu0
        %v3018 = vmax.f32 %v2990, 0.0
        %v3019 = vmax.f32 %v3009, 0.0
        %v3020 = vmax.f32 %v2992, 0.0
        %v3021 = vmax.f32 %v3011, 0.0
        %v3022 = vmax.f32 %v2995, 0.0
        %v3023 = vmax.f32 %v3014, 0.0
        %v3024 = vmax.f32 %v2997, 0.0
        %v3025 = vmax.f32 %v3016, 0.0
        %v3026 = vpack.c.bf16 %v3020, %v3018
        %v3027 = vpack.c.bf16 %v3021, %v3019
        %v3028 = vpack.c.bf16 %v3024, %v3022
        %v3029 = vpack.c.bf16 %v3025, %v3023
        %v3030 = vld [vmem:[#allocation11] sm:$0xf]
        %v3031 = vld [vmem:[#allocation11 + $0x4] sm:$0xf]
        %v3032 = vld [vmem:[#allocation11 + $0x8] sm:$0xf]
        %v3033 = vld [vmem:[#allocation11 + $0xc] sm:$0xf]
        %v3034 = vld [vmem:[#allocation11 + $0x10] sm:$0xf]
        %v3035 = vld [vmem:[#allocation11 + $0x14] sm:$0xf]
        %v3036 = vld [vmem:[#allocation11 + $0x18] sm:$0xf]
        %v3037 = vld [vmem:[#allocation11 + $0x1c] sm:$0xf]
        %v3038 = vld [vmem:[#allocation11 + $0x20] sm:$0xf]
        %v3039 = vld [vmem:[#allocation11 + $0x24] sm:$0xf]
        %v3040 = vld [vmem:[#allocation11 + $0x28] sm:$0xf]
        %v3041 = vld [vmem:[#allocation11 + $0x2c] sm:$0xf]
        %v3042 = vld [vmem:[#allocation11 + $0x30] sm:$0xf]
        %v3043 = vld [vmem:[#allocation11 + $0x34] sm:$0xf]
        %v3044 = vld [vmem:[#allocation11 + $0x38] sm:$0xf]
        %v3045 = vld [vmem:[#allocation11 + $0x3c] sm:$0xf]
        %v3046 = vld [vmem:[#allocation11 + $0x40] sm:$0xf]
        %v3047 = vld [vmem:[#allocation11 + $0x44] sm:$0xf]
        %v3048 = vld [vmem:[#allocation11 + $0x48] sm:$0xf]
        %v3049 = vld [vmem:[#allocation11 + $0x4c] sm:$0xf]
        %v3050 = vld [vmem:[#allocation11 + $0x50] sm:$0xf]
        %v3051 = vld [vmem:[#allocation11 + $0x54] sm:$0xf]
        %v3052 = vld [vmem:[#allocation11 + $0x58] sm:$0xf]
        %v3053 = vld [vmem:[#allocation11 + $0x5c] sm:$0xf]
        %v3054 = vld [vmem:[#allocation11 + $0x60] sm:$0xf]
        %v3055 = vld [vmem:[#allocation11 + $0x64] sm:$0xf]
        %v3056 = vld [vmem:[#allocation11 + $0x68] sm:$0xf]
        %v3057 = vld [vmem:[#allocation11 + $0x6c] sm:$0xf]
        %v3058 = vld [vmem:[#allocation11 + $0x70] sm:$0xf]
        %v3059 = vld [vmem:[#allocation11 + $0x74] sm:$0xf]
        %v3060 = vld [vmem:[#allocation11 + $0x78] sm:$0xf]
        %v3061 = vld [vmem:[#allocation11 + $0x7c] sm:$0xf]
        %v3062 = vld [vmem:[%s10] sm:$0x1]
        %v3064 = vperm.slane %v3062, 0
        %v3098 = vunpack.c.l.b16 %v3030
        %v3099 = vunpack.c.l.b16 %v3031
        %v3100 = vunpack.c.l.b16 %v3032
        %v3101 = vunpack.c.l.b16 %v3033
        %v3102 = vunpack.c.l.b16 %v3034
        %v3103 = vunpack.c.l.b16 %v3035
        %v3104 = vunpack.c.l.b16 %v3036
        %v3105 = vunpack.c.l.b16 %v3037
        %v3106 = vunpack.c.l.b16 %v3038
        %v3107 = vunpack.c.l.b16 %v3039
        %v3108 = vunpack.c.l.b16 %v3040
        %v3109 = vunpack.c.l.b16 %v3041
        %v3110 = vunpack.c.l.b16 %v3042
        %v3111 = vunpack.c.l.b16 %v3043
        %v3112 = vunpack.c.l.b16 %v3044
        %v3113 = vunpack.c.l.b16 %v3045
        %v3114 = vunpack.c.l.b16 %v3046
        %v3115 = vunpack.c.l.b16 %v3047
        %v3116 = vunpack.c.l.b16 %v3048
        %v3117 = vunpack.c.l.b16 %v3049
        %v3118 = vunpack.c.l.b16 %v3050
        %v3119 = vunpack.c.l.b16 %v3051
        %v3120 = vunpack.c.l.b16 %v3052
        %v3121 = vunpack.c.l.b16 %v3053
        %v3122 = vunpack.c.l.b16 %v3054
        %v3123 = vunpack.c.l.b16 %v3055
        %v3124 = vunpack.c.l.b16 %v3056
        %v3125 = vunpack.c.l.b16 %v3057
        %v3126 = vunpack.c.l.b16 %v3058
        %v3127 = vunpack.c.l.b16 %v3059
        %v3128 = vunpack.c.l.b16 %v3060
        %v3129 = vunpack.c.l.b16 %v3061
        %v3130 = vpack.c.b16 %v3099, %v3098
        %v3131 = vpack.c.b16 %v3101, %v3100
        %v3132 = vpack.c.b16 %v3103, %v3102
        %v3133 = vpack.c.b16 %v3105, %v3104
        %v3134 = vpack.c.b16 %v3107, %v3106
        %v3135 = vpack.c.b16 %v3109, %v3108
        %v3136 = vpack.c.b16 %v3111, %v3110
        %v3137 = vpack.c.b16 %v3113, %v3112
        %v3138 = vpack.c.b16 %v3115, %v3114
        %v3139 = vpack.c.b16 %v3117, %v3116
        %v3140 = vpack.c.b16 %v3119, %v3118
        %v3141 = vpack.c.b16 %v3121, %v3120
        %v3142 = vpack.c.b16 %v3123, %v3122
        %v3143 = vpack.c.b16 %v3125, %v3124
        %v3144 = vpack.c.b16 %v3127, %v3126
        %v3145 = vpack.c.b16 %v3129, %v3128
        %3162 = vmatpush.bf16.msra.mxu0 %v3137
        %3163 = vmatpush.bf16.msra.mxu0 %v3136
        %3164 = vmatpush.bf16.msra.mxu0 %v3135
        %3165 = vmatpush.bf16.msra.mxu0 %v3134
        %3166 = vmatpush.bf16.msra.mxu0 %v3133
        %3167 = vmatpush.bf16.msra.mxu0 %v3132
        %3168 = vmatpush.bf16.msra.mxu0 %v3131
        %3169 = vmatpush.bf16.msra.mxu0 %v3130
        %3170 = vmatmul.bf16.gmra.mxu0 %v3026
        %v3171 = vpop.f32.mrf.mxu0
        %v3172 = vadd.f32 %v3064, %v3171
        %v3173 = vpop.f32.mrf.mxu0
        %v3174 = vadd.f32 %v3064, %v3173
        %3175 = vmatmul.bf16.gmra.mxu0 %v3028
        %v3176 = vpop.f32.mrf.mxu0
        %v3177 = vadd.f32 %v3064, %v3176
        %v3178 = vpop.f32.mrf.mxu0
        %v3179 = vadd.f32 %v3064, %v3178
        %3180 = vdwg.mxu0
        %3181 = vmatpush.bf16.msra.mxu0 %v3145
        %3182 = vmatpush.bf16.msra.mxu0 %v3144
        %3183 = vmatpush.bf16.msra.mxu0 %v3143
        %3184 = vmatpush.bf16.msra.mxu0 %v3142
        %3185 = vmatpush.bf16.msra.mxu0 %v3141
        %3186 = vmatpush.bf16.msra.mxu0 %v3140
        %3187 = vmatpush.bf16.msra.mxu0 %v3139
        %3188 = vmatpush.bf16.msra.mxu0 %v3138
        %3189 = vmatmul.bf16.gmra.mxu0 %v3027
        %v3190 = vpop.f32.mrf.mxu0
        %v3191 = vadd.f32 %v3172, %v3190
        %v3192 = vpop.f32.mrf.mxu0
        %v3193 = vadd.f32 %v3174, %v3192
        %3194 = vmatmul.bf16.gmra.mxu0 %v3029
        %v3195 = vpop.f32.mrf.mxu0
        %v3196 = vadd.f32 %v3177, %v3195
        %v3197 = vpop.f32.mrf.mxu0
        %v3198 = vadd.f32 %v3179, %v3197
        %3199 = vdwg.mxu0
        %v3200 = vadd.f32 %v3191, %v2872
        %v3201 = vadd.f32 %v3193, %v2873
        %v3202 = vadd.f32 %v3196, %v2874
        %v3203 = vadd.f32 %v3198, %v2875
        %3204 = vadd.xlane.f32.xlu0 %v3200
        %v3205 = vpop.xlane.xlu0 %3204
        %3206 = vadd.xlane.f32.xlu0 %v3201
        %v3207 = vpop.xlane.xlu0 %3206
        %3208 = vadd.xlane.f32.xlu0 %v3202
        %v3209 = vpop.xlane.xlu0 %3208
        %3210 = vadd.xlane.f32.xlu0 %v3203
        %v3211 = vpop.xlane.xlu0 %3210
        %v3212 = vmul.f32 %v3205, %v2787
        %v3213 = vmul.f32 %v3207, %v2787
        %v3214 = vmul.f32 %v3209, %v2787
        %v3215 = vmul.f32 %v3211, %v2787
        %v3216 = vsub.f32 %v3200, %v3212
        %v3217 = vsub.f32 %v3201, %v3213
        %v3218 = vsub.f32 %v3202, %v3214
        %v3219 = vsub.f32 %v3203, %v3215
        %v3220 = vmul.f32 %v3216, %v3216
        %v3221 = vmul.f32 %v3217, %v3217
        %v3222 = vmul.f32 %v3218, %v3218
        %v3223 = vmul.f32 %v3219, %v3219
        %3224 = vadd.xlane.f32.xlu0 %v3220
        %v3225 = vpop.xlane.xlu0 %3224
        %3226 = vadd.xlane.f32.xlu0 %v3221
        %v3227 = vpop.xlane.xlu0 %3226
        %3228 = vadd.xlane.f32.xlu0 %v3222
        %v3229 = vpop.xlane.xlu0 %3228
        %3230 = vadd.xlane.f32.xlu0 %v3223
        %v3231 = vpop.xlane.xlu0 %3230
        %v3232 = vmul.f32 %v3225, %v2787
        %v3233 = vmul.f32 %v3227, %v2787
        %v3234 = vmul.f32 %v3229, %v2787
        %v3235 = vmul.f32 %v3231, %v2787
        %v3236 = vadd.f32 %v3232, 1e-06
        %v3237 = vadd.f32 %v3233, 1e-06
        %v3238 = vadd.f32 %v3234, 1e-06
        %v3239 = vadd.f32 %v3235, 1e-06
        %v3240 = vrsqrt.pop %v3236
        %v3241 = vmul.f32 %v3240, %v3236
        %v3242 = vmul.f32 %v3241, %v3240
        %v3243 = vmul.f32 0.5, %v3242
        %v3244 = vsub.f32 1.5, %v3243
        %v3245 = vmul.f32 %v3240, %v3244
        %vm3246 = vweird.f32 %v3236
        %vm3247 = vweird.f32 %v3240
        %vm3248 = vmor %vm3246, %vm3247
        %v3249 = vsel %vm3248, %v3240, %v3245
        %v3250 = vrsqrt.pop %v3237
        %v3251 = vmul.f32 %v3250, %v3237
        %v3252 = vmul.f32 %v3251, %v3250
        %v3253 = vmul.f32 0.5, %v3252
        %v3254 = vsub.f32 1.5, %v3253
        %v3255 = vmul.f32 %v3250, %v3254
        %vm3256 = vweird.f32 %v3237
        %vm3257 = vweird.f32 %v3250
        %vm3258 = vmor %vm3256, %vm3257
        %v3259 = vsel %vm3258, %v3250, %v3255
        %v3260 = vrsqrt.pop %v3238
        %v3261 = vmul.f32 %v3260, %v3238
        %v3262 = vmul.f32 %v3261, %v3260
        %v3263 = vmul.f32 0.5, %v3262
        %v3264 = vsub.f32 1.5, %v3263
        %v3265 = vmul.f32 %v3260, %v3264
        %vm3266 = vweird.f32 %v3238
        %vm3267 = vweird.f32 %v3260
        %vm3268 = vmor %vm3266, %vm3267
        %v3269 = vsel %vm3268, %v3260, %v3265
        %v3270 = vrsqrt.pop %v3239
        %v3271 = vmul.f32 %v3270, %v3239
        %v3272 = vmul.f32 %v3271, %v3270
        %v3273 = vmul.f32 0.5, %v3272
        %v3274 = vsub.f32 1.5, %v3273
        %v3275 = vmul.f32 %v3270, %v3274
        %vm3276 = vweird.f32 %v3239
        %vm3277 = vweird.f32 %v3270
        %vm3278 = vmor %vm3276, %vm3277
        %v3279 = vsel %vm3278, %v3270, %v3275
        %v3280 = vmul.f32 %v3216, %v3249
        %v3281 = vmul.f32 %v3217, %v3259
        %v3282 = vmul.f32 %v3218, %v3269
        %v3283 = vmul.f32 %v3219, %v3279
        %v3284 = vld [vmem:[%s11] sm:$0x1]
        %v3286 = vperm.slane %v3284, 0
        %v3288 = vmul.f32 %v3280, %v3286
        %v3289 = vmul.f32 %v3281, %v3286
        %v3290 = vmul.f32 %v3282, %v3286
        %v3291 = vmul.f32 %v3283, %v3286
        %v3292 = vld [vmem:[%s12] sm:$0x1]
        %v3294 = vperm.slane %v3292, 0
        %v3296 = vadd.f32 %v3288, %v3294
        %v3297 = vadd.f32 %v3289, %v3294
        %v3298 = vadd.f32 %v3290, %v3294
        %v3299 = vadd.f32 %v3291, %v3294
        %v3300 = vpack.c.bf16 %v3296, %v3296
        %v3301 = vpack.c.bf16 %v3297, %v3297
        %v3302 = vpack.c.bf16 %v3298, %v3298
        %v3303 = vpack.c.bf16 %v3299, %v3299
        %3304 = vst [vmem:[%s555] sm:$0xf] %v3300
        %3305 = vst [vmem:[%s555 + $0x4] sm:$0xf] %v3301
        %3306 = vst [vmem:[%s555 + $0x8] sm:$0xf] %v3302
        %3307 = vst [vmem:[%s555 + $0xc] sm:$0xf] %v3303
        %s3308 = sand.u32 %s333, 1
        %s3309 = scalar_lea.sflag [#allocation4], %s3308
        %s3310 = sand.u32 %s333, 1
        %s3311 = smul.addr %s3310, 16
        %s3312 = scalar_lea.vmem [#allocation13], %s3311
        // Predicated region
        $region97: #{tpu_custom_call.1} parent=71 // pred_check
          %p3313 = pneg %p343
        $region98: #{tpu_custom_call.1} parent=71 // pred_check_branch
          %3315 = sbr.rel (%p3313) target = $region100
        $region99: #{tpu_custom_call.1} parent=71 // pred_region
          %s3316 = smul.u32 4, %s38
          %3318 = vsyncadd %s3309, 0
          %s3319 = smul.addr %s37, 4
          %s3320 = sadd.s32 %s3316, %s3319
          %s3321 = smul.addr %s3320, 4
          %s3322 = scalar_lea.hbm %s13, %s3321
          %s3323 = sshll.u32 %s3312, 4
          %s3324 = int_to_ptr.vmem [resolvable:$true] %s3323
          %s3325 = sshll.u32 %s3322, 4
          %s3326 = int_to_ptr.hbm [resolvable:$true] %s3325
          %3331 = dma.vmem_to_hbm [thread:$0]  %s3324, 256, %s3326, %s3309, 64, 64, 4
        $region100: #{tpu_custom_call.1} parent=71 // pred_fallthru
          _
      $region72: #{tpu_custom_call.1} parent=5 // pred_fallthru
        _
      %p3332 = scmp.le.s32.totalorder 2, %s28
      // Predicated region
      $region101: #{tpu_custom_call.1} parent=5 // pred_check
        %p3333 = pneg %p3332
      $region102: #{tpu_custom_call.1} parent=5 // pred_check_branch
        %3335 = sbr.rel (%p3333) target = $region104
      $region103: #{tpu_custom_call.1} parent=5 // pred_region
        %s3336 = ssub.s32 %s28, 2
        // Predicated region
        $region105: #{tpu_custom_call.1} parent=103 // pred_check
          %p3337 = pneg %p349
        $region106: #{tpu_custom_call.1} parent=103 // pred_check_branch
          %3339 = sbr.rel (%p3337) target = $region108
        $region107: #{tpu_custom_call.1} parent=103 // pred_region
          %s3340 = sand.u32 %s334, 1
          %s3341 = scalar_lea.sflag [#allocation4], %s3340
          %s3342 = sand.u32 %s334, 1
          %s3343 = smul.addr %s3342, 16
          %s3344 = scalar_lea.vmem [#allocation13], %s3343
          %3346 = dma.done %s3341, 256
        $region108: #{tpu_custom_call.1} parent=103 // pred_fallthru
          _
      $region104: #{tpu_custom_call.1} parent=5 // pred_fallthru
        _
    $region6: #{tpu_custom_call.1} parent=1 // loop_footer
      %s32 = sadd.s32 1, %s28
    $region7: #{tpu_custom_call.1} parent=1 // loop_footer_branch
      %27 = sbr.rel target = $region3
    $region8: #{tpu_custom_call.1} parent=1 // loop_exit
      _
    %3347 = vsyncpa [#allocation3], 1
    %s3348 = scalar_lea.sflag [#allocation3], 1
    %3349 = vsyncpa %s3348, 1
    %3350 = vsyncpa [#allocation6], 1
    %3351 = vsyncpa [#allocation9], 1
    %3352 = vsyncpa [#allocation12], 1
    %3353 = vsyncpa [#allocation4], 1
    %s3354 = scalar_lea.sflag [#allocation4], 1
    %3355 = vsyncpa %s3354, 1

</llo_original>
